<compile_context>
chip_gen: v7x
topology: tpu7x:2x2x1
jax: 0.10.0
libtpu: 0.0.40
codegen_flags: <defaults>
</compile_context>

<pallas_src>
import functools
import math

import jax
import jax.numpy as jnp
from jax.experimental import pallas as pl
from jax.experimental.pallas import tpu as pltpu


_VMEM_LIMIT = 48 * 1024 * 1024  # fits v7x (64 MiB physical), raises v5e default


def _layer_norm(x, gamma, beta, eps=1e-5):
    mu = jnp.mean(x, axis=-1, keepdims=True)
    var = jnp.mean(jnp.square(x - mu), axis=-1, keepdims=True)
    return (x - mu) * jax.lax.rsqrt(var + eps) * gamma + beta


def _row_tile(n_rows, target=256):
    """Largest row tile <= target that divides n_rows (multiple of 8 when tiling)."""
    if n_rows <= target:
        return n_rows
    for t in range(target, 7, -1):
        if n_rows % t == 0 and t % 8 == 0:
            return t
    return n_rows  # single tile fallback


# ---------------------------------------------------------------------------
# Kernel 1: fused Q/K/V in-projections (row-tiled, weights VMEM-resident).
# ---------------------------------------------------------------------------
def qkv_proj_kernel(x_ref, pos_ref, wq_ref, bq_ref, wk_ref, bk_ref,
                    wv_ref, bv_ref, q_ref, k_ref, v_ref):
    x = x_ref[...]                                     # (TR, D) f32
    qk_in = (x + pos_ref[...]).astype(jnp.bfloat16)    # with_pos_embed for q, k
    xv = x.astype(jnp.bfloat16)                        # v uses plain src
    q = jnp.dot(qk_in, wq_ref[...], preferred_element_type=jnp.float32) + bq_ref[...]
    k = jnp.dot(qk_in, wk_ref[...], preferred_element_type=jnp.float32) + bk_ref[...]
    v = jnp.dot(xv, wv_ref[...], preferred_element_type=jnp.float32) + bv_ref[...]
    q_ref[...] = q.astype(q_ref.dtype)
    k_ref[...] = k.astype(k_ref.dtype)
    v_ref[...] = v.astype(v_ref.dtype)


def qkv_projection(x2, pos2, p, *, row_tile):
    R, D = x2.shape
    n_r = R // row_tile
    row = lambda i: (i, 0)
    const = lambda i: (0, 0)
    row_spec = pl.BlockSpec((row_tile, D), row)
    w_spec = pl.BlockSpec((D, D), const)
    b_spec = pl.BlockSpec((1, D), const)
    flops = 6 * R * D * D
    bytes_accessed = 2 * R * D * 4 + 3 * (D * D * 2 + D * 4) + 3 * R * D * 2
    return pl.pallas_call(
        qkv_proj_kernel,
        grid=(n_r,),
        in_specs=[row_spec, row_spec, w_spec, b_spec, w_spec, b_spec, w_spec, b_spec],
        out_specs=[row_spec, row_spec, row_spec],
        out_shape=[jax.ShapeDtypeStruct((R, D), jnp.bfloat16)] * 3,
        compiler_params=pltpu.CompilerParams(
            dimension_semantics=("parallel",),
            vmem_limit_bytes=_VMEM_LIMIT),
        cost_estimate=pl.CostEstimate(flops=flops, transcendentals=0,
                                      bytes_accessed=bytes_accessed),
    )(x2, pos2, p["wq"], p["bq"], p["wk"], p["bk"], p["wv"], p["bv"])


# ---------------------------------------------------------------------------
# Kernel 2: softmax attention, one (batch, head) tile per grid step.
# ---------------------------------------------------------------------------
def attention_kernel(q_ref, k_ref, v_ref, o_ref):
    q = q_ref[0]                                       # (L, hd) bf16, pre-scaled
    k = k_ref[0]                                       # (L, hd) bf16
    v = v_ref[0]                                       # (L, hd) bf16
    # scores = q @ k^T without an explicit transpose: contract the shared hd axis.
    s = jax.lax.dot_general(q, k, (((1,), (1,)), ((), ())),
                            preferred_element_type=jnp.float32)      # (L, L) f32
    s = s - jnp.max(s, axis=-1, keepdims=True)
    pmat = jnp.exp(s)
    pmat = pmat * pl.reciprocal(jnp.sum(pmat, axis=-1, keepdims=True), approx=True)
    o = jnp.dot(pmat.astype(jnp.bfloat16), v, preferred_element_type=jnp.float32)
    o_ref[0] = o.astype(o_ref.dtype)


def attention(q, k, v, *, num_heads):
    B, L, D = q.shape
    hd = D // num_heads
    spec = pl.BlockSpec((1, L, hd), lambda b, h: (b, 0, h))
    flops = 4 * B * num_heads * L * L * hd
    bytes_accessed = 4 * B * L * D * 2
    return pl.pallas_call(
        attention_kernel,
        grid=(B, num_heads),
        in_specs=[spec, spec, spec],
        out_specs=spec,
        out_shape=jax.ShapeDtypeStruct((B, L, D), jnp.bfloat16),
        compiler_params=pltpu.CompilerParams(
            dimension_semantics=("parallel", "parallel"),
            vmem_limit_bytes=_VMEM_LIMIT),
        cost_estimate=pl.CostEstimate(flops=flops,
                                      transcendentals=B * num_heads * L * L,
                                      bytes_accessed=bytes_accessed),
    )(q, k, v)


# ---------------------------------------------------------------------------
# Kernel 3: out-projection + residual + norm1 + ReLU FFN + residual + norm2.
# ---------------------------------------------------------------------------
def post_attn_kernel(x_ref, attn_ref, wo_ref, bo_ref, w1_ref, b1_ref,
                     w2_ref, b2_ref, g1_ref, be1_ref, g2_ref, be2_ref, o_ref):
    x = x_ref[...]                                     # (TR, D) f32 residual
    attn = jnp.dot(attn_ref[...], wo_ref[...],
                   preferred_element_type=jnp.float32) + bo_ref[...]
    src = _layer_norm(x + attn, g1_ref[...], be1_ref[...])
    h = jnp.dot(src.astype(jnp.bfloat16), w1_ref[...],
                preferred_element_type=jnp.float32) + b1_ref[...]
    h = jnp.maximum(h, 0.0)                            # relu
    ff = jnp.dot(h.astype(jnp.bfloat16), w2_ref[...],
                 preferred_element_type=jnp.float32) + b2_ref[...]
    src = _layer_norm(src + ff, g2_ref[...], be2_ref[...])
    o_ref[...] = src.astype(o_ref.dtype)


def post_attention(x2, attn2, p, *, row_tile):
    R, D = x2.shape
    FF = p["w1"].shape[1]
    n_r = R // row_tile
    row = lambda i: (i, 0)
    const = lambda i: (0, 0)
    row_spec = pl.BlockSpec((row_tile, D), row)
    wD = pl.BlockSpec((D, D), const)
    bD = pl.BlockSpec((1, D), const)
    w1s = pl.BlockSpec((D, FF), const)
    b1s = pl.BlockSpec((1, FF), const)
    w2s = pl.BlockSpec((FF, D), const)
    flops = 2 * R * (D * D + 2 * D * FF)
    bytes_accessed = R * D * (4 + 2 + 4) + (D * D + 2 * D * FF) * 2
    return pl.pallas_call(
        post_attn_kernel,
        grid=(n_r,),
        in_specs=[row_spec, row_spec, wD, bD, w1s, b1s, w2s, bD, bD, bD, bD, bD],
        out_specs=row_spec,
        out_shape=jax.ShapeDtypeStruct((R, D), jnp.float32),
        compiler_params=pltpu.CompilerParams(
            dimension_semantics=("parallel",),
            vmem_limit_bytes=_VMEM_LIMIT),
        cost_estimate=pl.CostEstimate(flops=flops, transcendentals=2 * R,
                                      bytes_accessed=bytes_accessed),
    )(x2, attn2, p["wo"], p["bo"], p["w1"], p["b1"], p["w2"], p["b2"],
      p["g1"], p["be1"], p["g2"], p["be2"])


# ---------------------------------------------------------------------------
# Layer / stack wrappers.
# ---------------------------------------------------------------------------
def encoder_layer(x2, pos2, p, *, batch, seq_len, num_heads, row_tile):
    R, D = x2.shape
    q2, k2, v2 = qkv_projection(x2, pos2, p, row_tile=row_tile)
    q = q2.reshape(batch, seq_len, D)
    k = k2.reshape(batch, seq_len, D)
    v = v2.reshape(batch, seq_len, D)
    attn = attention(q, k, v, num_heads=num_heads).reshape(R, D)
    return post_attention(x2, attn, p, row_tile=row_tile)


def transformer_forward(src_lbd, pos_lbd, layer_params, *, num_heads):
    # src_lbd: (L, B, D) — same axis convention as the PyTorch module.
    L, B, D = src_lbd.shape
    assert D % num_heads == 0
    head_dim = D // num_heads
    assert num_heads == 1 or head_dim % 128 == 0, (
        "attention BlockSpec slices heads along the lane dim; head_dim must be a "
        "multiple of 128 (module default dim=512, nhead=2 -> head_dim=256).")
    x = jnp.transpose(src_lbd, (1, 0, 2)).reshape(B * L, D)
    if pos_lbd is None:
        pos = jnp.zeros_like(x)
    else:
        pos = jnp.transpose(pos_lbd, (1, 0, 2)).reshape(B * L, D)
    row_tile = _row_tile(B * L)
    for p in layer_params:
        x = encoder_layer(x, pos, p, batch=B, seq_len=L,
                          num_heads=num_heads, row_tile=row_tile)
    return jnp.transpose(x.reshape(B, L, D), (1, 0, 2))


# ---------------------------------------------------------------------------
# Parameters (weights stored (in, out), bf16 for the MXU; q-scaling folded in).
# ---------------------------------------------------------------------------
def _xavier_uniform(key, fan_in, fan_out):
    limit = math.sqrt(6.0 / (fan_in + fan_out))
    return jax.random.uniform(key, (fan_in, fan_out), jnp.float32, -limit, limit)


def init_params(key, num_layers, d_model, dim_feedforward, num_heads):
    head_dim = d_model // num_heads
    scaling = head_dim ** (-0.5)
    params = []
    for _ in range(num_layers):
        keys = jax.random.split(key, 8)
        key = keys[-1]
        p = {
            # q scaling folded into wq/bq (saves a VPU pass over q per layer).
            "wq": (_xavier_uniform(keys[0], d_model, d_model) * scaling).astype(jnp.bfloat16),
            "bq": jnp.zeros((1, d_model), jnp.float32),
            "wk": _xavier_uniform(keys[1], d_model, d_model).astype(jnp.bfloat16),
            "bk": jnp.zeros((1, d_model), jnp.float32),
            "wv": _xavier_uniform(keys[2], d_model, d_model).astype(jnp.bfloat16),
            "bv": jnp.zeros((1, d_model), jnp.float32),
            "wo": _xavier_uniform(keys[3], d_model, d_model).astype(jnp.bfloat16),
            "bo": jnp.zeros((1, d_model), jnp.float32),
            "w1": _xavier_uniform(keys[4], d_model, dim_feedforward).astype(jnp.bfloat16),
            "b1": 0.01 * jax.random.normal(keys[5], (1, dim_feedforward), jnp.float32),
            "w2": _xavier_uniform(keys[6], dim_feedforward, d_model).astype(jnp.bfloat16),
            "b2": jnp.zeros((1, d_model), jnp.float32),
            "g1": jnp.ones((1, d_model), jnp.float32),
            "be1": jnp.zeros((1, d_model), jnp.float32),
            "g2": jnp.ones((1, d_model), jnp.float32),
            "be2": jnp.zeros((1, d_model), jnp.float32),
        }
        params.append(p)
    return params


# ---------------------------------------------------------------------------
# Pure-JAX f32 reference (mirrors the PyTorch forward, eval mode).
# ---------------------------------------------------------------------------
def _reference_forward(src_lbd, pos_lbd, layer_params, *, num_heads):
    L, B, D = src_lbd.shape
    hd = D // num_heads
    x = jnp.transpose(src_lbd, (1, 0, 2)).astype(jnp.float32)
    pos = jnp.transpose(pos_lbd, (1, 0, 2)).astype(jnp.float32)
    for p in layer_params:
        qk = x + pos
        q = qk @ p["wq"].astype(jnp.float32) + p["bq"]   # scaling folded in wq
        k = qk @ p["wk"].astype(jnp.float32) + p["bk"]
        v = x @ p["wv"].astype(jnp.float32) + p["bv"]
        qh = q.reshape(B, L, num_heads, hd).transpose(0, 2, 1, 3)
        kh = k.reshape(B, L, num_heads, hd).transpose(0, 2, 1, 3)
        vh = v.reshape(B, L, num_heads, hd).transpose(0, 2, 1, 3)
        s = jnp.einsum("bhqd,bhkd->bhqk", qh, kh)
        w = jax.nn.softmax(s, axis=-1)
        o = jnp.einsum("bhqk,bhkd->bhqd", w, vh).transpose(0, 2, 1, 3).reshape(B, L, D)
        o = o @ p["wo"].astype(jnp.float32) + p["bo"]
        x = _layer_norm(x + o, p["g1"], p["be1"])
        h = jnp.maximum(x @ p["w1"].astype(jnp.float32) + p["b1"], 0.0)
        ff = h @ p["w2"].astype(jnp.float32) + p["b2"]
        x = _layer_norm(x + ff, p["g2"], p["be2"])
    return jnp.transpose(x, (1, 0, 2))


if __name__ == "__main__":
    # Small shapes consistent with the module's forward: src is (seq, batch, dim).
    # dim=256 / nhead=2 keeps head_dim lane-aligned (the real module default
    # dim=512 / nhead=2 -> head_dim=256 also satisfies this).
    L, B, D = 16, 2, 256
    NHEAD = 2
    NUM_LAYERS = 2
    DIM_FF = 512  # module default is 2048; shrunk for the small synthetic example

    key = jax.random.PRNGKey(0)
    k_src, k_pos, k_par = jax.random.split(key, 3)
    src = jax.random.normal(k_src, (L, B, D), jnp.float32)
    pos = jax.random.normal(k_pos, (L, B, D), jnp.float32)
    params = init_params(k_par, NUM_LAYERS, D, DIM_FF, NHEAD)

    fwd = jax.jit(functools.partial(transformer_forward, num_heads=NHEAD))
    out = jax.block_until_ready(fwd(src, pos, params))

    assert out.shape == (L, B, D)
    assert bool(jnp.all(jnp.isfinite(out)))

    # Loose check vs an f32 reference (bf16 MXU inputs + approx reciprocal).
    ref = _reference_forward(src, pos, params, num_heads=NHEAD)
    err = float(jnp.max(jnp.abs(out - ref)))
    assert err < 0.2, f"max abs error vs reference too large: {err}"

    print("KERNEL_OK")
</pallas_src>

<mosaic_0001>
module attributes {stable_mosaic.version = 11 : i64} {
  func.func @qkv_proj_kernel(%arg0: i32, %arg1: memref<32x256xf32, #tpu.memory_space<vmem>>, %arg2: memref<32x256xf32, #tpu.memory_space<vmem>>, %arg3: memref<256x256xbf16, #tpu.memory_space<vmem>>, %arg4: memref<1x256xf32, #tpu.memory_space<vmem>>, %arg5: memref<256x256xbf16, #tpu.memory_space<vmem>>, %arg6: memref<1x256xf32, #tpu.memory_space<vmem>>, %arg7: memref<256x256xbf16, #tpu.memory_space<vmem>>, %arg8: memref<1x256xf32, #tpu.memory_space<vmem>>, %arg9: memref<32x256xbf16, #tpu.memory_space<vmem>>, %arg10: memref<32x256xbf16, #tpu.memory_space<vmem>>, %arg11: memref<32x256xbf16, #tpu.memory_space<vmem>>) attributes {dimension_semantics = [#tpu.dimension_semantics<parallel>], iteration_bounds = array<i64: 1>, scalar_prefetch = 0 : i64, scratch_operands = 0 : i64, tpu.core_type = #tpu.core_type<tc>, window_params = [{transform_indices = @transform_0, window_bounds = array<i64: 32, 256>}, {transform_indices = @transform_1, window_bounds = array<i64: 32, 256>}, {pipeline_mode = #tpu.pipeline_mode<synchronous>, transform_indices = @transform_2, window_bounds = array<i64: 256, 256>}, {pipeline_mode = #tpu.pipeline_mode<synchronous>, transform_indices = @transform_3, window_bounds = array<i64: 1, 256>}, {pipeline_mode = #tpu.pipeline_mode<synchronous>, transform_indices = @transform_4, window_bounds = array<i64: 256, 256>}, {pipeline_mode = #tpu.pipeline_mode<synchronous>, transform_indices = @transform_5, window_bounds = array<i64: 1, 256>}, {pipeline_mode = #tpu.pipeline_mode<synchronous>, transform_indices = @transform_6, window_bounds = array<i64: 256, 256>}, {pipeline_mode = #tpu.pipeline_mode<synchronous>, transform_indices = @transform_7, window_bounds = array<i64: 1, 256>}, {transform_indices = @transform_8, window_bounds = array<i64: 32, 256>}, {transform_indices = @transform_9, window_bounds = array<i64: 32, 256>}, {transform_indices = @transform_10, window_bounds = array<i64: 32, 256>}]} {
    %c0 = arith.constant 0 : index
    %c0_0 = arith.constant 0 : index
    %0 = vector.load %arg1[%c0, %c0_0] : memref<32x256xf32, #tpu.memory_space<vmem>>, vector<32x256xf32>
    %c0_1 = arith.constant 0 : index
    %c0_2 = arith.constant 0 : index
    %1 = vector.load %arg2[%c0_1, %c0_2] : memref<32x256xf32, #tpu.memory_space<vmem>>, vector<32x256xf32>
    %2 = arith.addf %0, %1 : vector<32x256xf32>
    %3 = arith.truncf %2 : vector<32x256xf32> to vector<32x256xbf16>
    %4 = arith.truncf %0 : vector<32x256xf32> to vector<32x256xbf16>
    %c0_3 = arith.constant 0 : index
    %c0_4 = arith.constant 0 : index
    %5 = vector.load %arg3[%c0_3, %c0_4] : memref<256x256xbf16, #tpu.memory_space<vmem>>, vector<256x256xbf16>
    %cst = arith.constant dense<0.000000e+00> : vector<32x256xf32>
    %6 = tpu.matmul %3, %5, %cst {dimension_numbers = #tpu.dot_dimension_numbers<[1], [0], [0], [1], [0, 0, 1, 1], [], []>} : vector<32x256xbf16>, vector<256x256xbf16>, vector<32x256xf32> -> vector<32x256xf32>
    %c0_5 = arith.constant 0 : index
    %c0_6 = arith.constant 0 : index
    %7 = vector.load %arg4[%c0_5, %c0_6] : memref<1x256xf32, #tpu.memory_space<vmem>>, vector<1x256xf32>
    %8 = vector.broadcast %7 : vector<1x256xf32> to vector<32x256xf32>
    %9 = arith.addf %6, %8 : vector<32x256xf32>
    %c0_7 = arith.constant 0 : index
    %c0_8 = arith.constant 0 : index
    %10 = vector.load %arg5[%c0_7, %c0_8] : memref<256x256xbf16, #tpu.memory_space<vmem>>, vector<256x256xbf16>
    %cst_9 = arith.constant dense<0.000000e+00> : vector<32x256xf32>
    %11 = tpu.matmul %3, %10, %cst_9 {dimension_numbers = #tpu.dot_dimension_numbers<[1], [0], [0], [1], [0, 0, 1, 1], [], []>} : vector<32x256xbf16>, vector<256x256xbf16>, vector<32x256xf32> -> vector<32x256xf32>
    %c0_10 = arith.constant 0 : index
    %c0_11 = arith.constant 0 : index
    %12 = vector.load %arg6[%c0_10, %c0_11] : memref<1x256xf32, #tpu.memory_space<vmem>>, vector<1x256xf32>
    %13 = vector.broadcast %12 : vector<1x256xf32> to vector<32x256xf32>
    %14 = arith.addf %11, %13 : vector<32x256xf32>
    %c0_12 = arith.constant 0 : index
    %c0_13 = arith.constant 0 : index
    %15 = vector.load %arg7[%c0_12, %c0_13] : memref<256x256xbf16, #tpu.memory_space<vmem>>, vector<256x256xbf16>
    %cst_14 = arith.constant dense<0.000000e+00> : vector<32x256xf32>
    %16 = tpu.matmul %4, %15, %cst_14 {dimension_numbers = #tpu.dot_dimension_numbers<[1], [0], [0], [1], [0, 0, 1, 1], [], []>} : vector<32x256xbf16>, vector<256x256xbf16>, vector<32x256xf32> -> vector<32x256xf32>
    %c0_15 = arith.constant 0 : index
    %c0_16 = arith.constant 0 : index
    %17 = vector.load %arg8[%c0_15, %c0_16] : memref<1x256xf32, #tpu.memory_space<vmem>>, vector<1x256xf32>
    %18 = vector.broadcast %17 : vector<1x256xf32> to vector<32x256xf32>
    %19 = arith.addf %16, %18 : vector<32x256xf32>
    %20 = arith.truncf %9 : vector<32x256xf32> to vector<32x256xbf16>
    %c0_17 = arith.constant 0 : index
    %c0_18 = arith.constant 0 : index
    %21 = vector.load %arg9[%c0_17, %c0_18] : memref<32x256xbf16, #tpu.memory_space<vmem>>, vector<32x256xbf16>
    tpu.vector_store %arg9[%c0_17, %c0_18], %20 {strides = array<i32>} : memref<32x256xbf16, #tpu.memory_space<vmem>>, vector<32x256xbf16>,
    %22 = arith.truncf %14 : vector<32x256xf32> to vector<32x256xbf16>
    %c0_19 = arith.constant 0 : index
    %c0_20 = arith.constant 0 : index
    %23 = vector.load %arg10[%c0_19, %c0_20] : memref<32x256xbf16, #tpu.memory_space<vmem>>, vector<32x256xbf16>
    tpu.vector_store %arg10[%c0_19, %c0_20], %22 {strides = array<i32>} : memref<32x256xbf16, #tpu.memory_space<vmem>>, vector<32x256xbf16>,
    %24 = arith.truncf %19 : vector<32x256xf32> to vector<32x256xbf16>
    %c0_21 = arith.constant 0 : index
    %c0_22 = arith.constant 0 : index
    %25 = vector.load %arg11[%c0_21, %c0_22] : memref<32x256xbf16, #tpu.memory_space<vmem>>, vector<32x256xbf16>
    tpu.vector_store %arg11[%c0_21, %c0_22], %24 {strides = array<i32>} : memref<32x256xbf16, #tpu.memory_space<vmem>>, vector<32x256xbf16>,
    return
  }
  func.func @transform_0(%arg0: i32) -> (i32, i32) {
    %c0_i32 = arith.constant 0 : i32
    %c0_i32_0 = arith.constant 0 : i32
    return %arg0, %c0_i32 : i32, i32
  }
  func.func @transform_1(%arg0: i32) -> (i32, i32) {
    %c0_i32 = arith.constant 0 : i32
    %c0_i32_0 = arith.constant 0 : i32
    return %arg0, %c0_i32 : i32, i32
  }
  func.func @transform_2(%arg0: i32) -> (i32, i32) {
    %c0_i32 = arith.constant 0 : i32
    %c0_i32_0 = arith.constant 0 : i32
    %c0_i32_1 = arith.constant 0 : i32
    return %c0_i32, %c0_i32_0 : i32, i32
  }
  func.func @transform_3(%arg0: i32) -> (i32, i32) {
    %c0_i32 = arith.constant 0 : i32
    %c0_i32_0 = arith.constant 0 : i32
    %c0_i32_1 = arith.constant 0 : i32
    return %c0_i32, %c0_i32_0 : i32, i32
  }
  func.func @transform_4(%arg0: i32) -> (i32, i32) {
    %c0_i32 = arith.constant 0 : i32
    %c0_i32_0 = arith.constant 0 : i32
    %c0_i32_1 = arith.constant 0 : i32
    return %c0_i32, %c0_i32_0 : i32, i32
  }
  func.func @transform_5(%arg0: i32) -> (i32, i32) {
    %c0_i32 = arith.constant 0 : i32
    %c0_i32_0 = arith.constant 0 : i32
    %c0_i32_1 = arith.constant 0 : i32
    return %c0_i32, %c0_i32_0 : i32, i32
  }
  func.func @transform_6(%arg0: i32) -> (i32, i32) {
    %c0_i32 = arith.constant 0 : i32
    %c0_i32_0 = arith.constant 0 : i32
    %c0_i32_1 = arith.constant 0 : i32
    return %c0_i32, %c0_i32_0 : i32, i32
  }
  func.func @transform_7(%arg0: i32) -> (i32, i32) {
    %c0_i32 = arith.constant 0 : i32
    %c0_i32_0 = arith.constant 0 : i32
    %c0_i32_1 = arith.constant 0 : i32
    return %c0_i32, %c0_i32_0 : i32, i32
  }
  func.func @transform_8(%arg0: i32) -> (i32, i32) {
    %c0_i32 = arith.constant 0 : i32
    %c0_i32_0 = arith.constant 0 : i32
    return %arg0, %c0_i32 : i32, i32
  }
  func.func @transform_9(%arg0: i32) -> (i32, i32) {
    %c0_i32 = arith.constant 0 : i32
    %c0_i32_0 = arith.constant 0 : i32
    return %arg0, %c0_i32 : i32, i32
  }
  func.func @transform_10(%arg0: i32) -> (i32, i32) {
    %c0_i32 = arith.constant 0 : i32
    %c0_i32_0 = arith.constant 0 : i32
    return %arg0, %c0_i32 : i32, i32
  }
}

module attributes {stable_mosaic.version = 11 : i64} {
  func.func @post_attn_kernel(%arg0: i32, %arg1: memref<32x256xf32, #tpu.memory_space<vmem>>, %arg2: memref<32x256xbf16, #tpu.memory_space<vmem>>, %arg3: memref<256x256xbf16, #tpu.memory_space<vmem>>, %arg4: memref<1x256xf32, #tpu.memory_space<vmem>>, %arg5: memref<256x512xbf16, #tpu.memory_space<vmem>>, %arg6: memref<1x512xf32, #tpu.memory_space<vmem>>, %arg7: memref<512x256xbf16, #tpu.memory_space<vmem>>, %arg8: memref<1x256xf32, #tpu.memory_space<vmem>>, %arg9: memref<1x256xf32, #tpu.memory_space<vmem>>, %arg10: memref<1x256xf32, #tpu.memory_space<vmem>>, %arg11: memref<1x256xf32, #tpu.memory_space<vmem>>, %arg12: memref<1x256xf32, #tpu.memory_space<vmem>>, %arg13: memref<32x256xf32, #tpu.memory_space<vmem>>) attributes {dimension_semantics = [#tpu.dimension_semantics<parallel>], iteration_bounds = array<i64: 1>, scalar_prefetch = 0 : i64, scratch_operands = 0 : i64, tpu.core_type = #tpu.core_type<tc>, window_params = [{transform_indices = @transform_0, window_bounds = array<i64: 32, 256>}, {transform_indices = @transform_1, window_bounds = array<i64: 32, 256>}, {pipeline_mode = #tpu.pipeline_mode<synchronous>, transform_indices = @transform_2, window_bounds = array<i64: 256, 256>}, {pipeline_mode = #tpu.pipeline_mode<synchronous>, transform_indices = @transform_3, window_bounds = array<i64: 1, 256>}, {pipeline_mode = #tpu.pipeline_mode<synchronous>, transform_indices = @transform_4, window_bounds = array<i64: 256, 512>}, {pipeline_mode = #tpu.pipeline_mode<synchronous>, transform_indices = @transform_5, window_bounds = array<i64: 1, 512>}, {pipeline_mode = #tpu.pipeline_mode<synchronous>, transform_indices = @transform_6, window_bounds = array<i64: 512, 256>}, {pipeline_mode = #tpu.pipeline_mode<synchronous>, transform_indices = @transform_7, window_bounds = array<i64: 1, 256>}, {pipeline_mode = #tpu.pipeline_mode<synchronous>, transform_indices = @transform_8, window_bounds = array<i64: 1, 256>}, {pipeline_mode = #tpu.pipeline_mode<synchronous>, transform_indices = @transform_9, window_bounds = array<i64: 1, 256>}, {pipeline_mode = #tpu.pipeline_mode<synchronous>, transform_indices = @transform_10, window_bounds = array<i64: 1, 256>}, {pipeline_mode = #tpu.pipeline_mode<synchronous>, transform_indices = @transform_11, window_bounds = array<i64: 1, 256>}, {transform_indices = @transform_12, window_bounds = array<i64: 32, 256>}]} {
    %c0 = arith.constant 0 : index
    %c0_0 = arith.constant 0 : index
    %0 = vector.load %arg1[%c0, %c0_0] : memref<32x256xf32, #tpu.memory_space<vmem>>, vector<32x256xf32>
    %c0_1 = arith.constant 0 : index
    %c0_2 = arith.constant 0 : index
    %1 = vector.load %arg2[%c0_1, %c0_2] : memref<32x256xbf16, #tpu.memory_space<vmem>>, vector<32x256xbf16>
    %c0_3 = arith.constant 0 : index
    %c0_4 = arith.constant 0 : index
    %2 = vector.load %arg3[%c0_3, %c0_4] : memref<256x256xbf16, #tpu.memory_space<vmem>>, vector<256x256xbf16>
    %cst = arith.constant dense<0.000000e+00> : vector<32x256xf32>
    %3 = tpu.matmul %1, %2, %cst {dimension_numbers = #tpu.dot_dimension_numbers<[1], [0], [0], [1], [0, 0, 1, 1], [], []>} : vector<32x256xbf16>, vector<256x256xbf16>, vector<32x256xf32> -> vector<32x256xf32>
    %c0_5 = arith.constant 0 : index
    %c0_6 = arith.constant 0 : index
    %4 = vector.load %arg4[%c0_5, %c0_6] : memref<1x256xf32, #tpu.memory_space<vmem>>, vector<1x256xf32>
    %5 = vector.broadcast %4 : vector<1x256xf32> to vector<32x256xf32>
    %6 = arith.addf %3, %5 : vector<32x256xf32>
    %7 = arith.addf %0, %6 : vector<32x256xf32>
    %c0_7 = arith.constant 0 : index
    %c0_8 = arith.constant 0 : index
    %8 = vector.load %arg9[%c0_7, %c0_8] : memref<1x256xf32, #tpu.memory_space<vmem>>, vector<1x256xf32>
    %c0_9 = arith.constant 0 : index
    %c0_10 = arith.constant 0 : index
    %9 = vector.load %arg10[%c0_9, %c0_10] : memref<1x256xf32, #tpu.memory_space<vmem>>, vector<1x256xf32>
    %cst_11 = arith.constant dense<0.000000e+00> : vector<32xf32>
    %10 = vector.multi_reduction <add>, %7, %cst_11 [1] : vector<32x256xf32> to vector<32xf32>
    %11 = vector.shape_cast %10 : vector<32xf32> to vector<32x1xf32>
    %cst_12 = arith.constant 2.560000e+02 : f32
    %12 = vector.broadcast %cst_12 : f32 to vector<32x1xf32>
    %13 = arith.divf %11, %12 : vector<32x1xf32>
    %14 = vector.broadcast %13 : vector<32x1xf32> to vector<32x256xf32>
    %15 = arith.subf %7, %14 : vector<32x256xf32>
    %16 = arith.mulf %15, %15 : vector<32x256xf32>
    %cst_13 = arith.constant dense<0.000000e+00> : vector<32xf32>
    %17 = vector.multi_reduction <add>, %16, %cst_13 [1] : vector<32x256xf32> to vector<32xf32>
    %18 = vector.shape_cast %17 : vector<32xf32> to vector<32x1xf32>
    %cst_14 = arith.constant 2.560000e+02 : f32
    %19 = vector.broadcast %cst_14 : f32 to vector<32x1xf32>
    %20 = arith.divf %18, %19 : vector<32x1xf32>
    %21 = vector.broadcast %13 : vector<32x1xf32> to vector<32x256xf32>
    %22 = arith.subf %7, %21 : vector<32x256xf32>
    %cst_15 = arith.constant 9.99999974E-6 : f32
    %23 = vector.broadcast %cst_15 : f32 to vector<32x1xf32>
    %24 = arith.addf %20, %23 : vector<32x1xf32>
    %25 = math.rsqrt %24 : vector<32x1xf32>
    %26 = vector.broadcast %25 : vector<32x1xf32> to vector<32x256xf32>
    %27 = arith.mulf %22, %26 : vector<32x256xf32>
    %28 = vector.broadcast %8 : vector<1x256xf32> to vector<32x256xf32>
    %29 = arith.mulf %27, %28 : vector<32x256xf32>
    %30 = vector.broadcast %9 : vector<1x256xf32> to vector<32x256xf32>
    %31 = arith.addf %29, %30 : vector<32x256xf32>
    %32 = arith.truncf %31 : vector<32x256xf32> to vector<32x256xbf16>
    %c0_16 = arith.constant 0 : index
    %c0_17 = arith.constant 0 : index
    %33 = vector.load %arg5[%c0_16, %c0_17] : memref<256x512xbf16, #tpu.memory_space<vmem>>, vector<256x512xbf16>
    %cst_18 = arith.constant dense<0.000000e+00> : vector<32x512xf32>
    %34 = tpu.matmul %32, %33, %cst_18 {dimension_numbers = #tpu.dot_dimension_numbers<[1], [0], [0], [1], [0, 0, 1, 1], [], []>} : vector<32x256xbf16>, vector<256x512xbf16>, vector<32x512xf32> -> vector<32x512xf32>
    %c0_19 = arith.constant 0 : index
    %c0_20 = arith.constant 0 : index
    %35 = vector.load %arg6[%c0_19, %c0_20] : memref<1x512xf32, #tpu.memory_space<vmem>>, vector<1x512xf32>
    %36 = vector.broadcast %35 : vector<1x512xf32> to vector<32x512xf32>
    %37 = arith.addf %34, %36 : vector<32x512xf32>
    %cst_21 = arith.constant 0.000000e+00 : f32
    %38 = vector.broadcast %cst_21 : f32 to vector<32x512xf32>
    %39 = arith.maximumf %37, %38 : vector<32x512xf32>
    %40 = arith.truncf %39 : vector<32x512xf32> to vector<32x512xbf16>
    %c0_22 = arith.constant 0 : index
    %c0_23 = arith.constant 0 : index
    %41 = vector.load %arg7[%c0_22, %c0_23] : memref<512x256xbf16, #tpu.memory_space<vmem>>, vector<512x256xbf16>
    %cst_24 = arith.constant dense<0.000000e+00> : vector<32x256xf32>
    %42 = tpu.matmul %40, %41, %cst_24 {dimension_numbers = #tpu.dot_dimension_numbers<[1], [0], [0], [1], [0, 0, 1, 1], [], []>} : vector<32x512xbf16>, vector<512x256xbf16>, vector<32x256xf32> -> vector<32x256xf32>
    %c0_25 = arith.constant 0 : index
    %c0_26 = arith.constant 0 : index
    %43 = vector.load %arg8[%c0_25, %c0_26] : memref<1x256xf32, #tpu.memory_space<vmem>>, vector<1x256xf32>
    %44 = vector.broadcast %43 : vector<1x256xf32> to vector<32x256xf32>
    %45 = arith.addf %42, %44 : vector<32x256xf32>
    %46 = arith.addf %31, %45 : vector<32x256xf32>
    %c0_27 = arith.constant 0 : index
    %c0_28 = arith.constant 0 : index
    %47 = vector.load %arg11[%c0_27, %c0_28] : memref<1x256xf32, #tpu.memory_space<vmem>>, vector<1x256xf32>
    %c0_29 = arith.constant 0 : index
    %c0_30 = arith.constant 0 : index
    %48 = vector.load %arg12[%c0_29, %c0_30] : memref<1x256xf32, #tpu.memory_space<vmem>>, vector<1x256xf32>
    %cst_31 = arith.constant dense<0.000000e+00> : vector<32xf32>
    %49 = vector.multi_reduction <add>, %46, %cst_31 [1] : vector<32x256xf32> to vector<32xf32>
    %50 = vector.shape_cast %49 : vector<32xf32> to vector<32x1xf32>
    %cst_32 = arith.constant 2.560000e+02 : f32
    %51 = vector.broadcast %cst_32 : f32 to vector<32x1xf32>
    %52 = arith.divf %50, %51 : vector<32x1xf32>
    %53 = vector.broadcast %52 : vector<32x1xf32> to vector<32x256xf32>
    %54 = arith.subf %46, %53 : vector<32x256xf32>
    %55 = arith.mulf %54, %54 : vector<32x256xf32>
    %cst_33 = arith.constant dense<0.000000e+00> : vector<32xf32>
    %56 = vector.multi_reduction <add>, %55, %cst_33 [1] : vector<32x256xf32> to vector<32xf32>
    %57 = vector.shape_cast %56 : vector<32xf32> to vector<32x1xf32>
    %cst_34 = arith.constant 2.560000e+02 : f32
    %58 = vector.broadcast %cst_34 : f32 to vector<32x1xf32>
    %59 = arith.divf %57, %58 : vector<32x1xf32>
    %60 = vector.broadcast %52 : vector<32x1xf32> to vector<32x256xf32>
    %61 = arith.subf %46, %60 : vector<32x256xf32>
    %cst_35 = arith.constant 9.99999974E-6 : f32
    %62 = vector.broadcast %cst_35 : f32 to vector<32x1xf32>
    %63 = arith.addf %59, %62 : vector<32x1xf32>
    %64 = math.rsqrt %63 : vector<32x1xf32>
    %65 = vector.broadcast %64 : vector<32x1xf32> to vector<32x256xf32>
    %66 = arith.mulf %61, %65 : vector<32x256xf32>
    %67 = vector.broadcast %47 : vector<1x256xf32> to vector<32x256xf32>
    %68 = arith.mulf %66, %67 : vector<32x256xf32>
    %69 = vector.broadcast %48 : vector<1x256xf32> to vector<32x256xf32>
    %70 = arith.addf %68, %69 : vector<32x256xf32>
    %c0_36 = arith.constant 0 : index
    %c0_37 = arith.constant 0 : index
    %71 = vector.load %arg13[%c0_36, %c0_37] : memref<32x256xf32, #tpu.memory_space<vmem>>, vector<32x256xf32>
    tpu.vector_store %arg13[%c0_36, %c0_37], %70 {strides = array<i32>} : memref<32x256xf32, #tpu.memory_space<vmem>>, vector<32x256xf32>,
    return
  }
  func.func @transform_0(%arg0: i32) -> (i32, i32) {
    %c0_i32 = arith.constant 0 : i32
    %c0_i32_0 = arith.constant 0 : i32
    return %arg0, %c0_i32 : i32, i32
  }
  func.func @transform_1(%arg0: i32) -> (i32, i32) {
    %c0_i32 = arith.constant 0 : i32
    %c0_i32_0 = arith.constant 0 : i32
    return %arg0, %c0_i32 : i32, i32
  }
  func.func @transform_2(%arg0: i32) -> (i32, i32) {
    %c0_i32 = arith.constant 0 : i32
    %c0_i32_0 = arith.constant 0 : i32
    %c0_i32_1 = arith.constant 0 : i32
    return %c0_i32, %c0_i32_0 : i32, i32
  }
  func.func @transform_3(%arg0: i32) -> (i32, i32) {
    %c0_i32 = arith.constant 0 : i32
    %c0_i32_0 = arith.constant 0 : i32
    %c0_i32_1 = arith.constant 0 : i32
    return %c0_i32, %c0_i32_0 : i32, i32
  }
  func.func @transform_4(%arg0: i32) -> (i32, i32) {
    %c0_i32 = arith.constant 0 : i32
    %c0_i32_0 = arith.constant 0 : i32
    %c0_i32_1 = arith.constant 0 : i32
    return %c0_i32, %c0_i32_0 : i32, i32
  }
  func.func @transform_5(%arg0: i32) -> (i32, i32) {
    %c0_i32 = arith.constant 0 : i32
    %c0_i32_0 = arith.constant 0 : i32
    %c0_i32_1 = arith.constant 0 : i32
    return %c0_i32, %c0_i32_0 : i32, i32
  }
  func.func @transform_6(%arg0: i32) -> (i32, i32) {
    %c0_i32 = arith.constant 0 : i32
    %c0_i32_0 = arith.constant 0 : i32
    %c0_i32_1 = arith.constant 0 : i32
    return %c0_i32, %c0_i32_0 : i32, i32
  }
  func.func @transform_7(%arg0: i32) -> (i32, i32) {
    %c0_i32 = arith.constant 0 : i32
    %c0_i32_0 = arith.constant 0 : i32
    %c0_i32_1 = arith.constant 0 : i32
    return %c0_i32, %c0_i32_0 : i32, i32
  }
  func.func @transform_8(%arg0: i32) -> (i32, i32) {
    %c0_i32 = arith.constant 0 : i32
    %c0_i32_0 = arith.constant 0 : i32
    %c0_i32_1 = arith.constant 0 : i32
    return %c0_i32, %c0_i32_0 : i32, i32
  }
  func.func @transform_9(%arg0: i32) -> (i32, i32) {
    %c0_i32 = arith.constant 0 : i32
    %c0_i32_0 = arith.constant 0 : i32
    %c0_i32_1 = arith.constant 0 : i32
    return %c0_i32, %c0_i32_0 : i32, i32
  }
  func.func @transform_10(%arg0: i32) -> (i32, i32) {
    %c0_i32 = arith.constant 0 : i32
    %c0_i32_0 = arith.constant 0 : i32
    %c0_i32_1 = arith.constant 0 : i32
    return %c0_i32, %c0_i32_0 : i32, i32
  }
  func.func @transform_11(%arg0: i32) -> (i32, i32) {
    %c0_i32 = arith.constant 0 : i32
    %c0_i32_0 = arith.constant 0 : i32
    %c0_i32_1 = arith.constant 0 : i32
    return %c0_i32, %c0_i32_0 : i32, i32
  }
  func.func @transform_12(%arg0: i32) -> (i32, i32) {
    %c0_i32 = arith.constant 0 : i32
    %c0_i32_0 = arith.constant 0 : i32
    return %arg0, %c0_i32 : i32, i32
  }
}

module attributes {stable_mosaic.version = 11 : i64} {
  func.func @attention_kernel(%arg0: i32, %arg1: i32, %arg2: memref<1x16x128xbf16, #tpu.memory_space<vmem>>, %arg3: memref<1x16x128xbf16, #tpu.memory_space<vmem>>, %arg4: memref<1x16x128xbf16, #tpu.memory_space<vmem>>, %arg5: memref<1x16x128xbf16, #tpu.memory_space<vmem>>) attributes {dimension_semantics = [#tpu.dimension_semantics<parallel>, #tpu.dimension_semantics<parallel>], iteration_bounds = array<i64: 2, 2>, scalar_prefetch = 0 : i64, scratch_operands = 0 : i64, tpu.core_type = #tpu.core_type<tc>, window_params = [{transform_indices = @transform_0, window_bounds = array<i64: 1, 16, 128>}, {transform_indices = @transform_1, window_bounds = array<i64: 1, 16, 128>}, {transform_indices = @transform_2, window_bounds = array<i64: 1, 16, 128>}, {transform_indices = @transform_3, window_bounds = array<i64: 1, 16, 128>}]} {
    %c0 = arith.constant 0 : index
    %c0_0 = arith.constant 0 : index
    %c0_1 = arith.constant 0 : index
    %0 = vector.load %arg2[%c0, %c0_0, %c0_1] : memref<1x16x128xbf16, #tpu.memory_space<vmem>>, vector<1x16x128xbf16>
    %1 = vector.shape_cast %0 : vector<1x16x128xbf16> to vector<16x128xbf16>
    %c0_2 = arith.constant 0 : index
    %c0_3 = arith.constant 0 : index
    %c0_4 = arith.constant 0 : index
    %2 = vector.load %arg3[%c0_2, %c0_3, %c0_4] : memref<1x16x128xbf16, #tpu.memory_space<vmem>>, vector<1x16x128xbf16>
    %3 = vector.shape_cast %2 : vector<1x16x128xbf16> to vector<16x128xbf16>
    %c0_5 = arith.constant 0 : index
    %c0_6 = arith.constant 0 : index
    %c0_7 = arith.constant 0 : index
    %4 = vector.load %arg4[%c0_5, %c0_6, %c0_7] : memref<1x16x128xbf16, #tpu.memory_space<vmem>>, vector<1x16x128xbf16>
    %5 = vector.shape_cast %4 : vector<1x16x128xbf16> to vector<16x128xbf16>
    %cst = arith.constant dense<0.000000e+00> : vector<16x16xf32>
    %6 = tpu.matmul %1, %3, %cst {dimension_numbers = #tpu.dot_dimension_numbers<[1], [1], [0], [0], [0, 0, 1, 0], [], []>} : vector<16x128xbf16>, vector<16x128xbf16>, vector<16x16xf32> -> vector<16x16xf32>
    %cst_8 = arith.constant dense<0xFF800000> : vector<16xf32>
    %7 = vector.multi_reduction <maximumf>, %6, %cst_8 [1] : vector<16x16xf32> to vector<16xf32>
    %8 = vector.shape_cast %7 : vector<16xf32> to vector<16x1xf32>
    %9 = vector.broadcast %8 : vector<16x1xf32> to vector<16x16xf32>
    %10 = arith.subf %6, %9 : vector<16x16xf32>
    %11 = math.exp %10 : vector<16x16xf32>
    %cst_9 = arith.constant dense<0.000000e+00> : vector<16xf32>
    %12 = vector.multi_reduction <add>, %11, %cst_9 [1] : vector<16x16xf32> to vector<16xf32>
    %13 = vector.shape_cast %12 : vector<16xf32> to vector<16x1xf32>
    %14 = tpu.reciprocal %13 {approx = true} : vector<16x1xf32> -> vector<16x1xf32>
    %15 = vector.broadcast %14 : vector<16x1xf32> to vector<16x16xf32>
    %16 = arith.mulf %11, %15 : vector<16x16xf32>
    %17 = arith.truncf %16 : vector<16x16xf32> to vector<16x16xbf16>
    %cst_10 = arith.constant dense<0.000000e+00> : vector<16x128xf32>
    %18 = tpu.matmul %17, %5, %cst_10 {dimension_numbers = #tpu.dot_dimension_numbers<[1], [0], [0], [1], [0, 0, 1, 1], [], []>} : vector<16x16xbf16>, vector<16x128xbf16>, vector<16x128xf32> -> vector<16x128xf32>
    %19 = arith.truncf %18 : vector<16x128xf32> to vector<16x128xbf16>
    %c0_11 = arith.constant 0 : index
    %c0_12 = arith.constant 0 : index
    %c0_13 = arith.constant 0 : index
    %20 = vector.load %arg5[%c0_11, %c0_12, %c0_13] : memref<1x16x128xbf16, #tpu.memory_space<vmem>>, vector<1x16x128xbf16>
    %21 = vector.shape_cast %20 : vector<1x16x128xbf16> to vector<16x128xbf16>
    %22 = vector.shape_cast %19 : vector<16x128xbf16> to vector<1x16x128xbf16>
    tpu.vector_store %arg5[%c0_11, %c0_12, %c0_13], %22 {strides = array<i32>} : memref<1x16x128xbf16, #tpu.memory_space<vmem>>, vector<1x16x128xbf16>,
    return
  }
  func.func @transform_0(%arg0: i32, %arg1: i32) -> (i32, i32, i32) {
    %c0_i32 = arith.constant 0 : i32
    %c0_i32_0 = arith.constant 0 : i32
    return %arg0, %c0_i32, %arg1 : i32, i32, i32
  }
  func.func @transform_1(%arg0: i32, %arg1: i32) -> (i32, i32, i32) {
    %c0_i32 = arith.constant 0 : i32
    %c0_i32_0 = arith.constant 0 : i32
    return %arg0, %c0_i32, %arg1 : i32, i32, i32
  }
  func.func @transform_2(%arg0: i32, %arg1: i32) -> (i32, i32, i32) {
    %c0_i32 = arith.constant 0 : i32
    %c0_i32_0 = arith.constant 0 : i32
    return %arg0, %c0_i32, %arg1 : i32, i32, i32
  }
  func.func @transform_3(%arg0: i32, %arg1: i32) -> (i32, i32, i32) {
    %c0_i32 = arith.constant 0 : i32
    %c0_i32_0 = arith.constant 0 : i32
    return %arg0, %c0_i32, %arg1 : i32, i32, i32
  }
}

module attributes {stable_mosaic.version = 11 : i64} {
  func.func @qkv_proj_kernel(%arg0: i32, %arg1: memref<32x256xf32, #tpu.memory_space<vmem>>, %arg2: memref<32x256xf32, #tpu.memory_space<vmem>>, %arg3: memref<256x256xbf16, #tpu.memory_space<vmem>>, %arg4: memref<1x256xf32, #tpu.memory_space<vmem>>, %arg5: memref<256x256xbf16, #tpu.memory_space<vmem>>, %arg6: memref<1x256xf32, #tpu.memory_space<vmem>>, %arg7: memref<256x256xbf16, #tpu.memory_space<vmem>>, %arg8: memref<1x256xf32, #tpu.memory_space<vmem>>, %arg9: memref<32x256xbf16, #tpu.memory_space<vmem>>, %arg10: memref<32x256xbf16, #tpu.memory_space<vmem>>, %arg11: memref<32x256xbf16, #tpu.memory_space<vmem>>) attributes {dimension_semantics = [#tpu.dimension_semantics<parallel>], iteration_bounds = array<i64: 1>, scalar_prefetch = 0 : i64, scratch_operands = 0 : i64, tpu.core_type = #tpu.core_type<tc>, window_params = [{transform_indices = @transform_0, window_bounds = array<i64: 32, 256>}, {transform_indices = @transform_1, window_bounds = array<i64: 32, 256>}, {pipeline_mode = #tpu.pipeline_mode<synchronous>, transform_indices = @transform_2, window_bounds = array<i64: 256, 256>}, {pipeline_mode = #tpu.pipeline_mode<synchronous>, transform_indices = @transform_3, window_bounds = array<i64: 1, 256>}, {pipeline_mode = #tpu.pipeline_mode<synchronous>, transform_indices = @transform_4, window_bounds = array<i64: 256, 256>}, {pipeline_mode = #tpu.pipeline_mode<synchronous>, transform_indices = @transform_5, window_bounds = array<i64: 1, 256>}, {pipeline_mode = #tpu.pipeline_mode<synchronous>, transform_indices = @transform_6, window_bounds = array<i64: 256, 256>}, {pipeline_mode = #tpu.pipeline_mode<synchronous>, transform_indices = @transform_7, window_bounds = array<i64: 1, 256>}, {transform_indices = @transform_8, window_bounds = array<i64: 32, 256>}, {transform_indices = @transform_9, window_bounds = array<i64: 32, 256>}, {transform_indices = @transform_10, window_bounds = array<i64: 32, 256>}]} {
    %c0 = arith.constant 0 : index
    %c0_0 = arith.constant 0 : index
    %0 = vector.load %arg1[%c0, %c0_0] : memref<32x256xf32, #tpu.memory_space<vmem>>, vector<32x256xf32>
    %c0_1 = arith.constant 0 : index
    %c0_2 = arith.constant 0 : index
    %1 = vector.load %arg2[%c0_1, %c0_2] : memref<32x256xf32, #tpu.memory_space<vmem>>, vector<32x256xf32>
    %2 = arith.addf %0, %1 : vector<32x256xf32>
    %3 = arith.truncf %2 : vector<32x256xf32> to vector<32x256xbf16>
    %4 = arith.truncf %0 : vector<32x256xf32> to vector<32x256xbf16>
    %c0_3 = arith.constant 0 : index
    %c0_4 = arith.constant 0 : index
    %5 = vector.load %arg3[%c0_3, %c0_4] : memref<256x256xbf16, #tpu.memory_space<vmem>>, vector<256x256xbf16>
    %cst = arith.constant dense<0.000000e+00> : vector<32x256xf32>
    %6 = tpu.matmul %3, %5, %cst {dimension_numbers = #tpu.dot_dimension_numbers<[1], [0], [0], [1], [0, 0, 1, 1], [], []>} : vector<32x256xbf16>, vector<256x256xbf16>, vector<32x256xf32> -> vector<32x256xf32>
    %c0_5 = arith.constant 0 : index
    %c0_6 = arith.constant 0 : index
    %7 = vector.load %arg4[%c0_5, %c0_6] : memref<1x256xf32, #tpu.memory_space<vmem>>, vector<1x256xf32>
    %8 = vector.broadcast %7 : vector<1x256xf32> to vector<32x256xf32>
    %9 = arith.addf %6, %8 : vector<32x256xf32>
    %c0_7 = arith.constant 0 : index
    %c0_8 = arith.constant 0 : index
    %10 = vector.load %arg5[%c0_7, %c0_8] : memref<256x256xbf16, #tpu.memory_space<vmem>>, vector<256x256xbf16>
    %cst_9 = arith.constant dense<0.000000e+00> : vector<32x256xf32>
    %11 = tpu.matmul %3, %10, %cst_9 {dimension_numbers = #tpu.dot_dimension_numbers<[1], [0], [0], [1], [0, 0, 1, 1], [], []>} : vector<32x256xbf16>, vector<256x256xbf16>, vector<32x256xf32> -> vector<32x256xf32>
    %c0_10 = arith.constant 0 : index
    %c0_11 = arith.constant 0 : index
    %12 = vector.load %arg6[%c0_10, %c0_11] : memref<1x256xf32, #tpu.memory_space<vmem>>, vector<1x256xf32>
    %13 = vector.broadcast %12 : vector<1x256xf32> to vector<32x256xf32>
    %14 = arith.addf %11, %13 : vector<32x256xf32>
    %c0_12 = arith.constant 0 : index
    %c0_13 = arith.constant 0 : index
    %15 = vector.load %arg7[%c0_12, %c0_13] : memref<256x256xbf16, #tpu.memory_space<vmem>>, vector<256x256xbf16>
    %cst_14 = arith.constant dense<0.000000e+00> : vector<32x256xf32>
    %16 = tpu.matmul %4, %15, %cst_14 {dimension_numbers = #tpu.dot_dimension_numbers<[1], [0], [0], [1], [0, 0, 1, 1], [], []>} : vector<32x256xbf16>, vector<256x256xbf16>, vector<32x256xf32> -> vector<32x256xf32>
    %c0_15 = arith.constant 0 : index
    %c0_16 = arith.constant 0 : index
    %17 = vector.load %arg8[%c0_15, %c0_16] : memref<1x256xf32, #tpu.memory_space<vmem>>, vector<1x256xf32>
    %18 = vector.broadcast %17 : vector<1x256xf32> to vector<32x256xf32>
    %19 = arith.addf %16, %18 : vector<32x256xf32>
    %20 = arith.truncf %9 : vector<32x256xf32> to vector<32x256xbf16>
    %c0_17 = arith.constant 0 : index
    %c0_18 = arith.constant 0 : index
    %21 = vector.load %arg9[%c0_17, %c0_18] : memref<32x256xbf16, #tpu.memory_space<vmem>>, vector<32x256xbf16>
    tpu.vector_store %arg9[%c0_17, %c0_18], %20 {strides = array<i32>} : memref<32x256xbf16, #tpu.memory_space<vmem>>, vector<32x256xbf16>,
    %22 = arith.truncf %14 : vector<32x256xf32> to vector<32x256xbf16>
    %c0_19 = arith.constant 0 : index
    %c0_20 = arith.constant 0 : index
    %23 = vector.load %arg10[%c0_19, %c0_20] : memref<32x256xbf16, #tpu.memory_space<vmem>>, vector<32x256xbf16>
    tpu.vector_store %arg10[%c0_19, %c0_20], %22 {strides = array<i32>} : memref<32x256xbf16, #tpu.memory_space<vmem>>, vector<32x256xbf16>,
    %24 = arith.truncf %19 : vector<32x256xf32> to vector<32x256xbf16>
    %c0_21 = arith.constant 0 : index
    %c0_22 = arith.constant 0 : index
    %25 = vector.load %arg11[%c0_21, %c0_22] : memref<32x256xbf16, #tpu.memory_space<vmem>>, vector<32x256xbf16>
    tpu.vector_store %arg11[%c0_21, %c0_22], %24 {strides = array<i32>} : memref<32x256xbf16, #tpu.memory_space<vmem>>, vector<32x256xbf16>,
    return
  }
  func.func @transform_0(%arg0: i32) -> (i32, i32) {
    %c0_i32 = arith.constant 0 : i32
    %c0_i32_0 = arith.constant 0 : i32
    return %arg0, %c0_i32 : i32, i32
  }
  func.func @transform_1(%arg0: i32) -> (i32, i32) {
    %c0_i32 = arith.constant 0 : i32
    %c0_i32_0 = arith.constant 0 : i32
    return %arg0, %c0_i32 : i32, i32
  }
  func.func @transform_2(%arg0: i32) -> (i32, i32) {
    %c0_i32 = arith.constant 0 : i32
    %c0_i32_0 = arith.constant 0 : i32
    %c0_i32_1 = arith.constant 0 : i32
    return %c0_i32, %c0_i32_0 : i32, i32
  }
  func.func @transform_3(%arg0: i32) -> (i32, i32) {
    %c0_i32 = arith.constant 0 : i32
    %c0_i32_0 = arith.constant 0 : i32
    %c0_i32_1 = arith.constant 0 : i32
    return %c0_i32, %c0_i32_0 : i32, i32
  }
  func.func @transform_4(%arg0: i32) -> (i32, i32) {
    %c0_i32 = arith.constant 0 : i32
    %c0_i32_0 = arith.constant 0 : i32
    %c0_i32_1 = arith.constant 0 : i32
    return %c0_i32, %c0_i32_0 : i32, i32
  }
  func.func @transform_5(%arg0: i32) -> (i32, i32) {
    %c0_i32 = arith.constant 0 : i32
    %c0_i32_0 = arith.constant 0 : i32
    %c0_i32_1 = arith.constant 0 : i32
    return %c0_i32, %c0_i32_0 : i32, i32
  }
  func.func @transform_6(%arg0: i32) -> (i32, i32) {
    %c0_i32 = arith.constant 0 : i32
    %c0_i32_0 = arith.constant 0 : i32
    %c0_i32_1 = arith.constant 0 : i32
    return %c0_i32, %c0_i32_0 : i32, i32
  }
  func.func @transform_7(%arg0: i32) -> (i32, i32) {
    %c0_i32 = arith.constant 0 : i32
    %c0_i32_0 = arith.constant 0 : i32
    %c0_i32_1 = arith.constant 0 : i32
    return %c0_i32, %c0_i32_0 : i32, i32
  }
  func.func @transform_8(%arg0: i32) -> (i32, i32) {
    %c0_i32 = arith.constant 0 : i32
    %c0_i32_0 = arith.constant 0 : i32
    return %arg0, %c0_i32 : i32, i32
  }
  func.func @transform_9(%arg0: i32) -> (i32, i32) {
    %c0_i32 = arith.constant 0 : i32
    %c0_i32_0 = arith.constant 0 : i32
    return %arg0, %c0_i32 : i32, i32
  }
  func.func @transform_10(%arg0: i32) -> (i32, i32) {
    %c0_i32 = arith.constant 0 : i32
    %c0_i32_0 = arith.constant 0 : i32
    return %arg0, %c0_i32 : i32, i32
  }
}

module attributes {stable_mosaic.version = 11 : i64} {
  func.func @post_attn_kernel(%arg0: i32, %arg1: memref<32x256xf32, #tpu.memory_space<vmem>>, %arg2: memref<32x256xbf16, #tpu.memory_space<vmem>>, %arg3: memref<256x256xbf16, #tpu.memory_space<vmem>>, %arg4: memref<1x256xf32, #tpu.memory_space<vmem>>, %arg5: memref<256x512xbf16, #tpu.memory_space<vmem>>, %arg6: memref<1x512xf32, #tpu.memory_space<vmem>>, %arg7: memref<512x256xbf16, #tpu.memory_space<vmem>>, %arg8: memref<1x256xf32, #tpu.memory_space<vmem>>, %arg9: memref<1x256xf32, #tpu.memory_space<vmem>>, %arg10: memref<1x256xf32, #tpu.memory_space<vmem>>, %arg11: memref<1x256xf32, #tpu.memory_space<vmem>>, %arg12: memref<1x256xf32, #tpu.memory_space<vmem>>, %arg13: memref<32x256xf32, #tpu.memory_space<vmem>>) attributes {dimension_semantics = [#tpu.dimension_semantics<parallel>], iteration_bounds = array<i64: 1>, scalar_prefetch = 0 : i64, scratch_operands = 0 : i64, tpu.core_type = #tpu.core_type<tc>, window_params = [{transform_indices = @transform_0, window_bounds = array<i64: 32, 256>}, {transform_indices = @transform_1, window_bounds = array<i64: 32, 256>}, {pipeline_mode = #tpu.pipeline_mode<synchronous>, transform_indices = @transform_2, window_bounds = array<i64: 256, 256>}, {pipeline_mode = #tpu.pipeline_mode<synchronous>, transform_indices = @transform_3, window_bounds = array<i64: 1, 256>}, {pipeline_mode = #tpu.pipeline_mode<synchronous>, transform_indices = @transform_4, window_bounds = array<i64: 256, 512>}, {pipeline_mode = #tpu.pipeline_mode<synchronous>, transform_indices = @transform_5, window_bounds = array<i64: 1, 512>}, {pipeline_mode = #tpu.pipeline_mode<synchronous>, transform_indices = @transform_6, window_bounds = array<i64: 512, 256>}, {pipeline_mode = #tpu.pipeline_mode<synchronous>, transform_indices = @transform_7, window_bounds = array<i64: 1, 256>}, {pipeline_mode = #tpu.pipeline_mode<synchronous>, transform_indices = @transform_8, window_bounds = array<i64: 1, 256>}, {pipeline_mode = #tpu.pipeline_mode<synchronous>, transform_indices = @transform_9, window_bounds = array<i64: 1, 256>}, {pipeline_mode = #tpu.pipeline_mode<synchronous>, transform_indices = @transform_10, window_bounds = array<i64: 1, 256>}, {pipeline_mode = #tpu.pipeline_mode<synchronous>, transform_indices = @transform_11, window_bounds = array<i64: 1, 256>}, {transform_indices = @transform_12, window_bounds = array<i64: 32, 256>}]} {
    %c0 = arith.constant 0 : index
    %c0_0 = arith.constant 0 : index
    %0 = vector.load %arg1[%c0, %c0_0] : memref<32x256xf32, #tpu.memory_space<vmem>>, vector<32x256xf32>
    %c0_1 = arith.constant 0 : index
    %c0_2 = arith.constant 0 : index
    %1 = vector.load %arg2[%c0_1, %c0_2] : memref<32x256xbf16, #tpu.memory_space<vmem>>, vector<32x256xbf16>
    %c0_3 = arith.constant 0 : index
    %c0_4 = arith.constant 0 : index
    %2 = vector.load %arg3[%c0_3, %c0_4] : memref<256x256xbf16, #tpu.memory_space<vmem>>, vector<256x256xbf16>
    %cst = arith.constant dense<0.000000e+00> : vector<32x256xf32>
    %3 = tpu.matmul %1, %2, %cst {dimension_numbers = #tpu.dot_dimension_numbers<[1], [0], [0], [1], [0, 0, 1, 1], [], []>} : vector<32x256xbf16>, vector<256x256xbf16>, vector<32x256xf32> -> vector<32x256xf32>
    %c0_5 = arith.constant 0 : index
    %c0_6 = arith.constant 0 : index
    %4 = vector.load %arg4[%c0_5, %c0_6] : memref<1x256xf32, #tpu.memory_space<vmem>>, vector<1x256xf32>
    %5 = vector.broadcast %4 : vector<1x256xf32> to vector<32x256xf32>
    %6 = arith.addf %3, %5 : vector<32x256xf32>
    %7 = arith.addf %0, %6 : vector<32x256xf32>
    %c0_7 = arith.constant 0 : index
    %c0_8 = arith.constant 0 : index
    %8 = vector.load %arg9[%c0_7, %c0_8] : memref<1x256xf32, #tpu.memory_space<vmem>>, vector<1x256xf32>
    %c0_9 = arith.constant 0 : index
    %c0_10 = arith.constant 0 : index
    %9 = vector.load %arg10[%c0_9, %c0_10] : memref<1x256xf32, #tpu.memory_space<vmem>>, vector<1x256xf32>
    %cst_11 = arith.constant dense<0.000000e+00> : vector<32xf32>
    %10 = vector.multi_reduction <add>, %7, %cst_11 [1] : vector<32x256xf32> to vector<32xf32>
    %11 = vector.shape_cast %10 : vector<32xf32> to vector<32x1xf32>
    %cst_12 = arith.constant 2.560000e+02 : f32
    %12 = vector.broadcast %cst_12 : f32 to vector<32x1xf32>
    %13 = arith.divf %11, %12 : vector<32x1xf32>
    %14 = vector.broadcast %13 : vector<32x1xf32> to vector<32x256xf32>
    %15 = arith.subf %7, %14 : vector<32x256xf32>
    %16 = arith.mulf %15, %15 : vector<32x256xf32>
    %cst_13 = arith.constant dense<0.000000e+00> : vector<32xf32>
    %17 = vector.multi_reduction <add>, %16, %cst_13 [1] : vector<32x256xf32> to vector<32xf32>
    %18 = vector.shape_cast %17 : vector<32xf32> to vector<32x1xf32>
    %cst_14 = arith.constant 2.560000e+02 : f32
    %19 = vector.broadcast %cst_14 : f32 to vector<32x1xf32>
    %20 = arith.divf %18, %19 : vector<32x1xf32>
    %21 = vector.broadcast %13 : vector<32x1xf32> to vector<32x256xf32>
    %22 = arith.subf %7, %21 : vector<32x256xf32>
    %cst_15 = arith.constant 9.99999974E-6 : f32
    %23 = vector.broadcast %cst_15 : f32 to vector<32x1xf32>
    %24 = arith.addf %20, %23 : vector<32x1xf32>
    %25 = math.rsqrt %24 : vector<32x1xf32>
    %26 = vector.broadcast %25 : vector<32x1xf32> to vector<32x256xf32>
    %27 = arith.mulf %22, %26 : vector<32x256xf32>
    %28 = vector.broadcast %8 : vector<1x256xf32> to vector<32x256xf32>
    %29 = arith.mulf %27, %28 : vector<32x256xf32>
    %30 = vector.broadcast %9 : vector<1x256xf32> to vector<32x256xf32>
    %31 = arith.addf %29, %30 : vector<32x256xf32>
    %32 = arith.truncf %31 : vector<32x256xf32> to vector<32x256xbf16>
    %c0_16 = arith.constant 0 : index
    %c0_17 = arith.constant 0 : index
    %33 = vector.load %arg5[%c0_16, %c0_17] : memref<256x512xbf16, #tpu.memory_space<vmem>>, vector<256x512xbf16>
    %cst_18 = arith.constant dense<0.000000e+00> : vector<32x512xf32>
    %34 = tpu.matmul %32, %33, %cst_18 {dimension_numbers = #tpu.dot_dimension_numbers<[1], [0], [0], [1], [0, 0, 1, 1], [], []>} : vector<32x256xbf16>, vector<256x512xbf16>, vector<32x512xf32> -> vector<32x512xf32>
    %c0_19 = arith.constant 0 : index
    %c0_20 = arith.constant 0 : index
    %35 = vector.load %arg6[%c0_19, %c0_20] : memref<1x512xf32, #tpu.memory_space<vmem>>, vector<1x512xf32>
    %36 = vector.broadcast %35 : vector<1x512xf32> to vector<32x512xf32>
    %37 = arith.addf %34, %36 : vector<32x512xf32>
    %cst_21 = arith.constant 0.000000e+00 : f32
    %38 = vector.broadcast %cst_21 : f32 to vector<32x512xf32>
    %39 = arith.maximumf %37, %38 : vector<32x512xf32>
    %40 = arith.truncf %39 : vector<32x512xf32> to vector<32x512xbf16>
    %c0_22 = arith.constant 0 : index
    %c0_23 = arith.constant 0 : index
    %41 = vector.load %arg7[%c0_22, %c0_23] : memref<512x256xbf16, #tpu.memory_space<vmem>>, vector<512x256xbf16>
    %cst_24 = arith.constant dense<0.000000e+00> : vector<32x256xf32>
    %42 = tpu.matmul %40, %41, %cst_24 {dimension_numbers = #tpu.dot_dimension_numbers<[1], [0], [0], [1], [0, 0, 1, 1], [], []>} : vector<32x512xbf16>, vector<512x256xbf16>, vector<32x256xf32> -> vector<32x256xf32>
    %c0_25 = arith.constant 0 : index
    %c0_26 = arith.constant 0 : index
    %43 = vector.load %arg8[%c0_25, %c0_26] : memref<1x256xf32, #tpu.memory_space<vmem>>, vector<1x256xf32>
    %44 = vector.broadcast %43 : vector<1x256xf32> to vector<32x256xf32>
    %45 = arith.addf %42, %44 : vector<32x256xf32>
    %46 = arith.addf %31, %45 : vector<32x256xf32>
    %c0_27 = arith.constant 0 : index
    %c0_28 = arith.constant 0 : index
    %47 = vector.load %arg11[%c0_27, %c0_28] : memref<1x256xf32, #tpu.memory_space<vmem>>, vector<1x256xf32>
    %c0_29 = arith.constant 0 : index
    %c0_30 = arith.constant 0 : index
    %48 = vector.load %arg12[%c0_29, %c0_30] : memref<1x256xf32, #tpu.memory_space<vmem>>, vector<1x256xf32>
    %cst_31 = arith.constant dense<0.000000e+00> : vector<32xf32>
    %49 = vector.multi_reduction <add>, %46, %cst_31 [1] : vector<32x256xf32> to vector<32xf32>
    %50 = vector.shape_cast %49 : vector<32xf32> to vector<32x1xf32>
    %cst_32 = arith.constant 2.560000e+02 : f32
    %51 = vector.broadcast %cst_32 : f32 to vector<32x1xf32>
    %52 = arith.divf %50, %51 : vector<32x1xf32>
    %53 = vector.broadcast %52 : vector<32x1xf32> to vector<32x256xf32>
    %54 = arith.subf %46, %53 : vector<32x256xf32>
    %55 = arith.mulf %54, %54 : vector<32x256xf32>
    %cst_33 = arith.constant dense<0.000000e+00> : vector<32xf32>
    %56 = vector.multi_reduction <add>, %55, %cst_33 [1] : vector<32x256xf32> to vector<32xf32>
    %57 = vector.shape_cast %56 : vector<32xf32> to vector<32x1xf32>
    %cst_34 = arith.constant 2.560000e+02 : f32
    %58 = vector.broadcast %cst_34 : f32 to vector<32x1xf32>
    %59 = arith.divf %57, %58 : vector<32x1xf32>
    %60 = vector.broadcast %52 : vector<32x1xf32> to vector<32x256xf32>
    %61 = arith.subf %46, %60 : vector<32x256xf32>
    %cst_35 = arith.constant 9.99999974E-6 : f32
    %62 = vector.broadcast %cst_35 : f32 to vector<32x1xf32>
    %63 = arith.addf %59, %62 : vector<32x1xf32>
    %64 = math.rsqrt %63 : vector<32x1xf32>
    %65 = vector.broadcast %64 : vector<32x1xf32> to vector<32x256xf32>
    %66 = arith.mulf %61, %65 : vector<32x256xf32>
    %67 = vector.broadcast %47 : vector<1x256xf32> to vector<32x256xf32>
    %68 = arith.mulf %66, %67 : vector<32x256xf32>
    %69 = vector.broadcast %48 : vector<1x256xf32> to vector<32x256xf32>
    %70 = arith.addf %68, %69 : vector<32x256xf32>
    %c0_36 = arith.constant 0 : index
    %c0_37 = arith.constant 0 : index
    %71 = vector.load %arg13[%c0_36, %c0_37] : memref<32x256xf32, #tpu.memory_space<vmem>>, vector<32x256xf32>
    tpu.vector_store %arg13[%c0_36, %c0_37], %70 {strides = array<i32>} : memref<32x256xf32, #tpu.memory_space<vmem>>, vector<32x256xf32>,
    return
  }
  func.func @transform_0(%arg0: i32) -> (i32, i32) {
    %c0_i32 = arith.constant 0 : i32
    %c0_i32_0 = arith.constant 0 : i32
    return %arg0, %c0_i32 : i32, i32
  }
  func.func @transform_1(%arg0: i32) -> (i32, i32) {
    %c0_i32 = arith.constant 0 : i32
    %c0_i32_0 = arith.constant 0 : i32
    return %arg0, %c0_i32 : i32, i32
  }
  func.func @transform_2(%arg0: i32) -> (i32, i32) {
    %c0_i32 = arith.constant 0 : i32
    %c0_i32_0 = arith.constant 0 : i32
    %c0_i32_1 = arith.constant 0 : i32
    return %c0_i32, %c0_i32_0 : i32, i32
  }
  func.func @transform_3(%arg0: i32) -> (i32, i32) {
    %c0_i32 = arith.constant 0 : i32
    %c0_i32_0 = arith.constant 0 : i32
    %c0_i32_1 = arith.constant 0 : i32
    return %c0_i32, %c0_i32_0 : i32, i32
  }
  func.func @transform_4(%arg0: i32) -> (i32, i32) {
    %c0_i32 = arith.constant 0 : i32
    %c0_i32_0 = arith.constant 0 : i32
    %c0_i32_1 = arith.constant 0 : i32
    return %c0_i32, %c0_i32_0 : i32, i32
  }
  func.func @transform_5(%arg0: i32) -> (i32, i32) {
    %c0_i32 = arith.constant 0 : i32
    %c0_i32_0 = arith.constant 0 : i32
    %c0_i32_1 = arith.constant 0 : i32
    return %c0_i32, %c0_i32_0 : i32, i32
  }
  func.func @transform_6(%arg0: i32) -> (i32, i32) {
    %c0_i32 = arith.constant 0 : i32
    %c0_i32_0 = arith.constant 0 : i32
    %c0_i32_1 = arith.constant 0 : i32
    return %c0_i32, %c0_i32_0 : i32, i32
  }
  func.func @transform_7(%arg0: i32) -> (i32, i32) {
    %c0_i32 = arith.constant 0 : i32
    %c0_i32_0 = arith.constant 0 : i32
    %c0_i32_1 = arith.constant 0 : i32
    return %c0_i32, %c0_i32_0 : i32, i32
  }
  func.func @transform_8(%arg0: i32) -> (i32, i32) {
    %c0_i32 = arith.constant 0 : i32
    %c0_i32_0 = arith.constant 0 : i32
    %c0_i32_1 = arith.constant 0 : i32
    return %c0_i32, %c0_i32_0 : i32, i32
  }
  func.func @transform_9(%arg0: i32) -> (i32, i32) {
    %c0_i32 = arith.constant 0 : i32
    %c0_i32_0 = arith.constant 0 : i32
    %c0_i32_1 = arith.constant 0 : i32
    return %c0_i32, %c0_i32_0 : i32, i32
  }
  func.func @transform_10(%arg0: i32) -> (i32, i32) {
    %c0_i32 = arith.constant 0 : i32
    %c0_i32_0 = arith.constant 0 : i32
    %c0_i32_1 = arith.constant 0 : i32
    return %c0_i32, %c0_i32_0 : i32, i32
  }
  func.func @transform_11(%arg0: i32) -> (i32, i32) {
    %c0_i32 = arith.constant 0 : i32
    %c0_i32_0 = arith.constant 0 : i32
    %c0_i32_1 = arith.constant 0 : i32
    return %c0_i32, %c0_i32_0 : i32, i32
  }
  func.func @transform_12(%arg0: i32) -> (i32, i32) {
    %c0_i32 = arith.constant 0 : i32
    %c0_i32_0 = arith.constant 0 : i32
    return %arg0, %c0_i32 : i32, i32
  }
}

</mosaic_0001>

<llo_original>
// kernel: transformer_forward.7
$region0: #{transformer_forward.7}
  #allocation0 [shape = 'u32[]', space=smem, size = 0x4, offset = 0x4, fixed_abs, tag = 'smem constant byte address 0x4 - core index']
  #allocation1 [shape = 'u32[144,128]{1,0:T(1,128)}', space=vmem, size = 0x12000, scoped, tag = 'internal scratch']
  %s0 = inlined_call_operand.vmem [shape: bf16[2,16,256], index: 0, kind: input, shape index: {}]
  %s1 = inlined_call_operand.vmem [shape: bf16[2,16,256], index: 1, kind: input, shape index: {}]
  %s2 = inlined_call_operand.vmem [shape: bf16[2,16,256], index: 2, kind: input, shape index: {}]
  %s3 = inlined_call_operand.vmem [shape: bf16[2,16,256], index: 3, kind: output, shape index: {}]
  %s4 = sld [smem:[#allocation0]]
  $region205: #{transformer_forward.7} parent=0
    _
  %s6 = ssub.s32 1, %s4
  %s7 = scalar_select 0, %s6, %s4
  $region1: #{transformer_forward.7} parent=0
    #allocation2 [shape = 'u8[8192]{0}', space=vmem, size = 0x2000, scoped, tag = 'input window, operand 0']
    #allocation3 [shape = 'u8[8192]{0}', space=vmem, size = 0x2000, scoped, tag = 'input window, operand 1']
    #allocation4 [shape = 'u8[8192]{0}', space=vmem, size = 0x2000, scoped, tag = 'input window, operand 2']
    #allocation5 [shape = 'u8[8192]{0}', space=vmem, size = 0x2000, scoped, tag = 'output window, operand 0']
    loop: start=0, step=1, limit=6
    $region2: #{transformer_forward.7} parent=1 // loop_pre_header
      _
    $region3: #{transformer_forward.7} parent=1 // loop_header
      %s9 = sphi 0, %s13
      %p10 = scmp.ge.s32.totalorder %s9, 6
      %s16 = sphi 0, %s28
      %s17 = sphi 0, %s24
      %s18 = sphi 0, %s16
      %s19 = sphi 0, %s17
      %s20 = sphi 0, %s18
      %s21 = sphi 0, %s19
      %s33 = sphi 0, %s35
      %s36 = sphi 0, %s33
      %s37 = sphi 0, %s36
      %s53 = sphi 0, %s37
      %s61 = sphi 0, %s63
      %s64 = sphi 0, %s61
      %s65 = sphi 0, %s64
      %s81 = sphi 0, %s65
      %s89 = sphi 0, %s91
      %s92 = sphi 0, %s89
      %s93 = sphi 0, %s92
      %s109 = sphi 0, %s93
      %s117 = sphi 0, %s119
      %s120 = sphi 0, %s117
      %s121 = sphi 0, %s120
      %s137 = sphi 0, %s121
    $region4: #{transformer_forward.7} parent=1 // loop_header_branch
      %12 = sbr.rel (%p10) target = $region8
    $region5: #{transformer_forward.7} parent=1 // loop_body
      %s14 = ssub.s32 %s9, 1
      %s15 = ssub.s32 %s9, 2
      %s22 = sadd.s32 1, %s17
      %p23 = scmp.ge.s32.totalorder %s22, 2
      %s24 = scalar_select %p23, 0, %s22
      %s25 = sadd.s32 1, %s16
      %s26 = scalar_select %p23, %s25, %s16
      %p27 = scmp.ge.s32.totalorder %s26, 2
      %s28 = scalar_select %p27, 0, %s26
      %s29 = ssub.s32 %s16, %s28
      %s30 = ssub.s32 %s17, %s24
      %s31 = sor.u32 %s29, %s30
      %p32 = scmp.eq.s32.totalorder %s31, 0
      %s34 = sadd.s32 %s33, 1
      %s35 = scalar_select %p32, %s33, %s34
      %p38 = pneg %p32
      %p39 = scmp.eq.s32.totalorder %s9, 3
      %p40 = por %p38, %p39
      %p41 = scmp.ne.s32.totalorder %s33, %s36
      %p42 = scmp.eq.s32.totalorder %s9, 0
      %p43 = por %p41, %p42
      %p44 = scmp.ne.s32.totalorder %s33, %s36
      %p45 = scmp.eq.s32.totalorder %s14, 3
      %p46 = por %p44, %p45
      %p47 = scmp.ne.s32.totalorder %s36, %s37
      %p48 = scmp.eq.s32.totalorder %s14, 0
      %p49 = por %p47, %p48
      %p50 = scmp.ne.s32.totalorder %s36, %s37
      %p51 = scmp.eq.s32.totalorder %s15, 3
      %p52 = por %p50, %p51
      %p54 = scmp.ne.s32.totalorder %s37, %s53
      %p55 = scmp.eq.s32.totalorder %s15, 0
      %p56 = por %p54, %p55
      %s57 = ssub.s32 %s16, %s28
      %s58 = ssub.s32 %s17, %s24
      %s59 = sor.u32 %s57, %s58
      %p60 = scmp.eq.s32.totalorder %s59, 0
      %s62 = sadd.s32 %s61, 1
      %s63 = scalar_select %p60, %s61, %s62
      %p66 = pneg %p60
      %p67 = scmp.eq.s32.totalorder %s9, 3
      %p68 = por %p66, %p67
      %p69 = scmp.ne.s32.totalorder %s61, %s64
      %p70 = scmp.eq.s32.totalorder %s9, 0
      %p71 = por %p69, %p70
      %p72 = scmp.ne.s32.totalorder %s61, %s64
      %p73 = scmp.eq.s32.totalorder %s14, 3
      %p74 = por %p72, %p73
      %p75 = scmp.ne.s32.totalorder %s64, %s65
      %p76 = scmp.eq.s32.totalorder %s14, 0
      %p77 = por %p75, %p76
      %p78 = scmp.ne.s32.totalorder %s64, %s65
      %p79 = scmp.eq.s32.totalorder %s15, 3
      %p80 = por %p78, %p79
      %p82 = scmp.ne.s32.totalorder %s65, %s81
      %p83 = scmp.eq.s32.totalorder %s15, 0
      %p84 = por %p82, %p83
      %s85 = ssub.s32 %s16, %s28
      %s86 = ssub.s32 %s17, %s24
      %s87 = sor.u32 %s85, %s86
      %p88 = scmp.eq.s32.totalorder %s87, 0
      %s90 = sadd.s32 %s89, 1
      %s91 = scalar_select %p88, %s89, %s90
      %p94 = pneg %p88
      %p95 = scmp.eq.s32.totalorder %s9, 3
      %p96 = por %p94, %p95
      %p97 = scmp.ne.s32.totalorder %s89, %s92
      %p98 = scmp.eq.s32.totalorder %s9, 0
      %p99 = por %p97, %p98
      %p100 = scmp.ne.s32.totalorder %s89, %s92
      %p101 = scmp.eq.s32.totalorder %s14, 3
      %p102 = por %p100, %p101
      %p103 = scmp.ne.s32.totalorder %s92, %s93
      %p104 = scmp.eq.s32.totalorder %s14, 0
      %p105 = por %p103, %p104
      %p106 = scmp.ne.s32.totalorder %s92, %s93
      %p107 = scmp.eq.s32.totalorder %s15, 3
      %p108 = por %p106, %p107
      %p110 = scmp.ne.s32.totalorder %s93, %s109
      %p111 = scmp.eq.s32.totalorder %s15, 0
      %p112 = por %p110, %p111
      %s113 = ssub.s32 %s16, %s28
      %s114 = ssub.s32 %s17, %s24
      %s115 = sor.u32 %s113, %s114
      %p116 = scmp.eq.s32.totalorder %s115, 0
      %s118 = sadd.s32 %s117, 1
      %s119 = scalar_select %p116, %s117, %s118
      %p122 = pneg %p116
      %p123 = scmp.eq.s32.totalorder %s9, 3
      %p124 = por %p122, %p123
      %p125 = scmp.ne.s32.totalorder %s117, %s120
      %p126 = scmp.eq.s32.totalorder %s9, 0
      %p127 = por %p125, %p126
      %p128 = scmp.ne.s32.totalorder %s117, %s120
      %p129 = scmp.eq.s32.totalorder %s14, 3
      %p130 = por %p128, %p129
      %p131 = scmp.ne.s32.totalorder %s120, %s121
      %p132 = scmp.eq.s32.totalorder %s14, 0
      %p133 = por %p131, %p132
      %p134 = scmp.ne.s32.totalorder %s120, %s121
      %p135 = scmp.eq.s32.totalorder %s15, 3
      %p136 = por %p134, %p135
      %p138 = scmp.ne.s32.totalorder %s121, %s137
      %p139 = scmp.eq.s32.totalorder %s15, 0
      %p140 = por %p138, %p139
      %p141 = scmp.le.s32.totalorder 1, %s9
      %p142 = scmp.lt.s32.totalorder %s9, 5
      %p143 = pnand %p141, %p142
      %p144 = pneg %p143
      // Predicated region
      $region9: #{transformer_forward.7} parent=5 // pred_check
        _
      $region10: #{transformer_forward.7} parent=5 // pred_check_branch
        %146 = sbr.rel (%p143) target = $region12
      $region11: #{transformer_forward.7} parent=5 // pred_region
        %s147 = ssub.s32 %s9, 1
      $region12: #{transformer_forward.7} parent=5 // pred_fallthru
        _
      %p148 = scmp.lt.s32.totalorder %s9, 4
      // Predicated region
      $region13: #{transformer_forward.7} parent=5 // pred_check
        %p149 = pneg %p148
      $region14: #{transformer_forward.7} parent=5 // pred_check_branch
        %151 = sbr.rel (%p149) target = $region16
      $region15: #{transformer_forward.7} parent=5 // pred_region
        // Predicated region
        $region17: #{transformer_forward.7} parent=15 // pred_check
          %p152 = pneg %p43
        $region18: #{transformer_forward.7} parent=15 // pred_check_branch
          %154 = sbr.rel (%p152) target = $region20
        $region19: #{transformer_forward.7} parent=15 // pred_region
          %s155 = sand.u32 %s33, 1
          %s156 = sand.u32 %s33, 1
          %s157 = smul.addr %s156, 8
          %s158 = scalar_lea.vmem [#allocation2], %s157
          %s159 = smul.addr %s16, 4
          %s160 = sadd.s32 %s17, %s159
          %s161 = smul.addr %s160, 4
          %s162 = scalar_lea.vmem %s0, %s161
          // Predicated region
          $region21: #{transformer_forward.7} parent=19 // pred_check
            _
          $region22: #{transformer_forward.7} parent=19 // pred_check_branch
            %164 = sbr.rel (0) target = $region24
          $region23: #{transformer_forward.7} parent=19 // pred_region
            // Predicated region
            $region25: #{transformer_forward.7} parent=23 // pred_check
              _
            $region26: #{transformer_forward.7} parent=23 // pred_check_branch
              %166 = sbr.rel target = $region28
            $region27: #{transformer_forward.7} parent=23 // pred_region
              // Predicated region
              $region40: #{transformer_forward.7} parent=27 // pred_check
                _
              $region41: #{transformer_forward.7} parent=27 // pred_check_branch
                %183 = sbr.rel (0) target = $region43
              $region42: #{transformer_forward.7} parent=27 // pred_region
                loop: start=0, step=1, limit=1
                $region44: #{transformer_forward.7} parent=42 // loop_pre_header
                  _
                $region45: #{transformer_forward.7} parent=42 // loop_header
                  %s185 = sphi 0, %s189
                  %p186 = scmp.ge.s32.totalorder %s185, 1
                  %s190 = sphi %s162, %s162
                  %s191 = sphi %s158, %s158
                $region46: #{transformer_forward.7} parent=42 // loop_header_branch
                  %188 = sbr.rel (%p186) target = $region50
                $region47: #{transformer_forward.7} parent=42 // loop_body
                  _
                $region48: #{transformer_forward.7} parent=42 // loop_footer
                  %s189 = sadd.s32 1, %s185
                $region49: #{transformer_forward.7} parent=42 // loop_footer_branch
                  %184 = sbr.rel target = $region45
                $region50: #{transformer_forward.7} parent=42 // loop_exit
                  _
                loop: start=0, step=1, limit=1
                $region51: #{transformer_forward.7} parent=42 // loop_pre_header
                  _
                $region52: #{transformer_forward.7} parent=42 // loop_header
                  %s194 = sphi 0, %s198
                  %p195 = scmp.ge.s32.totalorder %s194, 1
                  %s199 = sphi %s162, %s162
                  %s200 = sphi %s158, %s158
                $region53: #{transformer_forward.7} parent=42 // loop_header_branch
                  %197 = sbr.rel (%p195) target = $region57
                $region54: #{transformer_forward.7} parent=42 // loop_body
                  %v201 = vld [vmem:[%s199] sm:$0xf]
                  %202 = vst [vmem:[%s200] sm:$0xf] %v201
                  %v203 = vld [vmem:[%s199 + $0x8] sm:$0xf]
                  %204 = vst [vmem:[%s200 + $0x4] sm:$0xf] %v203
                $region55: #{transformer_forward.7} parent=42 // loop_footer
                  %s198 = sadd.s32 1, %s194
                $region56: #{transformer_forward.7} parent=42 // loop_footer_branch
                  %193 = sbr.rel target = $region52
                $region57: #{transformer_forward.7} parent=42 // loop_exit
                  _
              $region43: #{transformer_forward.7} parent=27 // pred_fallthru
                _
            $region28: #{transformer_forward.7} parent=23 // pred_fallthru
              _
            // Predicated region
            $region29: #{transformer_forward.7} parent=23 // pred_check
              _
            $region30: #{transformer_forward.7} parent=23 // pred_check_branch
              %168 = sbr.rel (0) target = $region32
            $region31: #{transformer_forward.7} parent=23 // pred_region
              loop: start=0, step=1, limit=1
              $region33: #{transformer_forward.7} parent=31 // loop_pre_header
                _
              $region34: #{transformer_forward.7} parent=31 // loop_header
                %s171 = sphi 0, %s175
                %p172 = scmp.ge.s32.totalorder %s171, 1
                %s176 = sphi %s162, %s162
                %s177 = sphi %s158, %s158
              $region35: #{transformer_forward.7} parent=31 // loop_header_branch
                %174 = sbr.rel (%p172) target = $region39
              $region36: #{transformer_forward.7} parent=31 // loop_body
                %v178 = vld [vmem:[%s176] sm:$0xf]
                %179 = vst [vmem:[%s177] sm:$0xf] %v178
                %v180 = vld [vmem:[%s176 + $0x8] sm:$0xf]
                %181 = vst [vmem:[%s177 + $0x4] sm:$0xf] %v180
              $region37: #{transformer_forward.7} parent=31 // loop_footer
                %s175 = sadd.s32 1, %s171
              $region38: #{transformer_forward.7} parent=31 // loop_footer_branch
                %170 = sbr.rel target = $region34
              $region39: #{transformer_forward.7} parent=31 // loop_exit
                _
            $region32: #{transformer_forward.7} parent=23 // pred_fallthru
              _
          $region24: #{transformer_forward.7} parent=19 // pred_fallthru
            _
          %205 = vnop
        $region20: #{transformer_forward.7} parent=15 // pred_fallthru
          _
        // Predicated region
        $region58: #{transformer_forward.7} parent=15 // pred_check
          %p206 = pneg %p71
        $region59: #{transformer_forward.7} parent=15 // pred_check_branch
          %208 = sbr.rel (%p206) target = $region61
        $region60: #{transformer_forward.7} parent=15 // pred_region
          %s209 = sand.u32 %s61, 1
          %s210 = sand.u32 %s61, 1
          %s211 = smul.addr %s210, 8
          %s212 = scalar_lea.vmem [#allocation3], %s211
          %s213 = smul.addr %s16, 4
          %s214 = sadd.s32 %s17, %s213
          %s215 = smul.addr %s214, 4
          %s216 = scalar_lea.vmem %s1, %s215
          // Predicated region
          $region62: #{transformer_forward.7} parent=60 // pred_check
            _
          $region63: #{transformer_forward.7} parent=60 // pred_check_branch
            %218 = sbr.rel (0) target = $region65
          $region64: #{transformer_forward.7} parent=60 // pred_region
            // Predicated region
            $region66: #{transformer_forward.7} parent=64 // pred_check
              _
            $region67: #{transformer_forward.7} parent=64 // pred_check_branch
              %220 = sbr.rel target = $region69
            $region68: #{transformer_forward.7} parent=64 // pred_region
              // Predicated region
              $region81: #{transformer_forward.7} parent=68 // pred_check
                _
              $region82: #{transformer_forward.7} parent=68 // pred_check_branch
                %237 = sbr.rel (0) target = $region84
              $region83: #{transformer_forward.7} parent=68 // pred_region
                loop: start=0, step=1, limit=1
                $region85: #{transformer_forward.7} parent=83 // loop_pre_header
                  _
                $region86: #{transformer_forward.7} parent=83 // loop_header
                  %s239 = sphi 0, %s243
                  %p240 = scmp.ge.s32.totalorder %s239, 1
                  %s244 = sphi %s216, %s216
                  %s245 = sphi %s212, %s212
                $region87: #{transformer_forward.7} parent=83 // loop_header_branch
                  %242 = sbr.rel (%p240) target = $region91
                $region88: #{transformer_forward.7} parent=83 // loop_body
                  _
                $region89: #{transformer_forward.7} parent=83 // loop_footer
                  %s243 = sadd.s32 1, %s239
                $region90: #{transformer_forward.7} parent=83 // loop_footer_branch
                  %238 = sbr.rel target = $region86
                $region91: #{transformer_forward.7} parent=83 // loop_exit
                  _
                loop: start=0, step=1, limit=1
                $region92: #{transformer_forward.7} parent=83 // loop_pre_header
                  _
                $region93: #{transformer_forward.7} parent=83 // loop_header
                  %s248 = sphi 0, %s252
                  %p249 = scmp.ge.s32.totalorder %s248, 1
                  %s253 = sphi %s216, %s216
                  %s254 = sphi %s212, %s212
                $region94: #{transformer_forward.7} parent=83 // loop_header_branch
                  %251 = sbr.rel (%p249) target = $region98
                $region95: #{transformer_forward.7} parent=83 // loop_body
                  %v255 = vld [vmem:[%s253] sm:$0xf]
                  %256 = vst [vmem:[%s254] sm:$0xf] %v255
                  %v257 = vld [vmem:[%s253 + $0x8] sm:$0xf]
                  %258 = vst [vmem:[%s254 + $0x4] sm:$0xf] %v257
                $region96: #{transformer_forward.7} parent=83 // loop_footer
                  %s252 = sadd.s32 1, %s248
                $region97: #{transformer_forward.7} parent=83 // loop_footer_branch
                  %247 = sbr.rel target = $region93
                $region98: #{transformer_forward.7} parent=83 // loop_exit
                  _
              $region84: #{transformer_forward.7} parent=68 // pred_fallthru
                _
            $region69: #{transformer_forward.7} parent=64 // pred_fallthru
              _
            // Predicated region
            $region70: #{transformer_forward.7} parent=64 // pred_check
              _
            $region71: #{transformer_forward.7} parent=64 // pred_check_branch
              %222 = sbr.rel (0) target = $region73
            $region72: #{transformer_forward.7} parent=64 // pred_region
              loop: start=0, step=1, limit=1
              $region74: #{transformer_forward.7} parent=72 // loop_pre_header
                _
              $region75: #{transformer_forward.7} parent=72 // loop_header
                %s225 = sphi 0, %s229
                %p226 = scmp.ge.s32.totalorder %s225, 1
                %s230 = sphi %s216, %s216
                %s231 = sphi %s212, %s212
              $region76: #{transformer_forward.7} parent=72 // loop_header_branch
                %228 = sbr.rel (%p226) target = $region80
              $region77: #{transformer_forward.7} parent=72 // loop_body
                %v232 = vld [vmem:[%s230] sm:$0xf]
                %233 = vst [vmem:[%s231] sm:$0xf] %v232
                %v234 = vld [vmem:[%s230 + $0x8] sm:$0xf]
                %235 = vst [vmem:[%s231 + $0x4] sm:$0xf] %v234
              $region78: #{transformer_forward.7} parent=72 // loop_footer
                %s229 = sadd.s32 1, %s225
              $region79: #{transformer_forward.7} parent=72 // loop_footer_branch
                %224 = sbr.rel target = $region75
              $region80: #{transformer_forward.7} parent=72 // loop_exit
                _
            $region73: #{transformer_forward.7} parent=64 // pred_fallthru
              _
          $region65: #{transformer_forward.7} parent=60 // pred_fallthru
            _
          %259 = vnop
        $region61: #{transformer_forward.7} parent=15 // pred_fallthru
          _
        // Predicated region
        $region99: #{transformer_forward.7} parent=15 // pred_check
          %p260 = pneg %p99
        $region100: #{transformer_forward.7} parent=15 // pred_check_branch
          %262 = sbr.rel (%p260) target = $region102
        $region101: #{transformer_forward.7} parent=15 // pred_region
          %s263 = sand.u32 %s89, 1
          %s264 = sand.u32 %s89, 1
          %s265 = smul.addr %s264, 8
          %s266 = scalar_lea.vmem [#allocation4], %s265
          %s267 = smul.addr %s16, 4
          %s268 = sadd.s32 %s17, %s267
          %s269 = smul.addr %s268, 4
          %s270 = scalar_lea.vmem %s2, %s269
          // Predicated region
          $region103: #{transformer_forward.7} parent=101 // pred_check
            _
          $region104: #{transformer_forward.7} parent=101 // pred_check_branch
            %272 = sbr.rel (0) target = $region106
          $region105: #{transformer_forward.7} parent=101 // pred_region
            // Predicated region
            $region107: #{transformer_forward.7} parent=105 // pred_check
              _
            $region108: #{transformer_forward.7} parent=105 // pred_check_branch
              %274 = sbr.rel target = $region110
            $region109: #{transformer_forward.7} parent=105 // pred_region
              // Predicated region
              $region122: #{transformer_forward.7} parent=109 // pred_check
                _
              $region123: #{transformer_forward.7} parent=109 // pred_check_branch
                %291 = sbr.rel (0) target = $region125
              $region124: #{transformer_forward.7} parent=109 // pred_region
                loop: start=0, step=1, limit=1
                $region126: #{transformer_forward.7} parent=124 // loop_pre_header
                  _
                $region127: #{transformer_forward.7} parent=124 // loop_header
                  %s293 = sphi 0, %s297
                  %p294 = scmp.ge.s32.totalorder %s293, 1
                  %s298 = sphi %s270, %s270
                  %s299 = sphi %s266, %s266
                $region128: #{transformer_forward.7} parent=124 // loop_header_branch
                  %296 = sbr.rel (%p294) target = $region132
                $region129: #{transformer_forward.7} parent=124 // loop_body
                  _
                $region130: #{transformer_forward.7} parent=124 // loop_footer
                  %s297 = sadd.s32 1, %s293
                $region131: #{transformer_forward.7} parent=124 // loop_footer_branch
                  %292 = sbr.rel target = $region127
                $region132: #{transformer_forward.7} parent=124 // loop_exit
                  _
                loop: start=0, step=1, limit=1
                $region133: #{transformer_forward.7} parent=124 // loop_pre_header
                  _
                $region134: #{transformer_forward.7} parent=124 // loop_header
                  %s302 = sphi 0, %s306
                  %p303 = scmp.ge.s32.totalorder %s302, 1
                  %s307 = sphi %s270, %s270
                  %s308 = sphi %s266, %s266
                $region135: #{transformer_forward.7} parent=124 // loop_header_branch
                  %305 = sbr.rel (%p303) target = $region139
                $region136: #{transformer_forward.7} parent=124 // loop_body
                  %v309 = vld [vmem:[%s307] sm:$0xf]
                  %310 = vst [vmem:[%s308] sm:$0xf] %v309
                  %v311 = vld [vmem:[%s307 + $0x8] sm:$0xf]
                  %312 = vst [vmem:[%s308 + $0x4] sm:$0xf] %v311
                $region137: #{transformer_forward.7} parent=124 // loop_footer
                  %s306 = sadd.s32 1, %s302
                $region138: #{transformer_forward.7} parent=124 // loop_footer_branch
                  %301 = sbr.rel target = $region134
                $region139: #{transformer_forward.7} parent=124 // loop_exit
                  _
              $region125: #{transformer_forward.7} parent=109 // pred_fallthru
                _
            $region110: #{transformer_forward.7} parent=105 // pred_fallthru
              _
            // Predicated region
            $region111: #{transformer_forward.7} parent=105 // pred_check
              _
            $region112: #{transformer_forward.7} parent=105 // pred_check_branch
              %276 = sbr.rel (0) target = $region114
            $region113: #{transformer_forward.7} parent=105 // pred_region
              loop: start=0, step=1, limit=1
              $region115: #{transformer_forward.7} parent=113 // loop_pre_header
                _
              $region116: #{transformer_forward.7} parent=113 // loop_header
                %s279 = sphi 0, %s283
                %p280 = scmp.ge.s32.totalorder %s279, 1
                %s284 = sphi %s270, %s270
                %s285 = sphi %s266, %s266
              $region117: #{transformer_forward.7} parent=113 // loop_header_branch
                %282 = sbr.rel (%p280) target = $region121
              $region118: #{transformer_forward.7} parent=113 // loop_body
                %v286 = vld [vmem:[%s284] sm:$0xf]
                %287 = vst [vmem:[%s285] sm:$0xf] %v286
                %v288 = vld [vmem:[%s284 + $0x8] sm:$0xf]
                %289 = vst [vmem:[%s285 + $0x4] sm:$0xf] %v288
              $region119: #{transformer_forward.7} parent=113 // loop_footer
                %s283 = sadd.s32 1, %s279
              $region120: #{transformer_forward.7} parent=113 // loop_footer_branch
                %278 = sbr.rel target = $region116
              $region121: #{transformer_forward.7} parent=113 // loop_exit
                _
            $region114: #{transformer_forward.7} parent=105 // pred_fallthru
              _
          $region106: #{transformer_forward.7} parent=101 // pred_fallthru
            _
          %313 = vnop
        $region102: #{transformer_forward.7} parent=15 // pred_fallthru
          _
      $region16: #{transformer_forward.7} parent=5 // pred_fallthru
        _
      %p314 = scmp.le.s32.totalorder 1, %s9
      %p315 = scmp.lt.s32.totalorder %s9, 5
      %p316 = pnand %p314, %p315
      %p317 = pneg %p316
      // Predicated region
      $region140: #{transformer_forward.7} parent=5 // pred_check
        _
      $region141: #{transformer_forward.7} parent=5 // pred_check_branch
        %319 = sbr.rel (%p316) target = $region143
      $region142: #{transformer_forward.7} parent=5 // pred_region
        %s320 = ssub.s32 %s9, 1
        %s321 = sand.u32 %s36, 1
        %s322 = sand.u32 %s36, 1
        %s323 = smul.addr %s322, 8
        %s324 = scalar_lea.vmem [#allocation2], %s323
        // Predicated region
        $region144: #{transformer_forward.7} parent=142 // pred_check
          %p325 = pneg %p49
        $region145: #{transformer_forward.7} parent=142 // pred_check_branch
          %327 = sbr.rel (%p325) target = $region147
        $region146: #{transformer_forward.7} parent=142 // pred_region
          _
        $region147: #{transformer_forward.7} parent=142 // pred_fallthru
          _
        %s328 = sand.u32 %s64, 1
        %s329 = sand.u32 %s64, 1
        %s330 = smul.addr %s329, 8
        %s331 = scalar_lea.vmem [#allocation3], %s330
        // Predicated region
        $region148: #{transformer_forward.7} parent=142 // pred_check
          %p332 = pneg %p77
        $region149: #{transformer_forward.7} parent=142 // pred_check_branch
          %334 = sbr.rel (%p332) target = $region151
        $region150: #{transformer_forward.7} parent=142 // pred_region
          _
        $region151: #{transformer_forward.7} parent=142 // pred_fallthru
          _
        %s335 = sand.u32 %s92, 1
        %s336 = sand.u32 %s92, 1
        %s337 = smul.addr %s336, 8
        %s338 = scalar_lea.vmem [#allocation4], %s337
        // Predicated region
        $region152: #{transformer_forward.7} parent=142 // pred_check
          %p339 = pneg %p105
        $region153: #{transformer_forward.7} parent=142 // pred_check_branch
          %341 = sbr.rel (%p339) target = $region155
        $region154: #{transformer_forward.7} parent=142 // pred_region
          _
        $region155: #{transformer_forward.7} parent=142 // pred_fallthru
          _
        %s342 = sand.u32 %s36, 1
        %s343 = sand.u32 %s36, 1
        %s344 = smul.addr %s343, 8
        %s345 = scalar_lea.vmem [#allocation2], %s344
        %p346 = pneg %p49
        %p347 = pneg %p46
        %s348 = sand.u32 %s64, 1
        %s349 = sand.u32 %s64, 1
        %s350 = smul.addr %s349, 8
        %s351 = scalar_lea.vmem [#allocation3], %s350
        %p352 = pneg %p77
        %p353 = pneg %p74
        %s354 = sand.u32 %s92, 1
        %s355 = sand.u32 %s92, 1
        %s356 = smul.addr %s355, 8
        %s357 = scalar_lea.vmem [#allocation4], %s356
        %p358 = pneg %p105
        %p359 = pneg %p102
        %p360 = pneg %p133
        %p361 = pneg %p130
        %s362 = sand.u32 %s120, 1
        %s363 = sand.u32 %s120, 1
        %s364 = smul.addr %s363, 8
        %s365 = scalar_lea.vmem [#allocation5], %s364
        %v367 = vld [vmem:[%s324] sm:$0xf]
        %v368 = vld [vmem:[%s324 + $0x4] sm:$0xf]
        %v369 = vld [vmem:[%s331] sm:$0xf]
        %v370 = vld [vmem:[%s331 + $0x4] sm:$0xf]
        %v371 = vld [vmem:[%s338] sm:$0xf]
        %v372 = vld [vmem:[%s338 + $0x4] sm:$0xf]
        %v375 = vunpack.c.l.b16 %v367
        %v376 = vunpack.c.l.b16 %v368
        %v377 = vpack.c.b16 %v376, %v375
        %v381 = vunpack.c.l.b16 %v369
        %v382 = vunpack.c.l.b16 %v370
        %v383 = vpack.c.b16 %v382, %v381
        %385 = vmatprep.subr.bf16.mxu0 0
        %386 = vmatpush1.bf16.xpose.msra.mxu0 %v383
        %387 = vmatprep.subr.bf16.mxu0 0
        %388 = vmatpush1.bf16.xpose.msra.mxu0 0
        %389 = vmatprep.subr.bf16.mxu0 0
        %390 = vmatpush1.bf16.xpose.msra.mxu0 0
        %391 = vmatprep.subr.bf16.mxu0 0
        %392 = vmatpush1.bf16.xpose.msra.mxu0 0
        %393 = vmatprep.subr.bf16.mxu0 0
        %394 = vmatpush1.bf16.xpose.msra.mxu0 0
        %395 = vmatprep.subr.bf16.mxu0 0
        %396 = vmatpush1.bf16.xpose.msra.mxu0 0
        %397 = vmatprep.subr.bf16.mxu0 0
        %398 = vmatpush1.bf16.xpose.msra.mxu0 0
        %399 = vmatprep.subr.bf16.mxu0 0
        %400 = vmatpush1.bf16.xpose.msra.mxu0 0
        %401 = vmatprep.subr.bf16.mxu0 0
        %402 = vmatpush1.bf16.xpose.msra.mxu0 0
        %403 = vmatprep.subr.bf16.mxu0 0
        %404 = vmatpush1.bf16.xpose.msra.mxu0 0
        %405 = vmatprep.subr.bf16.mxu0 0
        %406 = vmatpush1.bf16.xpose.msra.mxu0 0
        %407 = vmatprep.subr.bf16.mxu0 0
        %408 = vmatpush1.bf16.xpose.msra.mxu0 0
        %409 = vmatprep.subr.bf16.mxu0 0
        %410 = vmatpush1.bf16.xpose.msra.mxu0 0
        %411 = vmatprep.subr.bf16.mxu0 0
        %412 = vmatpush1.bf16.xpose.msra.mxu0 0
        %413 = vmatprep.subr.bf16.mxu0 0
        %414 = vmatpush1.bf16.xpose.msra.mxu0 0
        %415 = vmatprep.subr.bf16.mxu0 0
        %416 = vmatpush1.bf16.xpose.msra.mxu0 0
        %417 = vmatprep.mubr.bf16.mxu0 0
        %418 = vmatmul.mubr.bf16.gmra.mrb[0].mxu0 %v377
        %v419 = vpop.f32.mrb[0].mxu0
        %v420 = vadd.f32 0.0, %v419
        %v421 = vpop.f32.mrb[0].mxu0
        %v422 = vpop.f32.mrb[0].mxu0
        %v423 = vadd.f32 0.0, %v422
        %v424 = vpop.f32.mrb[0].mxu0
        %425 = vdwg.mxu0
        %vm426 = vcmask 130048
        %v427 = vsel %vm426, %v420, -inf
        %428 = vmax.xlane.f32.xlu0 %v427
        %v429 = vpop.xlane.xlu0 %428
        %v430 = vsel %vm426, %v423, -inf
        %431 = vmax.xlane.f32.xlu0 %v430
        %v432 = vpop.xlane.xlu0 %431
        %v433 = vsub.f32 %v420, %v429
        %v434 = vsub.f32 %v423, %v432
        %v435 = vmul.f32 %v433, 1.442695
        %v436 = vpow.pop %v435
        %v437 = vmul.f32 %v434, 1.442695
        %v438 = vpow.pop %v437
        %v439 = vsel %vm426, %v436, 0.0
        %440 = vadd.xlane.f32.xlu0 %v439
        %v441 = vpop.xlane.xlu0 %440
        %v442 = vsel %vm426, %v438, 0.0
        %443 = vadd.xlane.f32.xlu0 %v442
        %v444 = vpop.xlane.xlu0 %443
        %v445 = vrcp.pop %v441
        %v446 = vrcp.pop %v444
        %v447 = vmul.f32 %v436, %v445
        %v448 = vmul.f32 %v438, %v446
        %v449 = vpack.c.bf16 %v448, %v447
        %v452 = vunpack.c.l.b16 %v371
        %v453 = vunpack.c.l.b16 %v372
        %v454 = vpack.c.b16 %v453, %v452
        %v457 = vsel %vm426, %v449, 0
        %459 = vmatprep.subr.bf16.mxu0 0
        %460 = vmatpush1.bf16.msra.mxu0 %v454
        %461 = vmatprep.subr.bf16.mxu0 0
        %462 = vmatpush1.bf16.msra.mxu0 0
        %463 = vmatprep.subr.bf16.mxu0 0
        %464 = vmatpush1.bf16.msra.mxu0 0
        %465 = vmatprep.subr.bf16.mxu0 0
        %466 = vmatpush1.bf16.msra.mxu0 0
        %467 = vmatprep.subr.bf16.mxu0 0
        %468 = vmatpush1.bf16.msra.mxu0 0
        %469 = vmatprep.subr.bf16.mxu0 0
        %470 = vmatpush1.bf16.msra.mxu0 0
        %471 = vmatprep.subr.bf16.mxu0 0
        %472 = vmatpush1.bf16.msra.mxu0 0
        %473 = vmatprep.subr.bf16.mxu0 0
        %474 = vmatpush1.bf16.msra.mxu0 0
        %475 = vmatprep.subr.bf16.mxu0 0
        %476 = vmatpush1.bf16.msra.mxu0 0
        %477 = vmatprep.subr.bf16.mxu0 0
        %478 = vmatpush1.bf16.msra.mxu0 0
        %479 = vmatprep.subr.bf16.mxu0 0
        %480 = vmatpush1.bf16.msra.mxu0 0
        %481 = vmatprep.subr.bf16.mxu0 0
        %482 = vmatpush1.bf16.msra.mxu0 0
        %483 = vmatprep.subr.bf16.mxu0 0
        %484 = vmatpush1.bf16.msra.mxu0 0
        %485 = vmatprep.subr.bf16.mxu0 0
        %486 = vmatpush1.bf16.msra.mxu0 0
        %487 = vmatprep.subr.bf16.mxu0 0
        %488 = vmatpush1.bf16.msra.mxu0 0
        %489 = vmatprep.subr.bf16.mxu0 0
        %490 = vmatpush1.bf16.msra.mxu0 0
        %491 = vmatprep.mubr.bf16.mxu0 0
        %492 = vmatmul.mubr.bf16.gmra.mrb[0].mxu0 %v457
        %v493 = vpop.f32.mrb[0].mxu0
        %v494 = vadd.f32 0.0, %v493
        %v495 = vpop.f32.mrb[0].mxu0
        %v496 = vpop.f32.mrb[0].mxu0
        %v497 = vadd.f32 0.0, %v496
        %v498 = vpop.f32.mrb[0].mxu0
        %499 = vdwg.mxu0
        %v500 = vpack.c.bf16 %v497, %v494
        %v502 = vunpack.c.l.b16 %v500
        %v503 = vunpack.c.h.b16 %v500
        %v504 = vpack.c.b16 %v502, %v502
        %v505 = vpack.c.b16 %v503, %v503
        %508 = vst [vmem:[%s365] sm:$0xf] %v504
        %509 = vst [vmem:[%s365 + $0x4] sm:$0xf] %v505
        %s510 = sand.u32 %s120, 1
        %s511 = sand.u32 %s120, 1
        %s512 = smul.addr %s511, 8
        %s513 = scalar_lea.vmem [#allocation5], %s512
        // Predicated region
        $region156: #{transformer_forward.7} parent=142 // pred_check
          %p514 = pneg %p130
        $region157: #{transformer_forward.7} parent=142 // pred_check_branch
          %516 = sbr.rel (%p514) target = $region159
        $region158: #{transformer_forward.7} parent=142 // pred_region
          %s517 = smul.addr %s18, 4
          %s518 = sadd.s32 %s19, %s517
          %s519 = smul.addr %s518, 4
          %s520 = scalar_lea.vmem %s3, %s519
          // Predicated region
          $region160: #{transformer_forward.7} parent=158 // pred_check
            _
          $region161: #{transformer_forward.7} parent=158 // pred_check_branch
            %522 = sbr.rel (0) target = $region163
          $region162: #{transformer_forward.7} parent=158 // pred_region
            // Predicated region
            $region164: #{transformer_forward.7} parent=162 // pred_check
              _
            $region165: #{transformer_forward.7} parent=162 // pred_check_branch
              %524 = sbr.rel target = $region167
            $region166: #{transformer_forward.7} parent=162 // pred_region
              // Predicated region
              $region179: #{transformer_forward.7} parent=166 // pred_check
                _
              $region180: #{transformer_forward.7} parent=166 // pred_check_branch
                %541 = sbr.rel (0) target = $region182
              $region181: #{transformer_forward.7} parent=166 // pred_region
                loop: start=0, step=1, limit=1
                $region183: #{transformer_forward.7} parent=181 // loop_pre_header
                  _
                $region184: #{transformer_forward.7} parent=181 // loop_header
                  %s543 = sphi 0, %s547
                  %p544 = scmp.ge.s32.totalorder %s543, 1
                  %s548 = sphi %s513, %s513
                  %s549 = sphi %s520, %s520
                $region185: #{transformer_forward.7} parent=181 // loop_header_branch
                  %546 = sbr.rel (%p544) target = $region189
                $region186: #{transformer_forward.7} parent=181 // loop_body
                  _
                $region187: #{transformer_forward.7} parent=181 // loop_footer
                  %s547 = sadd.s32 1, %s543
                $region188: #{transformer_forward.7} parent=181 // loop_footer_branch
                  %542 = sbr.rel target = $region184
                $region189: #{transformer_forward.7} parent=181 // loop_exit
                  _
                loop: start=0, step=1, limit=1
                $region190: #{transformer_forward.7} parent=181 // loop_pre_header
                  _
                $region191: #{transformer_forward.7} parent=181 // loop_header
                  %s552 = sphi 0, %s556
                  %p553 = scmp.ge.s32.totalorder %s552, 1
                  %s557 = sphi %s513, %s513
                  %s558 = sphi %s520, %s520
                $region192: #{transformer_forward.7} parent=181 // loop_header_branch
                  %555 = sbr.rel (%p553) target = $region196
                $region193: #{transformer_forward.7} parent=181 // loop_body
                  %v559 = vld [vmem:[%s557] sm:$0xf]
                  %560 = vst [vmem:[%s558] sm:$0xf] %v559
                  %v561 = vld [vmem:[%s557 + $0x4] sm:$0xf]
                  %562 = vst [vmem:[%s558 + $0x8] sm:$0xf] %v561
                $region194: #{transformer_forward.7} parent=181 // loop_footer
                  %s556 = sadd.s32 1, %s552
                $region195: #{transformer_forward.7} parent=181 // loop_footer_branch
                  %551 = sbr.rel target = $region191
                $region196: #{transformer_forward.7} parent=181 // loop_exit
                  _
              $region182: #{transformer_forward.7} parent=166 // pred_fallthru
                _
            $region167: #{transformer_forward.7} parent=162 // pred_fallthru
              _
            // Predicated region
            $region168: #{transformer_forward.7} parent=162 // pred_check
              _
            $region169: #{transformer_forward.7} parent=162 // pred_check_branch
              %526 = sbr.rel (0) target = $region171
            $region170: #{transformer_forward.7} parent=162 // pred_region
              loop: start=0, step=1, limit=1
              $region172: #{transformer_forward.7} parent=170 // loop_pre_header
                _
              $region173: #{transformer_forward.7} parent=170 // loop_header
                %s529 = sphi 0, %s533
                %p530 = scmp.ge.s32.totalorder %s529, 1
                %s534 = sphi %s513, %s513
                %s535 = sphi %s520, %s520
              $region174: #{transformer_forward.7} parent=170 // loop_header_branch
                %532 = sbr.rel (%p530) target = $region178
              $region175: #{transformer_forward.7} parent=170 // loop_body
                %v536 = vld [vmem:[%s534] sm:$0xf]
                %537 = vst [vmem:[%s535] sm:$0xf] %v536
                %v538 = vld [vmem:[%s534 + $0x4] sm:$0xf]
                %539 = vst [vmem:[%s535 + $0x8] sm:$0xf] %v538
              $region176: #{transformer_forward.7} parent=170 // loop_footer
                %s533 = sadd.s32 1, %s529
              $region177: #{transformer_forward.7} parent=170 // loop_footer_branch
                %528 = sbr.rel target = $region173
              $region178: #{transformer_forward.7} parent=170 // loop_exit
                _
            $region171: #{transformer_forward.7} parent=162 // pred_fallthru
              _
          $region163: #{transformer_forward.7} parent=158 // pred_fallthru
            _
          %563 = vnop
        $region159: #{transformer_forward.7} parent=142 // pred_fallthru
          _
      $region143: #{transformer_forward.7} parent=5 // pred_fallthru
        _
      %p564 = scmp.le.s32.totalorder 2, %s9
      // Predicated region
      $region197: #{transformer_forward.7} parent=5 // pred_check
        %p565 = pneg %p564
      $region198: #{transformer_forward.7} parent=5 // pred_check_branch
        %567 = sbr.rel (%p565) target = $region200
      $region199: #{transformer_forward.7} parent=5 // pred_region
        %s568 = ssub.s32 %s9, 2
        // Predicated region
        $region201: #{transformer_forward.7} parent=199 // pred_check
          %p569 = pneg %p136
        $region202: #{transformer_forward.7} parent=199 // pred_check_branch
          %571 = sbr.rel (%p569) target = $region204
        $region203: #{transformer_forward.7} parent=199 // pred_region
          %s572 = sand.u32 %s121, 1
          %s573 = sand.u32 %s121, 1
          %s574 = smul.addr %s573, 8
          %s575 = scalar_lea.vmem [#allocation5], %s574
        $region204: #{transformer_forward.7} parent=199 // pred_fallthru
          _
      $region200: #{transformer_forward.7} parent=5 // pred_fallthru
        _
    $region6: #{transformer_forward.7} parent=1 // loop_footer
      %s13 = sadd.s32 1, %s9
    $region7: #{transformer_forward.7} parent=1 // loop_footer_branch
      %8 = sbr.rel target = $region3
    $region8: #{transformer_forward.7} parent=1 // loop_exit
      _

// kernel: transformer_forward.6
$region0: #{transformer_forward.6}
  #allocation0 [shape = 'u32[]', space=smem, size = 0x4, offset = 0x4, fixed_abs, tag = 'smem constant byte address 0x4 - core index']
  #allocation1 [shape = 'u32[144,128]{1,0:T(1,128)}', space=vmem, size = 0x12000, scoped, tag = 'internal scratch']
  %s0 = inlined_call_operand.vmem [shape: f32[32,256], index: 0, kind: input, shape index: {}]
  %s1 = inlined_call_operand.vmem [shape: f32[32,256], index: 1, kind: input, shape index: {}]
  %s2 = inlined_call_operand.vmem [shape: bf16[256,256], index: 2, kind: input, shape index: {}]
  %s3 = inlined_call_operand.vmem [shape: f32[1,256], index: 3, kind: input, shape index: {}]
  %s4 = inlined_call_operand.hbm [shape: bf16[256,256], index: 4, kind: input, shape index: {}]
  %s5 = inlined_call_operand.vmem [shape: f32[1,256], index: 5, kind: input, shape index: {}]
  %s6 = inlined_call_operand.hbm [shape: bf16[256,256], index: 6, kind: input, shape index: {}]
  %s7 = inlined_call_operand.vmem [shape: f32[1,256], index: 7, kind: input, shape index: {}]
  %s8 = inlined_call_operand.vmem [shape: bf16[32,256], index: 8, kind: output, shape index: {0}]
  %s9 = inlined_call_operand.vmem [shape: bf16[32,256], index: 9, kind: output, shape index: {1}]
  %s10 = inlined_call_operand.vmem [shape: bf16[32,256], index: 10, kind: output, shape index: {2}]
  %11 = xla_tuple %s8, %s9, %s10
  %s12 = sld [smem:[#allocation0]]
  $region66: #{transformer_forward.6} parent=0
    _
  %s14 = ssub.s32 1, %s12
  %s15 = scalar_select 0, %s14, %s12
  $region1: #{transformer_forward.6} parent=0
    #allocation2 [shape = 'u8[131072]{0}', space=vmem, size = 0x20000, scoped, tag = 'input window, operand 4, single buffered']
    #allocation3 [shape = 's32[1]{0}', space=sflag, size = 0x4, scoped, tag = 'scoped memory for transformer_forward.6']
    #allocation4 [shape = 'u8[131072]{0}', space=vmem, size = 0x20000, scoped, tag = 'input window, operand 6, single buffered']
    #allocation5 [shape = 's32[1]{0}', space=sflag, size = 0x4, scoped, tag = 'scoped memory for transformer_forward.6']
    %16 = vsyncpa [#allocation3], 0
    %17 = vsyncpa [#allocation5], 0
    // Predicated region
    $region2: #{transformer_forward.6} parent=1 // pred_check
      _
    $region3: #{transformer_forward.6} parent=1 // pred_check_branch
      %19 = sbr.rel (0) target = $region5
    $region4: #{transformer_forward.6} parent=1 // pred_region
      _
    $region5: #{transformer_forward.6} parent=1 // pred_fallthru
      _
    // Predicated region
    $region6: #{transformer_forward.6} parent=1 // pred_check
      _
    $region7: #{transformer_forward.6} parent=1 // pred_check_branch
      %21 = sbr.rel (0) target = $region9
    $region8: #{transformer_forward.6} parent=1 // pred_region
      _
    $region9: #{transformer_forward.6} parent=1 // pred_fallthru
      _
    // Predicated region
    $region10: #{transformer_forward.6} parent=1 // pred_check
      _
    $region11: #{transformer_forward.6} parent=1 // pred_check_branch
      %23 = sbr.rel (0) target = $region13
    $region12: #{transformer_forward.6} parent=1 // pred_region
      _
    $region13: #{transformer_forward.6} parent=1 // pred_fallthru
      _
    // Predicated region
    $region14: #{transformer_forward.6} parent=1 // pred_check
      _
    $region15: #{transformer_forward.6} parent=1 // pred_check_branch
      %25 = sbr.rel (0) target = $region17
    $region16: #{transformer_forward.6} parent=1 // pred_region
      _
    $region17: #{transformer_forward.6} parent=1 // pred_fallthru
      _
    // Predicated region
    $region18: #{transformer_forward.6} parent=1 // pred_check
      _
    $region19: #{transformer_forward.6} parent=1 // pred_check_branch
      %27 = sbr.rel (0) target = $region21
    $region20: #{transformer_forward.6} parent=1 // pred_region
      %s29 = ssub.s32 4096, 4096
      %30 = vsyncadd [#allocation3], %s29
      %s31 = sshll.u32 [#allocation2], 4
      %s32 = int_to_ptr.vmem [resolvable:$true] %s31
      %37 = dma.hbm_to_vmem [thread:$0]  %s4, 4096, %s32, [#allocation3], 128, 128, 8
    $region21: #{transformer_forward.6} parent=1 // pred_fallthru
      _
    // Predicated region
    $region22: #{transformer_forward.6} parent=1 // pred_check
      _
    $region23: #{transformer_forward.6} parent=1 // pred_check_branch
      %39 = sbr.rel (0) target = $region25
    $region24: #{transformer_forward.6} parent=1 // pred_region
      _
    $region25: #{transformer_forward.6} parent=1 // pred_fallthru
      _
    // Predicated region
    $region26: #{transformer_forward.6} parent=1 // pred_check
      _
    $region27: #{transformer_forward.6} parent=1 // pred_check_branch
      %41 = sbr.rel (0) target = $region29
    $region28: #{transformer_forward.6} parent=1 // pred_region
      %s43 = ssub.s32 4096, 4096
      %44 = vsyncadd [#allocation5], %s43
      %s45 = sshll.u32 [#allocation4], 4
      %s46 = int_to_ptr.vmem [resolvable:$true] %s45
      %51 = dma.hbm_to_vmem [thread:$0]  %s6, 4096, %s46, [#allocation5], 128, 128, 8
    $region29: #{transformer_forward.6} parent=1 // pred_fallthru
      _
    // Predicated region
    $region30: #{transformer_forward.6} parent=1 // pred_check
      _
    $region31: #{transformer_forward.6} parent=1 // pred_check_branch
      %53 = sbr.rel (0) target = $region33
    $region32: #{transformer_forward.6} parent=1 // pred_region
      _
    $region33: #{transformer_forward.6} parent=1 // pred_fallthru
      _
    // Predicated region
    $region34: #{transformer_forward.6} parent=1 // pred_check
      _
    $region35: #{transformer_forward.6} parent=1 // pred_check_branch
      %55 = sbr.rel (0) target = $region37
    $region36: #{transformer_forward.6} parent=1 // pred_region
      %56 = dma.done [#allocation3], 4096
    $region37: #{transformer_forward.6} parent=1 // pred_fallthru
      _
    // Predicated region
    $region38: #{transformer_forward.6} parent=1 // pred_check
      _
    $region39: #{transformer_forward.6} parent=1 // pred_check_branch
      %58 = sbr.rel (0) target = $region41
    $region40: #{transformer_forward.6} parent=1 // pred_region
      %59 = dma.done [#allocation5], 4096
    $region41: #{transformer_forward.6} parent=1 // pred_fallthru
      _
    %v60 = vld [vmem:[%s0] sm:$0xff]
    %v61 = vld [vmem:[%s0 + $0x8] sm:$0xff]
    %v62 = vld [vmem:[%s0 + $0x10] sm:$0xff]
    %v63 = vld [vmem:[%s0 + $0x18] sm:$0xff]
    %v64 = vld [vmem:[%s0 + $0x20] sm:$0xff]
    %v65 = vld [vmem:[%s0 + $0x28] sm:$0xff]
    %v66 = vld [vmem:[%s0 + $0x30] sm:$0xff]
    %v67 = vld [vmem:[%s0 + $0x38] sm:$0xff]
    %v68 = vld [vmem:[%s1] sm:$0xff]
    %v69 = vld [vmem:[%s1 + $0x8] sm:$0xff]
    %v70 = vld [vmem:[%s1 + $0x10] sm:$0xff]
    %v71 = vld [vmem:[%s1 + $0x18] sm:$0xff]
    %v72 = vld [vmem:[%s1 + $0x20] sm:$0xff]
    %v73 = vld [vmem:[%s1 + $0x28] sm:$0xff]
    %v74 = vld [vmem:[%s1 + $0x30] sm:$0xff]
    %v75 = vld [vmem:[%s1 + $0x38] sm:$0xff]
    %v76 = vadd.f32 %v60, %v68
    %v77 = vadd.f32 %v61, %v69
    %v78 = vadd.f32 %v62, %v70
    %v79 = vadd.f32 %v63, %v71
    %v80 = vadd.f32 %v64, %v72
    %v81 = vadd.f32 %v65, %v73
    %v82 = vadd.f32 %v66, %v74
    %v83 = vadd.f32 %v67, %v75
    %v84 = vpack.c.bf16 %v78, %v76
    %v85 = vpack.c.bf16 %v79, %v77
    %v86 = vpack.c.bf16 %v82, %v80
    %v87 = vpack.c.bf16 %v83, %v81
    %v88 = vpack.c.bf16 %v62, %v60
    %v89 = vpack.c.bf16 %v63, %v61
    %v90 = vpack.c.bf16 %v66, %v64
    %v91 = vpack.c.bf16 %v67, %v65
    %v92 = vld [vmem:[%s2] sm:$0xff]
    %v93 = vld [vmem:[%s2 + $0x8] sm:$0xff]
    %v94 = vld [vmem:[%s2 + $0x10] sm:$0xff]
    %v95 = vld [vmem:[%s2 + $0x18] sm:$0xff]
    %v96 = vld [vmem:[%s2 + $0x20] sm:$0xff]
    %v97 = vld [vmem:[%s2 + $0x28] sm:$0xff]
    %v98 = vld [vmem:[%s2 + $0x30] sm:$0xff]
    %v99 = vld [vmem:[%s2 + $0x38] sm:$0xff]
    %v100 = vld [vmem:[%s2 + $0x40] sm:$0xff]
    %v101 = vld [vmem:[%s2 + $0x48] sm:$0xff]
    %v102 = vld [vmem:[%s2 + $0x50] sm:$0xff]
    %v103 = vld [vmem:[%s2 + $0x58] sm:$0xff]
    %v104 = vld [vmem:[%s2 + $0x60] sm:$0xff]
    %v105 = vld [vmem:[%s2 + $0x68] sm:$0xff]
    %v106 = vld [vmem:[%s2 + $0x70] sm:$0xff]
    %v107 = vld [vmem:[%s2 + $0x78] sm:$0xff]
    %v108 = vld [vmem:[%s2 + $0x80] sm:$0xff]
    %v109 = vld [vmem:[%s2 + $0x88] sm:$0xff]
    %v110 = vld [vmem:[%s2 + $0x90] sm:$0xff]
    %v111 = vld [vmem:[%s2 + $0x98] sm:$0xff]
    %v112 = vld [vmem:[%s2 + $0xa0] sm:$0xff]
    %v113 = vld [vmem:[%s2 + $0xa8] sm:$0xff]
    %v114 = vld [vmem:[%s2 + $0xb0] sm:$0xff]
    %v115 = vld [vmem:[%s2 + $0xb8] sm:$0xff]
    %v116 = vld [vmem:[%s2 + $0xc0] sm:$0xff]
    %v117 = vld [vmem:[%s2 + $0xc8] sm:$0xff]
    %v118 = vld [vmem:[%s2 + $0xd0] sm:$0xff]
    %v119 = vld [vmem:[%s2 + $0xd8] sm:$0xff]
    %v120 = vld [vmem:[%s2 + $0xe0] sm:$0xff]
    %v121 = vld [vmem:[%s2 + $0xe8] sm:$0xff]
    %v122 = vld [vmem:[%s2 + $0xf0] sm:$0xff]
    %v123 = vld [vmem:[%s2 + $0xf8] sm:$0xff]
    %v124 = vld [vmem:[%s3] sm:$0x3]
    %v126 = vlaneseq
    %v127 = vshrl.u32 %v126, 7
    %v128 = vsub.s32 0, %v127
    %v129 = vrot.slane %v124, %v128
    %v130 = vlaneseq
    %v131 = vshrl.u32 %v130, 7
    %v132 = vsub.s32 1, %v131
    %v133 = vrot.slane %v124, %v132
    %v168 = vunpack.c.l.b16 %v92
    %v169 = vunpack.c.h.b16 %v92
    %v170 = vunpack.c.l.b16 %v93
    %v171 = vunpack.c.h.b16 %v93
    %v172 = vunpack.c.l.b16 %v94
    %v173 = vunpack.c.h.b16 %v94
    %v174 = vunpack.c.l.b16 %v95
    %v175 = vunpack.c.h.b16 %v95
    %v176 = vunpack.c.l.b16 %v96
    %v177 = vunpack.c.h.b16 %v96
    %v178 = vunpack.c.l.b16 %v97
    %v179 = vunpack.c.h.b16 %v97
    %v180 = vunpack.c.l.b16 %v98
    %v181 = vunpack.c.h.b16 %v98
    %v182 = vunpack.c.l.b16 %v99
    %v183 = vunpack.c.h.b16 %v99
    %v184 = vunpack.c.l.b16 %v100
    %v185 = vunpack.c.h.b16 %v100
    %v186 = vunpack.c.l.b16 %v101
    %v187 = vunpack.c.h.b16 %v101
    %v188 = vunpack.c.l.b16 %v102
    %v189 = vunpack.c.h.b16 %v102
    %v190 = vunpack.c.l.b16 %v103
    %v191 = vunpack.c.h.b16 %v103
    %v192 = vunpack.c.l.b16 %v104
    %v193 = vunpack.c.h.b16 %v104
    %v194 = vunpack.c.l.b16 %v105
    %v195 = vunpack.c.h.b16 %v105
    %v196 = vunpack.c.l.b16 %v106
    %v197 = vunpack.c.h.b16 %v106
    %v198 = vunpack.c.l.b16 %v107
    %v199 = vunpack.c.h.b16 %v107
    %v200 = vunpack.c.l.b16 %v108
    %v201 = vunpack.c.h.b16 %v108
    %v202 = vunpack.c.l.b16 %v109
    %v203 = vunpack.c.h.b16 %v109
    %v204 = vunpack.c.l.b16 %v110
    %v205 = vunpack.c.h.b16 %v110
    %v206 = vunpack.c.l.b16 %v111
    %v207 = vunpack.c.h.b16 %v111
    %v208 = vunpack.c.l.b16 %v112
    %v209 = vunpack.c.h.b16 %v112
    %v210 = vunpack.c.l.b16 %v113
    %v211 = vunpack.c.h.b16 %v113
    %v212 = vunpack.c.l.b16 %v114
    %v213 = vunpack.c.h.b16 %v114
    %v214 = vunpack.c.l.b16 %v115
    %v215 = vunpack.c.h.b16 %v115
    %v216 = vunpack.c.l.b16 %v116
    %v217 = vunpack.c.h.b16 %v116
    %v218 = vunpack.c.l.b16 %v117
    %v219 = vunpack.c.h.b16 %v117
    %v220 = vunpack.c.l.b16 %v118
    %v221 = vunpack.c.h.b16 %v118
    %v222 = vunpack.c.l.b16 %v119
    %v223 = vunpack.c.h.b16 %v119
    %v224 = vunpack.c.l.b16 %v120
    %v225 = vunpack.c.h.b16 %v120
    %v226 = vunpack.c.l.b16 %v121
    %v227 = vunpack.c.h.b16 %v121
    %v228 = vunpack.c.l.b16 %v122
    %v229 = vunpack.c.h.b16 %v122
    %v230 = vunpack.c.l.b16 %v123
    %v231 = vunpack.c.h.b16 %v123
    %v232 = vpack.c.b16 %v170, %v168
    %v233 = vpack.c.b16 %v171, %v169
    %v234 = vpack.c.b16 %v174, %v172
    %v235 = vpack.c.b16 %v175, %v173
    %v236 = vpack.c.b16 %v178, %v176
    %v237 = vpack.c.b16 %v179, %v177
    %v238 = vpack.c.b16 %v182, %v180
    %v239 = vpack.c.b16 %v183, %v181
    %v240 = vpack.c.b16 %v186, %v184
    %v241 = vpack.c.b16 %v187, %v185
    %v242 = vpack.c.b16 %v190, %v188
    %v243 = vpack.c.b16 %v191, %v189
    %v244 = vpack.c.b16 %v194, %v192
    %v245 = vpack.c.b16 %v195, %v193
    %v246 = vpack.c.b16 %v198, %v196
    %v247 = vpack.c.b16 %v199, %v197
    %v248 = vpack.c.b16 %v202, %v200
    %v249 = vpack.c.b16 %v203, %v201
    %v250 = vpack.c.b16 %v206, %v204
    %v251 = vpack.c.b16 %v207, %v205
    %v252 = vpack.c.b16 %v210, %v208
    %v253 = vpack.c.b16 %v211, %v209
    %v254 = vpack.c.b16 %v214, %v212
    %v255 = vpack.c.b16 %v215, %v213
    %v256 = vpack.c.b16 %v218, %v216
    %v257 = vpack.c.b16 %v219, %v217
    %v258 = vpack.c.b16 %v222, %v220
    %v259 = vpack.c.b16 %v223, %v221
    %v260 = vpack.c.b16 %v226, %v224
    %v261 = vpack.c.b16 %v227, %v225
    %v262 = vpack.c.b16 %v230, %v228
    %v263 = vpack.c.b16 %v231, %v229
    %296 = vmatprep.subr.bf16.mxu0 %v233
    %297 = vmatpush1.bf16.msra.mxu0 %v232
    %298 = vmatprep.subr.bf16.mxu0 %v235
    %299 = vmatpush1.bf16.msra.mxu0 %v234
    %300 = vmatprep.subr.bf16.mxu0 %v237
    %301 = vmatpush1.bf16.msra.mxu0 %v236
    %302 = vmatprep.subr.bf16.mxu0 %v239
    %303 = vmatpush1.bf16.msra.mxu0 %v238
    %304 = vmatprep.subr.bf16.mxu0 %v241
    %305 = vmatpush1.bf16.msra.mxu0 %v240
    %306 = vmatprep.subr.bf16.mxu0 %v243
    %307 = vmatpush1.bf16.msra.mxu0 %v242
    %308 = vmatprep.subr.bf16.mxu0 %v245
    %309 = vmatpush1.bf16.msra.mxu0 %v244
    %310 = vmatprep.subr.bf16.mxu0 %v247
    %311 = vmatpush1.bf16.msra.mxu0 %v246
    %312 = vmatprep.subr.bf16.mxu0 %v249
    %313 = vmatpush1.bf16.msra.mxu0 %v248
    %314 = vmatprep.subr.bf16.mxu0 %v251
    %315 = vmatpush1.bf16.msra.mxu0 %v250
    %316 = vmatprep.subr.bf16.mxu0 %v253
    %317 = vmatpush1.bf16.msra.mxu0 %v252
    %318 = vmatprep.subr.bf16.mxu0 %v255
    %319 = vmatpush1.bf16.msra.mxu0 %v254
    %320 = vmatprep.subr.bf16.mxu0 %v257
    %321 = vmatpush1.bf16.msra.mxu0 %v256
    %322 = vmatprep.subr.bf16.mxu0 %v259
    %323 = vmatpush1.bf16.msra.mxu0 %v258
    %324 = vmatprep.subr.bf16.mxu0 %v261
    %325 = vmatpush1.bf16.msra.mxu0 %v260
    %326 = vmatprep.subr.bf16.mxu0 %v263
    %327 = vmatpush1.bf16.msra.mxu0 %v262
    %328 = vmatprep.mubr.bf16.mxu0 %v85
    %329 = vmatmul.mubr.bf16.gmra.mrb[0].mxu0 %v84
    %v330 = vpop.f32.mrb[0].mxu0
    %v331 = vadd.f32 %v129, %v330
    %v332 = vpop.f32.mrb[0].mxu0
    %v333 = vadd.f32 %v133, %v332
    %v334 = vpop.f32.mrb[0].mxu0
    %v335 = vadd.f32 %v129, %v334
    %v336 = vpop.f32.mrb[0].mxu0
    %v337 = vadd.f32 %v133, %v336
    %338 = vmatprep.mubr.bf16.mxu0 %v87
    %339 = vmatmul.mubr.bf16.gmra.mrb[0].mxu0 %v86
    %v340 = vpop.f32.mrb[0].mxu0
    %v341 = vadd.f32 %v129, %v340
    %v342 = vpop.f32.mrb[0].mxu0
    %v343 = vadd.f32 %v133, %v342
    %v344 = vpop.f32.mrb[0].mxu0
    %v345 = vadd.f32 %v129, %v344
    %v346 = vpop.f32.mrb[0].mxu0
    %v347 = vadd.f32 %v133, %v346
    %348 = vdwg.mxu0
    %v349 = vld [vmem:[#allocation2] sm:$0xff]
    %v350 = vld [vmem:[#allocation2 + $0x8] sm:$0xff]
    %v351 = vld [vmem:[#allocation2 + $0x10] sm:$0xff]
    %v352 = vld [vmem:[#allocation2 + $0x18] sm:$0xff]
    %v353 = vld [vmem:[#allocation2 + $0x20] sm:$0xff]
    %v354 = vld [vmem:[#allocation2 + $0x28] sm:$0xff]
    %v355 = vld [vmem:[#allocation2 + $0x30] sm:$0xff]
    %v356 = vld [vmem:[#allocation2 + $0x38] sm:$0xff]
    %v357 = vld [vmem:[#allocation2 + $0x40] sm:$0xff]
    %v358 = vld [vmem:[#allocation2 + $0x48] sm:$0xff]
    %v359 = vld [vmem:[#allocation2 + $0x50] sm:$0xff]
    %v360 = vld [vmem:[#allocation2 + $0x58] sm:$0xff]
    %v361 = vld [vmem:[#allocation2 + $0x60] sm:$0xff]
    %v362 = vld [vmem:[#allocation2 + $0x68] sm:$0xff]
    %v363 = vld [vmem:[#allocation2 + $0x70] sm:$0xff]
    %v364 = vld [vmem:[#allocation2 + $0x78] sm:$0xff]
    %v365 = vld [vmem:[#allocation2 + $0x80] sm:$0xff]
    %v366 = vld [vmem:[#allocation2 + $0x88] sm:$0xff]
    %v367 = vld [vmem:[#allocation2 + $0x90] sm:$0xff]
    %v368 = vld [vmem:[#allocation2 + $0x98] sm:$0xff]
    %v369 = vld [vmem:[#allocation2 + $0xa0] sm:$0xff]
    %v370 = vld [vmem:[#allocation2 + $0xa8] sm:$0xff]
    %v371 = vld [vmem:[#allocation2 + $0xb0] sm:$0xff]
    %v372 = vld [vmem:[#allocation2 + $0xb8] sm:$0xff]
    %v373 = vld [vmem:[#allocation2 + $0xc0] sm:$0xff]
    %v374 = vld [vmem:[#allocation2 + $0xc8] sm:$0xff]
    %v375 = vld [vmem:[#allocation2 + $0xd0] sm:$0xff]
    %v376 = vld [vmem:[#allocation2 + $0xd8] sm:$0xff]
    %v377 = vld [vmem:[#allocation2 + $0xe0] sm:$0xff]
    %v378 = vld [vmem:[#allocation2 + $0xe8] sm:$0xff]
    %v379 = vld [vmem:[#allocation2 + $0xf0] sm:$0xff]
    %v380 = vld [vmem:[#allocation2 + $0xf8] sm:$0xff]
    %v381 = vld [vmem:[%s5] sm:$0x3]
    %v383 = vlaneseq
    %v384 = vshrl.u32 %v383, 7
    %v385 = vsub.s32 0, %v384
    %v386 = vrot.slane %v381, %v385
    %v387 = vlaneseq
    %v388 = vshrl.u32 %v387, 7
    %v389 = vsub.s32 1, %v388
    %v390 = vrot.slane %v381, %v389
    %v425 = vunpack.c.l.b16 %v349
    %v426 = vunpack.c.h.b16 %v349
    %v427 = vunpack.c.l.b16 %v350
    %v428 = vunpack.c.h.b16 %v350
    %v429 = vunpack.c.l.b16 %v351
    %v430 = vunpack.c.h.b16 %v351
    %v431 = vunpack.c.l.b16 %v352
    %v432 = vunpack.c.h.b16 %v352
    %v433 = vunpack.c.l.b16 %v353
    %v434 = vunpack.c.h.b16 %v353
    %v435 = vunpack.c.l.b16 %v354
    %v436 = vunpack.c.h.b16 %v354
    %v437 = vunpack.c.l.b16 %v355
    %v438 = vunpack.c.h.b16 %v355
    %v439 = vunpack.c.l.b16 %v356
    %v440 = vunpack.c.h.b16 %v356
    %v441 = vunpack.c.l.b16 %v357
    %v442 = vunpack.c.h.b16 %v357
    %v443 = vunpack.c.l.b16 %v358
    %v444 = vunpack.c.h.b16 %v358
    %v445 = vunpack.c.l.b16 %v359
    %v446 = vunpack.c.h.b16 %v359
    %v447 = vunpack.c.l.b16 %v360
    %v448 = vunpack.c.h.b16 %v360
    %v449 = vunpack.c.l.b16 %v361
    %v450 = vunpack.c.h.b16 %v361
    %v451 = vunpack.c.l.b16 %v362
    %v452 = vunpack.c.h.b16 %v362
    %v453 = vunpack.c.l.b16 %v363
    %v454 = vunpack.c.h.b16 %v363
    %v455 = vunpack.c.l.b16 %v364
    %v456 = vunpack.c.h.b16 %v364
    %v457 = vunpack.c.l.b16 %v365
    %v458 = vunpack.c.h.b16 %v365
    %v459 = vunpack.c.l.b16 %v366
    %v460 = vunpack.c.h.b16 %v366
    %v461 = vunpack.c.l.b16 %v367
    %v462 = vunpack.c.h.b16 %v367
    %v463 = vunpack.c.l.b16 %v368
    %v464 = vunpack.c.h.b16 %v368
    %v465 = vunpack.c.l.b16 %v369
    %v466 = vunpack.c.h.b16 %v369
    %v467 = vunpack.c.l.b16 %v370
    %v468 = vunpack.c.h.b16 %v370
    %v469 = vunpack.c.l.b16 %v371
    %v470 = vunpack.c.h.b16 %v371
    %v471 = vunpack.c.l.b16 %v372
    %v472 = vunpack.c.h.b16 %v372
    %v473 = vunpack.c.l.b16 %v373
    %v474 = vunpack.c.h.b16 %v373
    %v475 = vunpack.c.l.b16 %v374
    %v476 = vunpack.c.h.b16 %v374
    %v477 = vunpack.c.l.b16 %v375
    %v478 = vunpack.c.h.b16 %v375
    %v479 = vunpack.c.l.b16 %v376
    %v480 = vunpack.c.h.b16 %v376
    %v481 = vunpack.c.l.b16 %v377
    %v482 = vunpack.c.h.b16 %v377
    %v483 = vunpack.c.l.b16 %v378
    %v484 = vunpack.c.h.b16 %v378
    %v485 = vunpack.c.l.b16 %v379
    %v486 = vunpack.c.h.b16 %v379
    %v487 = vunpack.c.l.b16 %v380
    %v488 = vunpack.c.h.b16 %v380
    %v489 = vpack.c.b16 %v427, %v425
    %v490 = vpack.c.b16 %v428, %v426
    %v491 = vpack.c.b16 %v431, %v429
    %v492 = vpack.c.b16 %v432, %v430
    %v493 = vpack.c.b16 %v435, %v433
    %v494 = vpack.c.b16 %v436, %v434
    %v495 = vpack.c.b16 %v439, %v437
    %v496 = vpack.c.b16 %v440, %v438
    %v497 = vpack.c.b16 %v443, %v441
    %v498 = vpack.c.b16 %v444, %v442
    %v499 = vpack.c.b16 %v447, %v445
    %v500 = vpack.c.b16 %v448, %v446
    %v501 = vpack.c.b16 %v451, %v449
    %v502 = vpack.c.b16 %v452, %v450
    %v503 = vpack.c.b16 %v455, %v453
    %v504 = vpack.c.b16 %v456, %v454
    %v505 = vpack.c.b16 %v459, %v457
    %v506 = vpack.c.b16 %v460, %v458
    %v507 = vpack.c.b16 %v463, %v461
    %v508 = vpack.c.b16 %v464, %v462
    %v509 = vpack.c.b16 %v467, %v465
    %v510 = vpack.c.b16 %v468, %v466
    %v511 = vpack.c.b16 %v471, %v469
    %v512 = vpack.c.b16 %v472, %v470
    %v513 = vpack.c.b16 %v475, %v473
    %v514 = vpack.c.b16 %v476, %v474
    %v515 = vpack.c.b16 %v479, %v477
    %v516 = vpack.c.b16 %v480, %v478
    %v517 = vpack.c.b16 %v483, %v481
    %v518 = vpack.c.b16 %v484, %v482
    %v519 = vpack.c.b16 %v487, %v485
    %v520 = vpack.c.b16 %v488, %v486
    %553 = vmatprep.subr.bf16.mxu0 %v490
    %554 = vmatpush1.bf16.msra.mxu0 %v489
    %555 = vmatprep.subr.bf16.mxu0 %v492
    %556 = vmatpush1.bf16.msra.mxu0 %v491
    %557 = vmatprep.subr.bf16.mxu0 %v494
    %558 = vmatpush1.bf16.msra.mxu0 %v493
    %559 = vmatprep.subr.bf16.mxu0 %v496
    %560 = vmatpush1.bf16.msra.mxu0 %v495
    %561 = vmatprep.subr.bf16.mxu0 %v498
    %562 = vmatpush1.bf16.msra.mxu0 %v497
    %563 = vmatprep.subr.bf16.mxu0 %v500
    %564 = vmatpush1.bf16.msra.mxu0 %v499
    %565 = vmatprep.subr.bf16.mxu0 %v502
    %566 = vmatpush1.bf16.msra.mxu0 %v501
    %567 = vmatprep.subr.bf16.mxu0 %v504
    %568 = vmatpush1.bf16.msra.mxu0 %v503
    %569 = vmatprep.subr.bf16.mxu0 %v506
    %570 = vmatpush1.bf16.msra.mxu0 %v505
    %571 = vmatprep.subr.bf16.mxu0 %v508
    %572 = vmatpush1.bf16.msra.mxu0 %v507
    %573 = vmatprep.subr.bf16.mxu0 %v510
    %574 = vmatpush1.bf16.msra.mxu0 %v509
    %575 = vmatprep.subr.bf16.mxu0 %v512
    %576 = vmatpush1.bf16.msra.mxu0 %v511
    %577 = vmatprep.subr.bf16.mxu0 %v514
    %578 = vmatpush1.bf16.msra.mxu0 %v513
    %579 = vmatprep.subr.bf16.mxu0 %v516
    %580 = vmatpush1.bf16.msra.mxu0 %v515
    %581 = vmatprep.subr.bf16.mxu0 %v518
    %582 = vmatpush1.bf16.msra.mxu0 %v517
    %583 = vmatprep.subr.bf16.mxu0 %v520
    %584 = vmatpush1.bf16.msra.mxu0 %v519
    %585 = vmatprep.mubr.bf16.mxu0 %v85
    %586 = vmatmul.mubr.bf16.gmra.mrb[0].mxu0 %v84
    %v587 = vpop.f32.mrb[0].mxu0
    %v588 = vadd.f32 %v386, %v587
    %v589 = vpop.f32.mrb[0].mxu0
    %v590 = vadd.f32 %v390, %v589
    %v591 = vpop.f32.mrb[0].mxu0
    %v592 = vadd.f32 %v386, %v591
    %v593 = vpop.f32.mrb[0].mxu0
    %v594 = vadd.f32 %v390, %v593
    %595 = vmatprep.mubr.bf16.mxu0 %v87
    %596 = vmatmul.mubr.bf16.gmra.mrb[0].mxu0 %v86
    %v597 = vpop.f32.mrb[0].mxu0
    %v598 = vadd.f32 %v386, %v597
    %v599 = vpop.f32.mrb[0].mxu0
    %v600 = vadd.f32 %v390, %v599
    %v601 = vpop.f32.mrb[0].mxu0
    %v602 = vadd.f32 %v386, %v601
    %v603 = vpop.f32.mrb[0].mxu0
    %v604 = vadd.f32 %v390, %v603
    %605 = vdwg.mxu0
    %v606 = vld [vmem:[#allocation4] sm:$0xff]
    %v607 = vld [vmem:[#allocation4 + $0x8] sm:$0xff]
    %v608 = vld [vmem:[#allocation4 + $0x10] sm:$0xff]
    %v609 = vld [vmem:[#allocation4 + $0x18] sm:$0xff]
    %v610 = vld [vmem:[#allocation4 + $0x20] sm:$0xff]
    %v611 = vld [vmem:[#allocation4 + $0x28] sm:$0xff]
    %v612 = vld [vmem:[#allocation4 + $0x30] sm:$0xff]
    %v613 = vld [vmem:[#allocation4 + $0x38] sm:$0xff]
    %v614 = vld [vmem:[#allocation4 + $0x40] sm:$0xff]
    %v615 = vld [vmem:[#allocation4 + $0x48] sm:$0xff]
    %v616 = vld [vmem:[#allocation4 + $0x50] sm:$0xff]
    %v617 = vld [vmem:[#allocation4 + $0x58] sm:$0xff]
    %v618 = vld [vmem:[#allocation4 + $0x60] sm:$0xff]
    %v619 = vld [vmem:[#allocation4 + $0x68] sm:$0xff]
    %v620 = vld [vmem:[#allocation4 + $0x70] sm:$0xff]
    %v621 = vld [vmem:[#allocation4 + $0x78] sm:$0xff]
    %v622 = vld [vmem:[#allocation4 + $0x80] sm:$0xff]
    %v623 = vld [vmem:[#allocation4 + $0x88] sm:$0xff]
    %v624 = vld [vmem:[#allocation4 + $0x90] sm:$0xff]
    %v625 = vld [vmem:[#allocation4 + $0x98] sm:$0xff]
    %v626 = vld [vmem:[#allocation4 + $0xa0] sm:$0xff]
    %v627 = vld [vmem:[#allocation4 + $0xa8] sm:$0xff]
    %v628 = vld [vmem:[#allocation4 + $0xb0] sm:$0xff]
    %v629 = vld [vmem:[#allocation4 + $0xb8] sm:$0xff]
    %v630 = vld [vmem:[#allocation4 + $0xc0] sm:$0xff]
    %v631 = vld [vmem:[#allocation4 + $0xc8] sm:$0xff]
    %v632 = vld [vmem:[#allocation4 + $0xd0] sm:$0xff]
    %v633 = vld [vmem:[#allocation4 + $0xd8] sm:$0xff]
    %v634 = vld [vmem:[#allocation4 + $0xe0] sm:$0xff]
    %v635 = vld [vmem:[#allocation4 + $0xe8] sm:$0xff]
    %v636 = vld [vmem:[#allocation4 + $0xf0] sm:$0xff]
    %v637 = vld [vmem:[#allocation4 + $0xf8] sm:$0xff]
    %v638 = vld [vmem:[%s7] sm:$0x3]
    %v640 = vlaneseq
    %v641 = vshrl.u32 %v640, 7
    %v642 = vsub.s32 0, %v641
    %v643 = vrot.slane %v638, %v642
    %v644 = vlaneseq
    %v645 = vshrl.u32 %v644, 7
    %v646 = vsub.s32 1, %v645
    %v647 = vrot.slane %v638, %v646
    %v682 = vunpack.c.l.b16 %v606
    %v683 = vunpack.c.h.b16 %v606
    %v684 = vunpack.c.l.b16 %v607
    %v685 = vunpack.c.h.b16 %v607
    %v686 = vunpack.c.l.b16 %v608
    %v687 = vunpack.c.h.b16 %v608
    %v688 = vunpack.c.l.b16 %v609
    %v689 = vunpack.c.h.b16 %v609
    %v690 = vunpack.c.l.b16 %v610
    %v691 = vunpack.c.h.b16 %v610
    %v692 = vunpack.c.l.b16 %v611
    %v693 = vunpack.c.h.b16 %v611
    %v694 = vunpack.c.l.b16 %v612
    %v695 = vunpack.c.h.b16 %v612
    %v696 = vunpack.c.l.b16 %v613
    %v697 = vunpack.c.h.b16 %v613
    %v698 = vunpack.c.l.b16 %v614
    %v699 = vunpack.c.h.b16 %v614
    %v700 = vunpack.c.l.b16 %v615
    %v701 = vunpack.c.h.b16 %v615
    %v702 = vunpack.c.l.b16 %v616
    %v703 = vunpack.c.h.b16 %v616
    %v704 = vunpack.c.l.b16 %v617
    %v705 = vunpack.c.h.b16 %v617
    %v706 = vunpack.c.l.b16 %v618
    %v707 = vunpack.c.h.b16 %v618
    %v708 = vunpack.c.l.b16 %v619
    %v709 = vunpack.c.h.b16 %v619
    %v710 = vunpack.c.l.b16 %v620
    %v711 = vunpack.c.h.b16 %v620
    %v712 = vunpack.c.l.b16 %v621
    %v713 = vunpack.c.h.b16 %v621
    %v714 = vunpack.c.l.b16 %v622
    %v715 = vunpack.c.h.b16 %v622
    %v716 = vunpack.c.l.b16 %v623
    %v717 = vunpack.c.h.b16 %v623
    %v718 = vunpack.c.l.b16 %v624
    %v719 = vunpack.c.h.b16 %v624
    %v720 = vunpack.c.l.b16 %v625
    %v721 = vunpack.c.h.b16 %v625
    %v722 = vunpack.c.l.b16 %v626
    %v723 = vunpack.c.h.b16 %v626
    %v724 = vunpack.c.l.b16 %v627
    %v725 = vunpack.c.h.b16 %v627
    %v726 = vunpack.c.l.b16 %v628
    %v727 = vunpack.c.h.b16 %v628
    %v728 = vunpack.c.l.b16 %v629
    %v729 = vunpack.c.h.b16 %v629
    %v730 = vunpack.c.l.b16 %v630
    %v731 = vunpack.c.h.b16 %v630
    %v732 = vunpack.c.l.b16 %v631
    %v733 = vunpack.c.h.b16 %v631
    %v734 = vunpack.c.l.b16 %v632
    %v735 = vunpack.c.h.b16 %v632
    %v736 = vunpack.c.l.b16 %v633
    %v737 = vunpack.c.h.b16 %v633
    %v738 = vunpack.c.l.b16 %v634
    %v739 = vunpack.c.h.b16 %v634
    %v740 = vunpack.c.l.b16 %v635
    %v741 = vunpack.c.h.b16 %v635
    %v742 = vunpack.c.l.b16 %v636
    %v743 = vunpack.c.h.b16 %v636
    %v744 = vunpack.c.l.b16 %v637
    %v745 = vunpack.c.h.b16 %v637
    %v746 = vpack.c.b16 %v684, %v682
    %v747 = vpack.c.b16 %v685, %v683
    %v748 = vpack.c.b16 %v688, %v686
    %v749 = vpack.c.b16 %v689, %v687
    %v750 = vpack.c.b16 %v692, %v690
    %v751 = vpack.c.b16 %v693, %v691
    %v752 = vpack.c.b16 %v696, %v694
    %v753 = vpack.c.b16 %v697, %v695
    %v754 = vpack.c.b16 %v700, %v698
    %v755 = vpack.c.b16 %v701, %v699
    %v756 = vpack.c.b16 %v704, %v702
    %v757 = vpack.c.b16 %v705, %v703
    %v758 = vpack.c.b16 %v708, %v706
    %v759 = vpack.c.b16 %v709, %v707
    %v760 = vpack.c.b16 %v712, %v710
    %v761 = vpack.c.b16 %v713, %v711
    %v762 = vpack.c.b16 %v716, %v714
    %v763 = vpack.c.b16 %v717, %v715
    %v764 = vpack.c.b16 %v720, %v718
    %v765 = vpack.c.b16 %v721, %v719
    %v766 = vpack.c.b16 %v724, %v722
    %v767 = vpack.c.b16 %v725, %v723
    %v768 = vpack.c.b16 %v728, %v726
    %v769 = vpack.c.b16 %v729, %v727
    %v770 = vpack.c.b16 %v732, %v730
    %v771 = vpack.c.b16 %v733, %v731
    %v772 = vpack.c.b16 %v736, %v734
    %v773 = vpack.c.b16 %v737, %v735
    %v774 = vpack.c.b16 %v740, %v738
    %v775 = vpack.c.b16 %v741, %v739
    %v776 = vpack.c.b16 %v744, %v742
    %v777 = vpack.c.b16 %v745, %v743
    %810 = vmatprep.subr.bf16.mxu0 %v747
    %811 = vmatpush1.bf16.msra.mxu0 %v746
    %812 = vmatprep.subr.bf16.mxu0 %v749
    %813 = vmatpush1.bf16.msra.mxu0 %v748
    %814 = vmatprep.subr.bf16.mxu0 %v751
    %815 = vmatpush1.bf16.msra.mxu0 %v750
    %816 = vmatprep.subr.bf16.mxu0 %v753
    %817 = vmatpush1.bf16.msra.mxu0 %v752
    %818 = vmatprep.subr.bf16.mxu0 %v755
    %819 = vmatpush1.bf16.msra.mxu0 %v754
    %820 = vmatprep.subr.bf16.mxu0 %v757
    %821 = vmatpush1.bf16.msra.mxu0 %v756
    %822 = vmatprep.subr.bf16.mxu0 %v759
    %823 = vmatpush1.bf16.msra.mxu0 %v758
    %824 = vmatprep.subr.bf16.mxu0 %v761
    %825 = vmatpush1.bf16.msra.mxu0 %v760
    %826 = vmatprep.subr.bf16.mxu0 %v763
    %827 = vmatpush1.bf16.msra.mxu0 %v762
    %828 = vmatprep.subr.bf16.mxu0 %v765
    %829 = vmatpush1.bf16.msra.mxu0 %v764
    %830 = vmatprep.subr.bf16.mxu0 %v767
    %831 = vmatpush1.bf16.msra.mxu0 %v766
    %832 = vmatprep.subr.bf16.mxu0 %v769
    %833 = vmatpush1.bf16.msra.mxu0 %v768
    %834 = vmatprep.subr.bf16.mxu0 %v771
    %835 = vmatpush1.bf16.msra.mxu0 %v770
    %836 = vmatprep.subr.bf16.mxu0 %v773
    %837 = vmatpush1.bf16.msra.mxu0 %v772
    %838 = vmatprep.subr.bf16.mxu0 %v775
    %839 = vmatpush1.bf16.msra.mxu0 %v774
    %840 = vmatprep.subr.bf16.mxu0 %v777
    %841 = vmatpush1.bf16.msra.mxu0 %v776
    %842 = vmatprep.mubr.bf16.mxu0 %v89
    %843 = vmatmul.mubr.bf16.gmra.mrb[0].mxu0 %v88
    %v844 = vpop.f32.mrb[0].mxu0
    %v845 = vadd.f32 %v643, %v844
    %v846 = vpop.f32.mrb[0].mxu0
    %v847 = vadd.f32 %v647, %v846
    %v848 = vpop.f32.mrb[0].mxu0
    %v849 = vadd.f32 %v643, %v848
    %v850 = vpop.f32.mrb[0].mxu0
    %v851 = vadd.f32 %v647, %v850
    %852 = vmatprep.mubr.bf16.mxu0 %v91
    %853 = vmatmul.mubr.bf16.gmra.mrb[0].mxu0 %v90
    %v854 = vpop.f32.mrb[0].mxu0
    %v855 = vadd.f32 %v643, %v854
    %v856 = vpop.f32.mrb[0].mxu0
    %v857 = vadd.f32 %v647, %v856
    %v858 = vpop.f32.mrb[0].mxu0
    %v859 = vadd.f32 %v643, %v858
    %v860 = vpop.f32.mrb[0].mxu0
    %v861 = vadd.f32 %v647, %v860
    %862 = vdwg.mxu0
    %v863 = vpack.c.bf16 %v335, %v331
    %v864 = vpack.c.bf16 %v337, %v333
    %v865 = vpack.c.bf16 %v345, %v341
    %v866 = vpack.c.bf16 %v347, %v343
    %v871 = vunpack.c.l.b16 %v863
    %v872 = vunpack.c.l.b16 %v864
    %v873 = vunpack.c.h.b16 %v863
    %v874 = vunpack.c.h.b16 %v864
    %v875 = vunpack.c.l.b16 %v865
    %v876 = vunpack.c.l.b16 %v866
    %v877 = vunpack.c.h.b16 %v865
    %v878 = vunpack.c.h.b16 %v866
    %v879 = vpack.c.b16 %v872, %v871
    %v880 = vpack.c.b16 %v874, %v873
    %v881 = vpack.c.b16 %v876, %v875
    %v882 = vpack.c.b16 %v878, %v877
    %887 = vst [vmem:[%s8] sm:$0xff] %v879
    %888 = vst [vmem:[%s8 + $0x8] sm:$0xff] %v880
    %889 = vst [vmem:[%s8 + $0x10] sm:$0xff] %v881
    %890 = vst [vmem:[%s8 + $0x18] sm:$0xff] %v882
    %v891 = vpack.c.bf16 %v592, %v588
    %v892 = vpack.c.bf16 %v594, %v590
    %v893 = vpack.c.bf16 %v602, %v598
    %v894 = vpack.c.bf16 %v604, %v600
    %v899 = vunpack.c.l.b16 %v891
    %v900 = vunpack.c.l.b16 %v892
    %v901 = vunpack.c.h.b16 %v891
    %v902 = vunpack.c.h.b16 %v892
    %v903 = vunpack.c.l.b16 %v893
    %v904 = vunpack.c.l.b16 %v894
    %v905 = vunpack.c.h.b16 %v893
    %v906 = vunpack.c.h.b16 %v894
    %v907 = vpack.c.b16 %v900, %v899
    %v908 = vpack.c.b16 %v902, %v901
    %v909 = vpack.c.b16 %v904, %v903
    %v910 = vpack.c.b16 %v906, %v905
    %915 = vst [vmem:[%s9] sm:$0xff] %v907
    %916 = vst [vmem:[%s9 + $0x8] sm:$0xff] %v908
    %917 = vst [vmem:[%s9 + $0x10] sm:$0xff] %v909
    %918 = vst [vmem:[%s9 + $0x18] sm:$0xff] %v910
    %v919 = vpack.c.bf16 %v849, %v845
    %v920 = vpack.c.bf16 %v851, %v847
    %v921 = vpack.c.bf16 %v859, %v855
    %v922 = vpack.c.bf16 %v861, %v857
    %v927 = vunpack.c.l.b16 %v919
    %v928 = vunpack.c.l.b16 %v920
    %v929 = vunpack.c.h.b16 %v919
    %v930 = vunpack.c.h.b16 %v920
    %v931 = vunpack.c.l.b16 %v921
    %v932 = vunpack.c.l.b16 %v922
    %v933 = vunpack.c.h.b16 %v921
    %v934 = vunpack.c.h.b16 %v922
    %v935 = vpack.c.b16 %v928, %v927
    %v936 = vpack.c.b16 %v930, %v929
    %v937 = vpack.c.b16 %v932, %v931
    %v938 = vpack.c.b16 %v934, %v933
    %943 = vst [vmem:[%s10] sm:$0xff] %v935
    %944 = vst [vmem:[%s10 + $0x8] sm:$0xff] %v936
    %945 = vst [vmem:[%s10 + $0x10] sm:$0xff] %v937
    %946 = vst [vmem:[%s10 + $0x18] sm:$0xff] %v938
    // Predicated region
    $region42: #{transformer_forward.6} parent=1 // pred_check
      _
    $region43: #{transformer_forward.6} parent=1 // pred_check_branch
      %948 = sbr.rel (0) target = $region45
    $region44: #{transformer_forward.6} parent=1 // pred_region
      _
    $region45: #{transformer_forward.6} parent=1 // pred_fallthru
      _
    // Predicated region
    $region46: #{transformer_forward.6} parent=1 // pred_check
      _
    $region47: #{transformer_forward.6} parent=1 // pred_check_branch
      %950 = sbr.rel (0) target = $region49
    $region48: #{transformer_forward.6} parent=1 // pred_region
      _
    $region49: #{transformer_forward.6} parent=1 // pred_fallthru
      _
    // Predicated region
    $region50: #{transformer_forward.6} parent=1 // pred_check
      _
    $region51: #{transformer_forward.6} parent=1 // pred_check_branch
      %952 = sbr.rel (0) target = $region53
    $region52: #{transformer_forward.6} parent=1 // pred_region
      _
    $region53: #{transformer_forward.6} parent=1 // pred_fallthru
      _
    // Predicated region
    $region54: #{transformer_forward.6} parent=1 // pred_check
      _
    $region55: #{transformer_forward.6} parent=1 // pred_check_branch
      %954 = sbr.rel (0) target = $region57
    $region56: #{transformer_forward.6} parent=1 // pred_region
      _
    $region57: #{transformer_forward.6} parent=1 // pred_fallthru
      _
    // Predicated region
    $region58: #{transformer_forward.6} parent=1 // pred_check
      _
    $region59: #{transformer_forward.6} parent=1 // pred_check_branch
      %956 = sbr.rel (0) target = $region61
    $region60: #{transformer_forward.6} parent=1 // pred_region
      _
    $region61: #{transformer_forward.6} parent=1 // pred_fallthru
      _
    // Predicated region
    $region62: #{transformer_forward.6} parent=1 // pred_check
      _
    $region63: #{transformer_forward.6} parent=1 // pred_check_branch
      %958 = sbr.rel (0) target = $region65
    $region64: #{transformer_forward.6} parent=1 // pred_region
      _
    $region65: #{transformer_forward.6} parent=1 // pred_fallthru
      _
    %959 = vsyncpa [#allocation3], 1
    %960 = vsyncpa [#allocation5], 1

// kernel: transformer_forward.8
$region0: #{transformer_forward.8}
  #allocation0 [shape = 'u32[]', space=smem, size = 0x4, offset = 0x4, fixed_abs, tag = 'smem constant byte address 0x4 - core index']
  #allocation1 [shape = 'u32[144,128]{1,0:T(1,128)}', space=vmem, size = 0x12000, scoped, tag = 'internal scratch']
  %s0 = inlined_call_operand.vmem [shape: f32[32,256], index: 0, kind: input, shape index: {}]
  %s1 = inlined_call_operand.vmem [shape: bf16[32,256], index: 1, kind: input, shape index: {}]
  %s2 = inlined_call_operand.hbm [shape: bf16[256,256], index: 2, kind: input, shape index: {}]
  %s3 = inlined_call_operand.vmem [shape: f32[1,256], index: 3, kind: input, shape index: {}]
  %s4 = inlined_call_operand.vmem [shape: bf16[256,512], index: 4, kind: input, shape index: {}]
  %s5 = inlined_call_operand.vmem [shape: f32[1,512], index: 5, kind: input, shape index: {}]
  %s6 = inlined_call_operand.vmem [shape: bf16[512,256], index: 6, kind: input, shape index: {}]
  %s7 = inlined_call_operand.vmem [shape: f32[1,256], index: 7, kind: input, shape index: {}]
  %s8 = inlined_call_operand.vmem [shape: f32[1,256], index: 8, kind: input, shape index: {}]
  %s9 = inlined_call_operand.vmem [shape: f32[1,256], index: 9, kind: input, shape index: {}]
  %s10 = inlined_call_operand.vmem [shape: f32[1,256], index: 10, kind: input, shape index: {}]
  %s11 = inlined_call_operand.vmem [shape: f32[1,256], index: 11, kind: input, shape index: {}]
  %s12 = inlined_call_operand.vmem [shape: f32[32,256], index: 12, kind: output, shape index: {}]
  %s13 = sld [smem:[#allocation0]]
  $region62: #{transformer_forward.8} parent=0
    _
  %s15 = ssub.s32 1, %s13
  %s16 = scalar_select 0, %s15, %s13
  $region1: #{transformer_forward.8} parent=0
    #allocation2 [shape = 'u8[131072]{0}', space=vmem, size = 0x20000, scoped, tag = 'input window, operand 2, single buffered']
    #allocation3 [shape = 's32[1]{0}', space=sflag, size = 0x4, scoped, tag = 'scoped memory for transformer_forward.8']
    %17 = vsyncpa [#allocation3], 0
    // Predicated region
    $region2: #{transformer_forward.8} parent=1 // pred_check
      _
    $region3: #{transformer_forward.8} parent=1 // pred_check_branch
      %19 = sbr.rel (0) target = $region5
    $region4: #{transformer_forward.8} parent=1 // pred_region
      _
    $region5: #{transformer_forward.8} parent=1 // pred_fallthru
      _
    // Predicated region
    $region6: #{transformer_forward.8} parent=1 // pred_check
      _
    $region7: #{transformer_forward.8} parent=1 // pred_check_branch
      %21 = sbr.rel (0) target = $region9
    $region8: #{transformer_forward.8} parent=1 // pred_region
      _
    $region9: #{transformer_forward.8} parent=1 // pred_fallthru
      _
    // Predicated region
    $region10: #{transformer_forward.8} parent=1 // pred_check
      _
    $region11: #{transformer_forward.8} parent=1 // pred_check_branch
      %23 = sbr.rel (0) target = $region13
    $region12: #{transformer_forward.8} parent=1 // pred_region
      %s25 = ssub.s32 4096, 4096
      %26 = vsyncadd [#allocation3], %s25
      %s27 = sshll.u32 [#allocation2], 4
      %s28 = int_to_ptr.vmem [resolvable:$true] %s27
      %33 = dma.hbm_to_vmem [thread:$0]  %s2, 4096, %s28, [#allocation3], 128, 128, 8
    $region13: #{transformer_forward.8} parent=1 // pred_fallthru
      _
    // Predicated region
    $region14: #{transformer_forward.8} parent=1 // pred_check
      _
    $region15: #{transformer_forward.8} parent=1 // pred_check_branch
      %35 = sbr.rel (0) target = $region17
    $region16: #{transformer_forward.8} parent=1 // pred_region
      _
    $region17: #{transformer_forward.8} parent=1 // pred_fallthru
      _
    // Predicated region
    $region18: #{transformer_forward.8} parent=1 // pred_check
      _
    $region19: #{transformer_forward.8} parent=1 // pred_check_branch
      %37 = sbr.rel (0) target = $region21
    $region20: #{transformer_forward.8} parent=1 // pred_region
      _
    $region21: #{transformer_forward.8} parent=1 // pred_fallthru
      _
    // Predicated region
    $region22: #{transformer_forward.8} parent=1 // pred_check
      _
    $region23: #{transformer_forward.8} parent=1 // pred_check_branch
      %39 = sbr.rel (0) target = $region25
    $region24: #{transformer_forward.8} parent=1 // pred_region
      _
    $region25: #{transformer_forward.8} parent=1 // pred_fallthru
      _
    // Predicated region
    $region26: #{transformer_forward.8} parent=1 // pred_check
      _
    $region27: #{transformer_forward.8} parent=1 // pred_check_branch
      %41 = sbr.rel (0) target = $region29
    $region28: #{transformer_forward.8} parent=1 // pred_region
      _
    $region29: #{transformer_forward.8} parent=1 // pred_fallthru
      _
    // Predicated region
    $region30: #{transformer_forward.8} parent=1 // pred_check
      _
    $region31: #{transformer_forward.8} parent=1 // pred_check_branch
      %43 = sbr.rel (0) target = $region33
    $region32: #{transformer_forward.8} parent=1 // pred_region
      _
    $region33: #{transformer_forward.8} parent=1 // pred_fallthru
      _
    // Predicated region
    $region34: #{transformer_forward.8} parent=1 // pred_check
      _
    $region35: #{transformer_forward.8} parent=1 // pred_check_branch
      %45 = sbr.rel (0) target = $region37
    $region36: #{transformer_forward.8} parent=1 // pred_region
      _
    $region37: #{transformer_forward.8} parent=1 // pred_fallthru
      _
    // Predicated region
    $region38: #{transformer_forward.8} parent=1 // pred_check
      _
    $region39: #{transformer_forward.8} parent=1 // pred_check_branch
      %47 = sbr.rel (0) target = $region41
    $region40: #{transformer_forward.8} parent=1 // pred_region
      _
    $region41: #{transformer_forward.8} parent=1 // pred_fallthru
      _
    // Predicated region
    $region42: #{transformer_forward.8} parent=1 // pred_check
      _
    $region43: #{transformer_forward.8} parent=1 // pred_check_branch
      %49 = sbr.rel (0) target = $region45
    $region44: #{transformer_forward.8} parent=1 // pred_region
      _
    $region45: #{transformer_forward.8} parent=1 // pred_fallthru
      _
    // Predicated region
    $region46: #{transformer_forward.8} parent=1 // pred_check
      _
    $region47: #{transformer_forward.8} parent=1 // pred_check_branch
      %51 = sbr.rel (0) target = $region49
    $region48: #{transformer_forward.8} parent=1 // pred_region
      _
    $region49: #{transformer_forward.8} parent=1 // pred_fallthru
      _
    // Predicated region
    $region50: #{transformer_forward.8} parent=1 // pred_check
      _
    $region51: #{transformer_forward.8} parent=1 // pred_check_branch
      %53 = sbr.rel (0) target = $region53
    $region52: #{transformer_forward.8} parent=1 // pred_region
      %54 = dma.done [#allocation3], 4096
    $region53: #{transformer_forward.8} parent=1 // pred_fallthru
      _
    %v55 = vld [vmem:[%s0] sm:$0xff]
    %v56 = vld [vmem:[%s0 + $0x8] sm:$0xff]
    %v57 = vld [vmem:[%s0 + $0x10] sm:$0xff]
    %v58 = vld [vmem:[%s0 + $0x18] sm:$0xff]
    %v59 = vld [vmem:[%s0 + $0x20] sm:$0xff]
    %v60 = vld [vmem:[%s0 + $0x28] sm:$0xff]
    %v61 = vld [vmem:[%s0 + $0x30] sm:$0xff]
    %v62 = vld [vmem:[%s0 + $0x38] sm:$0xff]
    %v63 = vld [vmem:[%s1] sm:$0xff]
    %v64 = vld [vmem:[%s1 + $0x8] sm:$0xff]
    %v65 = vld [vmem:[%s1 + $0x10] sm:$0xff]
    %v66 = vld [vmem:[%s1 + $0x18] sm:$0xff]
    %v67 = vld [vmem:[#allocation2] sm:$0xff]
    %v68 = vld [vmem:[#allocation2 + $0x8] sm:$0xff]
    %v69 = vld [vmem:[#allocation2 + $0x10] sm:$0xff]
    %v70 = vld [vmem:[#allocation2 + $0x18] sm:$0xff]
    %v71 = vld [vmem:[#allocation2 + $0x20] sm:$0xff]
    %v72 = vld [vmem:[#allocation2 + $0x28] sm:$0xff]
    %v73 = vld [vmem:[#allocation2 + $0x30] sm:$0xff]
    %v74 = vld [vmem:[#allocation2 + $0x38] sm:$0xff]
    %v75 = vld [vmem:[#allocation2 + $0x40] sm:$0xff]
    %v76 = vld [vmem:[#allocation2 + $0x48] sm:$0xff]
    %v77 = vld [vmem:[#allocation2 + $0x50] sm:$0xff]
    %v78 = vld [vmem:[#allocation2 + $0x58] sm:$0xff]
    %v79 = vld [vmem:[#allocation2 + $0x60] sm:$0xff]
    %v80 = vld [vmem:[#allocation2 + $0x68] sm:$0xff]
    %v81 = vld [vmem:[#allocation2 + $0x70] sm:$0xff]
    %v82 = vld [vmem:[#allocation2 + $0x78] sm:$0xff]
    %v83 = vld [vmem:[#allocation2 + $0x80] sm:$0xff]
    %v84 = vld [vmem:[#allocation2 + $0x88] sm:$0xff]
    %v85 = vld [vmem:[#allocation2 + $0x90] sm:$0xff]
    %v86 = vld [vmem:[#allocation2 + $0x98] sm:$0xff]
    %v87 = vld [vmem:[#allocation2 + $0xa0] sm:$0xff]
    %v88 = vld [vmem:[#allocation2 + $0xa8] sm:$0xff]
    %v89 = vld [vmem:[#allocation2 + $0xb0] sm:$0xff]
    %v90 = vld [vmem:[#allocation2 + $0xb8] sm:$0xff]
    %v91 = vld [vmem:[#allocation2 + $0xc0] sm:$0xff]
    %v92 = vld [vmem:[#allocation2 + $0xc8] sm:$0xff]
    %v93 = vld [vmem:[#allocation2 + $0xd0] sm:$0xff]
    %v94 = vld [vmem:[#allocation2 + $0xd8] sm:$0xff]
    %v95 = vld [vmem:[#allocation2 + $0xe0] sm:$0xff]
    %v96 = vld [vmem:[#allocation2 + $0xe8] sm:$0xff]
    %v97 = vld [vmem:[#allocation2 + $0xf0] sm:$0xff]
    %v98 = vld [vmem:[#allocation2 + $0xf8] sm:$0xff]
    %v99 = vld [vmem:[%s3] sm:$0x3]
    %v101 = vlaneseq
    %v102 = vshrl.u32 %v101, 7
    %v103 = vsub.s32 0, %v102
    %v104 = vrot.slane %v99, %v103
    %v105 = vlaneseq
    %v106 = vshrl.u32 %v105, 7
    %v107 = vsub.s32 1, %v106
    %v108 = vrot.slane %v99, %v107
    %v115 = vunpack.c.l.b16 %v63
    %v116 = vunpack.c.h.b16 %v63
    %v117 = vunpack.c.l.b16 %v64
    %v118 = vunpack.c.h.b16 %v64
    %v119 = vunpack.c.l.b16 %v65
    %v120 = vunpack.c.h.b16 %v65
    %v121 = vunpack.c.l.b16 %v66
    %v122 = vunpack.c.h.b16 %v66
    %v123 = vpack.c.b16 %v117, %v115
    %v124 = vpack.c.b16 %v118, %v116
    %v125 = vpack.c.b16 %v121, %v119
    %v126 = vpack.c.b16 %v122, %v120
    %v163 = vunpack.c.l.b16 %v67
    %v164 = vunpack.c.h.b16 %v67
    %v165 = vunpack.c.l.b16 %v68
    %v166 = vunpack.c.h.b16 %v68
    %v167 = vunpack.c.l.b16 %v69
    %v168 = vunpack.c.h.b16 %v69
    %v169 = vunpack.c.l.b16 %v70
    %v170 = vunpack.c.h.b16 %v70
    %v171 = vunpack.c.l.b16 %v71
    %v172 = vunpack.c.h.b16 %v71
    %v173 = vunpack.c.l.b16 %v72
    %v174 = vunpack.c.h.b16 %v72
    %v175 = vunpack.c.l.b16 %v73
    %v176 = vunpack.c.h.b16 %v73
    %v177 = vunpack.c.l.b16 %v74
    %v178 = vunpack.c.h.b16 %v74
    %v179 = vunpack.c.l.b16 %v75
    %v180 = vunpack.c.h.b16 %v75
    %v181 = vunpack.c.l.b16 %v76
    %v182 = vunpack.c.h.b16 %v76
    %v183 = vunpack.c.l.b16 %v77
    %v184 = vunpack.c.h.b16 %v77
    %v185 = vunpack.c.l.b16 %v78
    %v186 = vunpack.c.h.b16 %v78
    %v187 = vunpack.c.l.b16 %v79
    %v188 = vunpack.c.h.b16 %v79
    %v189 = vunpack.c.l.b16 %v80
    %v190 = vunpack.c.h.b16 %v80
    %v191 = vunpack.c.l.b16 %v81
    %v192 = vunpack.c.h.b16 %v81
    %v193 = vunpack.c.l.b16 %v82
    %v194 = vunpack.c.h.b16 %v82
    %v195 = vunpack.c.l.b16 %v83
    %v196 = vunpack.c.h.b16 %v83
    %v197 = vunpack.c.l.b16 %v84
    %v198 = vunpack.c.h.b16 %v84
    %v199 = vunpack.c.l.b16 %v85
    %v200 = vunpack.c.h.b16 %v85
    %v201 = vunpack.c.l.b16 %v86
    %v202 = vunpack.c.h.b16 %v86
    %v203 = vunpack.c.l.b16 %v87
    %v204 = vunpack.c.h.b16 %v87
    %v205 = vunpack.c.l.b16 %v88
    %v206 = vunpack.c.h.b16 %v88
    %v207 = vunpack.c.l.b16 %v89
    %v208 = vunpack.c.h.b16 %v89
    %v209 = vunpack.c.l.b16 %v90
    %v210 = vunpack.c.h.b16 %v90
    %v211 = vunpack.c.l.b16 %v91
    %v212 = vunpack.c.h.b16 %v91
    %v213 = vunpack.c.l.b16 %v92
    %v214 = vunpack.c.h.b16 %v92
    %v215 = vunpack.c.l.b16 %v93
    %v216 = vunpack.c.h.b16 %v93
    %v217 = vunpack.c.l.b16 %v94
    %v218 = vunpack.c.h.b16 %v94
    %v219 = vunpack.c.l.b16 %v95
    %v220 = vunpack.c.h.b16 %v95
    %v221 = vunpack.c.l.b16 %v96
    %v222 = vunpack.c.h.b16 %v96
    %v223 = vunpack.c.l.b16 %v97
    %v224 = vunpack.c.h.b16 %v97
    %v225 = vunpack.c.l.b16 %v98
    %v226 = vunpack.c.h.b16 %v98
    %v227 = vpack.c.b16 %v165, %v163
    %v228 = vpack.c.b16 %v166, %v164
    %v229 = vpack.c.b16 %v169, %v167
    %v230 = vpack.c.b16 %v170, %v168
    %v231 = vpack.c.b16 %v173, %v171
    %v232 = vpack.c.b16 %v174, %v172
    %v233 = vpack.c.b16 %v177, %v175
    %v234 = vpack.c.b16 %v178, %v176
    %v235 = vpack.c.b16 %v181, %v179
    %v236 = vpack.c.b16 %v182, %v180
    %v237 = vpack.c.b16 %v185, %v183
    %v238 = vpack.c.b16 %v186, %v184
    %v239 = vpack.c.b16 %v189, %v187
    %v240 = vpack.c.b16 %v190, %v188
    %v241 = vpack.c.b16 %v193, %v191
    %v242 = vpack.c.b16 %v194, %v192
    %v243 = vpack.c.b16 %v197, %v195
    %v244 = vpack.c.b16 %v198, %v196
    %v245 = vpack.c.b16 %v201, %v199
    %v246 = vpack.c.b16 %v202, %v200
    %v247 = vpack.c.b16 %v205, %v203
    %v248 = vpack.c.b16 %v206, %v204
    %v249 = vpack.c.b16 %v209, %v207
    %v250 = vpack.c.b16 %v210, %v208
    %v251 = vpack.c.b16 %v213, %v211
    %v252 = vpack.c.b16 %v214, %v212
    %v253 = vpack.c.b16 %v217, %v215
    %v254 = vpack.c.b16 %v218, %v216
    %v255 = vpack.c.b16 %v221, %v219
    %v256 = vpack.c.b16 %v222, %v220
    %v257 = vpack.c.b16 %v225, %v223
    %v258 = vpack.c.b16 %v226, %v224
    %291 = vmatprep.subr.bf16.mxu0 %v228
    %292 = vmatpush1.bf16.msra.mxu0 %v227
    %293 = vmatprep.subr.bf16.mxu0 %v230
    %294 = vmatpush1.bf16.msra.mxu0 %v229
    %295 = vmatprep.subr.bf16.mxu0 %v232
    %296 = vmatpush1.bf16.msra.mxu0 %v231
    %297 = vmatprep.subr.bf16.mxu0 %v234
    %298 = vmatpush1.bf16.msra.mxu0 %v233
    %299 = vmatprep.subr.bf16.mxu0 %v236
    %300 = vmatpush1.bf16.msra.mxu0 %v235
    %301 = vmatprep.subr.bf16.mxu0 %v238
    %302 = vmatpush1.bf16.msra.mxu0 %v237
    %303 = vmatprep.subr.bf16.mxu0 %v240
    %304 = vmatpush1.bf16.msra.mxu0 %v239
    %305 = vmatprep.subr.bf16.mxu0 %v242
    %306 = vmatpush1.bf16.msra.mxu0 %v241
    %307 = vmatprep.subr.bf16.mxu0 %v244
    %308 = vmatpush1.bf16.msra.mxu0 %v243
    %309 = vmatprep.subr.bf16.mxu0 %v246
    %310 = vmatpush1.bf16.msra.mxu0 %v245
    %311 = vmatprep.subr.bf16.mxu0 %v248
    %312 = vmatpush1.bf16.msra.mxu0 %v247
    %313 = vmatprep.subr.bf16.mxu0 %v250
    %314 = vmatpush1.bf16.msra.mxu0 %v249
    %315 = vmatprep.subr.bf16.mxu0 %v252
    %316 = vmatpush1.bf16.msra.mxu0 %v251
    %317 = vmatprep.subr.bf16.mxu0 %v254
    %318 = vmatpush1.bf16.msra.mxu0 %v253
    %319 = vmatprep.subr.bf16.mxu0 %v256
    %320 = vmatpush1.bf16.msra.mxu0 %v255
    %321 = vmatprep.subr.bf16.mxu0 %v258
    %322 = vmatpush1.bf16.msra.mxu0 %v257
    %323 = vmatprep.mubr.bf16.mxu0 %v124
    %324 = vmatmul.mubr.bf16.gmra.mrb[0].mxu0 %v123
    %v325 = vpop.f32.mrb[0].mxu0
    %v326 = vadd.f32 %v104, %v325
    %v327 = vpop.f32.mrb[0].mxu0
    %v328 = vadd.f32 %v108, %v327
    %v329 = vpop.f32.mrb[0].mxu0
    %v330 = vadd.f32 %v104, %v329
    %v331 = vpop.f32.mrb[0].mxu0
    %v332 = vadd.f32 %v108, %v331
    %333 = vmatprep.mubr.bf16.mxu0 %v126
    %334 = vmatmul.mubr.bf16.gmra.mrb[0].mxu0 %v125
    %v335 = vpop.f32.mrb[0].mxu0
    %v336 = vadd.f32 %v104, %v335
    %v337 = vpop.f32.mrb[0].mxu0
    %v338 = vadd.f32 %v108, %v337
    %v339 = vpop.f32.mrb[0].mxu0
    %v340 = vadd.f32 %v104, %v339
    %v341 = vpop.f32.mrb[0].mxu0
    %v342 = vadd.f32 %v108, %v341
    %343 = vdwg.mxu0
    %v344 = vadd.f32 %v55, %v326
    %v345 = vadd.f32 %v56, %v328
    %v346 = vadd.f32 %v57, %v330
    %v347 = vadd.f32 %v58, %v332
    %v348 = vadd.f32 %v59, %v336
    %v349 = vadd.f32 %v60, %v338
    %v350 = vadd.f32 %v61, %v340
    %v351 = vadd.f32 %v62, %v342
    %v352 = vld [vmem:[%s8] sm:$0x3]
    %v353 = vld [vmem:[%s9] sm:$0x3]
    %v354 = vadd.f32 %v344, %v345
    %355 = vadd.xlane.f32.xlu0 %v354
    %v356 = vpop.xlane.xlu0 %355
    %v357 = vadd.f32 %v346, %v347
    %358 = vadd.xlane.f32.xlu0 %v357
    %v359 = vpop.xlane.xlu0 %358
    %v360 = vadd.f32 %v348, %v349
    %361 = vadd.xlane.f32.xlu0 %v360
    %v362 = vpop.xlane.xlu0 %361
    %v363 = vadd.f32 %v350, %v351
    %364 = vadd.xlane.f32.xlu0 %v363
    %v365 = vpop.xlane.xlu0 %364
    %v366 = vrcp.pop 256.0
    %v367 = vmul.f32 %v356, %v366
    %v368 = vmul.f32 %v359, %v366
    %v369 = vmul.f32 %v362, %v366
    %v370 = vmul.f32 %v365, %v366
    %v371 = vsub.f32 %v344, %v367
    %v372 = vsub.f32 %v345, %v367
    %v373 = vsub.f32 %v346, %v368
    %v374 = vsub.f32 %v347, %v368
    %v375 = vsub.f32 %v348, %v369
    %v376 = vsub.f32 %v349, %v369
    %v377 = vsub.f32 %v350, %v370
    %v378 = vsub.f32 %v351, %v370
    %v379 = vmul.f32 %v371, %v371
    %v380 = vmul.f32 %v372, %v372
    %v381 = vmul.f32 %v373, %v373
    %v382 = vmul.f32 %v374, %v374
    %v383 = vmul.f32 %v375, %v375
    %v384 = vmul.f32 %v376, %v376
    %v385 = vmul.f32 %v377, %v377
    %v386 = vmul.f32 %v378, %v378
    %v387 = vadd.f32 %v379, %v380
    %388 = vadd.xlane.f32.xlu0 %v387
    %v389 = vpop.xlane.xlu0 %388
    %v390 = vadd.f32 %v381, %v382
    %391 = vadd.xlane.f32.xlu0 %v390
    %v392 = vpop.xlane.xlu0 %391
    %v393 = vadd.f32 %v383, %v384
    %394 = vadd.xlane.f32.xlu0 %v393
    %v395 = vpop.xlane.xlu0 %394
    %v396 = vadd.f32 %v385, %v386
    %397 = vadd.xlane.f32.xlu0 %v396
    %v398 = vpop.xlane.xlu0 %397
    %v399 = vmul.f32 %v389, %v366
    %v400 = vmul.f32 %v392, %v366
    %v401 = vmul.f32 %v395, %v366
    %v402 = vmul.f32 %v398, %v366
    %v403 = vadd.f32 %v399, 1e-05
    %v404 = vadd.f32 %v400, 1e-05
    %v405 = vadd.f32 %v401, 1e-05
    %v406 = vadd.f32 %v402, 1e-05
    %v407 = vrsqrt.pop %v403
    %v408 = vrsqrt.pop %v404
    %v409 = vrsqrt.pop %v405
    %v410 = vrsqrt.pop %v406
    %v411 = vmul.f32 %v371, %v407
    %v412 = vmul.f32 %v372, %v407
    %v413 = vmul.f32 %v373, %v408
    %v414 = vmul.f32 %v374, %v408
    %v415 = vmul.f32 %v375, %v409
    %v416 = vmul.f32 %v376, %v409
    %v417 = vmul.f32 %v377, %v410
    %v418 = vmul.f32 %v378, %v410
    %v420 = vlaneseq
    %v421 = vshrl.u32 %v420, 7
    %v422 = vsub.s32 0, %v421
    %v423 = vrot.slane %v352, %v422
    %v424 = vlaneseq
    %v425 = vshrl.u32 %v424, 7
    %v426 = vsub.s32 1, %v425
    %v427 = vrot.slane %v352, %v426
    %v430 = vmul.f32 %v411, %v423
    %v431 = vmul.f32 %v412, %v427
    %v432 = vmul.f32 %v413, %v423
    %v433 = vmul.f32 %v414, %v427
    %v434 = vmul.f32 %v415, %v423
    %v435 = vmul.f32 %v416, %v427
    %v436 = vmul.f32 %v417, %v423
    %v437 = vmul.f32 %v418, %v427
    %v439 = vlaneseq
    %v440 = vshrl.u32 %v439, 7
    %v441 = vsub.s32 0, %v440
    %v442 = vrot.slane %v353, %v441
    %v443 = vlaneseq
    %v444 = vshrl.u32 %v443, 7
    %v445 = vsub.s32 1, %v444
    %v446 = vrot.slane %v353, %v445
    %v449 = vadd.f32 %v430, %v442
    %v450 = vadd.f32 %v431, %v446
    %v451 = vadd.f32 %v432, %v442
    %v452 = vadd.f32 %v433, %v446
    %v453 = vadd.f32 %v434, %v442
    %v454 = vadd.f32 %v435, %v446
    %v455 = vadd.f32 %v436, %v442
    %v456 = vadd.f32 %v437, %v446
    %v457 = vpack.c.bf16 %v451, %v449
    %v458 = vpack.c.bf16 %v452, %v450
    %v459 = vpack.c.bf16 %v455, %v453
    %v460 = vpack.c.bf16 %v456, %v454
    %v461 = vld [vmem:[%s4] sm:$0xff]
    %v462 = vld [vmem:[%s4 + $0x8] sm:$0xff]
    %v463 = vld [vmem:[%s4 + $0x10] sm:$0xff]
    %v464 = vld [vmem:[%s4 + $0x18] sm:$0xff]
    %v465 = vld [vmem:[%s4 + $0x20] sm:$0xff]
    %v466 = vld [vmem:[%s4 + $0x28] sm:$0xff]
    %v467 = vld [vmem:[%s4 + $0x30] sm:$0xff]
    %v468 = vld [vmem:[%s4 + $0x38] sm:$0xff]
    %v469 = vld [vmem:[%s4 + $0x40] sm:$0xff]
    %v470 = vld [vmem:[%s4 + $0x48] sm:$0xff]
    %v471 = vld [vmem:[%s4 + $0x50] sm:$0xff]
    %v472 = vld [vmem:[%s4 + $0x58] sm:$0xff]
    %v473 = vld [vmem:[%s4 + $0x60] sm:$0xff]
    %v474 = vld [vmem:[%s4 + $0x68] sm:$0xff]
    %v475 = vld [vmem:[%s4 + $0x70] sm:$0xff]
    %v476 = vld [vmem:[%s4 + $0x78] sm:$0xff]
    %v477 = vld [vmem:[%s4 + $0x80] sm:$0xff]
    %v478 = vld [vmem:[%s4 + $0x88] sm:$0xff]
    %v479 = vld [vmem:[%s4 + $0x90] sm:$0xff]
    %v480 = vld [vmem:[%s4 + $0x98] sm:$0xff]
    %v481 = vld [vmem:[%s4 + $0xa0] sm:$0xff]
    %v482 = vld [vmem:[%s4 + $0xa8] sm:$0xff]
    %v483 = vld [vmem:[%s4 + $0xb0] sm:$0xff]
    %v484 = vld [vmem:[%s4 + $0xb8] sm:$0xff]
    %v485 = vld [vmem:[%s4 + $0xc0] sm:$0xff]
    %v486 = vld [vmem:[%s4 + $0xc8] sm:$0xff]
    %v487 = vld [vmem:[%s4 + $0xd0] sm:$0xff]
    %v488 = vld [vmem:[%s4 + $0xd8] sm:$0xff]
    %v489 = vld [vmem:[%s4 + $0xe0] sm:$0xff]
    %v490 = vld [vmem:[%s4 + $0xe8] sm:$0xff]
    %v491 = vld [vmem:[%s4 + $0xf0] sm:$0xff]
    %v492 = vld [vmem:[%s4 + $0xf8] sm:$0xff]
    %v493 = vld [vmem:[%s4 + $0x100] sm:$0xff]
    %v494 = vld [vmem:[%s4 + $0x108] sm:$0xff]
    %v495 = vld [vmem:[%s4 + $0x110] sm:$0xff]
    %v496 = vld [vmem:[%s4 + $0x118] sm:$0xff]
    %v497 = vld [vmem:[%s4 + $0x120] sm:$0xff]
    %v498 = vld [vmem:[%s4 + $0x128] sm:$0xff]
    %v499 = vld [vmem:[%s4 + $0x130] sm:$0xff]
    %v500 = vld [vmem:[%s4 + $0x138] sm:$0xff]
    %v501 = vld [vmem:[%s4 + $0x140] sm:$0xff]
    %v502 = vld [vmem:[%s4 + $0x148] sm:$0xff]
    %v503 = vld [vmem:[%s4 + $0x150] sm:$0xff]
    %v504 = vld [vmem:[%s4 + $0x158] sm:$0xff]
    %v505 = vld [vmem:[%s4 + $0x160] sm:$0xff]
    %v506 = vld [vmem:[%s4 + $0x168] sm:$0xff]
    %v507 = vld [vmem:[%s4 + $0x170] sm:$0xff]
    %v508 = vld [vmem:[%s4 + $0x178] sm:$0xff]
    %v509 = vld [vmem:[%s4 + $0x180] sm:$0xff]
    %v510 = vld [vmem:[%s4 + $0x188] sm:$0xff]
    %v511 = vld [vmem:[%s4 + $0x190] sm:$0xff]
    %v512 = vld [vmem:[%s4 + $0x198] sm:$0xff]
    %v513 = vld [vmem:[%s4 + $0x1a0] sm:$0xff]
    %v514 = vld [vmem:[%s4 + $0x1a8] sm:$0xff]
    %v515 = vld [vmem:[%s4 + $0x1b0] sm:$0xff]
    %v516 = vld [vmem:[%s4 + $0x1b8] sm:$0xff]
    %v517 = vld [vmem:[%s4 + $0x1c0] sm:$0xff]
    %v518 = vld [vmem:[%s4 + $0x1c8] sm:$0xff]
    %v519 = vld [vmem:[%s4 + $0x1d0] sm:$0xff]
    %v520 = vld [vmem:[%s4 + $0x1d8] sm:$0xff]
    %v521 = vld [vmem:[%s4 + $0x1e0] sm:$0xff]
    %v522 = vld [vmem:[%s4 + $0x1e8] sm:$0xff]
    %v523 = vld [vmem:[%s4 + $0x1f0] sm:$0xff]
    %v524 = vld [vmem:[%s4 + $0x1f8] sm:$0xff]
    %v525 = vld [vmem:[%s5] sm:$0xf]
    %v527 = vlaneseq
    %v528 = vshrl.u32 %v527, 7
    %v529 = vsub.s32 0, %v528
    %v530 = vrot.slane %v525, %v529
    %v531 = vlaneseq
    %v532 = vshrl.u32 %v531, 7
    %v533 = vsub.s32 1, %v532
    %v534 = vrot.slane %v525, %v533
    %v535 = vlaneseq
    %v536 = vshrl.u32 %v535, 7
    %v537 = vsub.s32 2, %v536
    %v538 = vrot.slane %v525, %v537
    %v539 = vlaneseq
    %v540 = vshrl.u32 %v539, 7
    %v541 = vsub.s32 3, %v540
    %v542 = vrot.slane %v525, %v541
    %v611 = vunpack.c.l.b16 %v461
    %v612 = vunpack.c.h.b16 %v461
    %v613 = vunpack.c.l.b16 %v462
    %v614 = vunpack.c.h.b16 %v462
    %v615 = vunpack.c.l.b16 %v463
    %v616 = vunpack.c.h.b16 %v463
    %v617 = vunpack.c.l.b16 %v464
    %v618 = vunpack.c.h.b16 %v464
    %v619 = vunpack.c.l.b16 %v465
    %v620 = vunpack.c.h.b16 %v465
    %v621 = vunpack.c.l.b16 %v466
    %v622 = vunpack.c.h.b16 %v466
    %v623 = vunpack.c.l.b16 %v467
    %v624 = vunpack.c.h.b16 %v467
    %v625 = vunpack.c.l.b16 %v468
    %v626 = vunpack.c.h.b16 %v468
    %v627 = vunpack.c.l.b16 %v469
    %v628 = vunpack.c.h.b16 %v469
    %v629 = vunpack.c.l.b16 %v470
    %v630 = vunpack.c.h.b16 %v470
    %v631 = vunpack.c.l.b16 %v471
    %v632 = vunpack.c.h.b16 %v471
    %v633 = vunpack.c.l.b16 %v472
    %v634 = vunpack.c.h.b16 %v472
    %v635 = vunpack.c.l.b16 %v473
    %v636 = vunpack.c.h.b16 %v473
    %v637 = vunpack.c.l.b16 %v474
    %v638 = vunpack.c.h.b16 %v474
    %v639 = vunpack.c.l.b16 %v475
    %v640 = vunpack.c.h.b16 %v475
    %v641 = vunpack.c.l.b16 %v476
    %v642 = vunpack.c.h.b16 %v476
    %v643 = vunpack.c.l.b16 %v477
    %v644 = vunpack.c.h.b16 %v477
    %v645 = vunpack.c.l.b16 %v478
    %v646 = vunpack.c.h.b16 %v478
    %v647 = vunpack.c.l.b16 %v479
    %v648 = vunpack.c.h.b16 %v479
    %v649 = vunpack.c.l.b16 %v480
    %v650 = vunpack.c.h.b16 %v480
    %v651 = vunpack.c.l.b16 %v481
    %v652 = vunpack.c.h.b16 %v481
    %v653 = vunpack.c.l.b16 %v482
    %v654 = vunpack.c.h.b16 %v482
    %v655 = vunpack.c.l.b16 %v483
    %v656 = vunpack.c.h.b16 %v483
    %v657 = vunpack.c.l.b16 %v484
    %v658 = vunpack.c.h.b16 %v484
    %v659 = vunpack.c.l.b16 %v485
    %v660 = vunpack.c.h.b16 %v485
    %v661 = vunpack.c.l.b16 %v486
    %v662 = vunpack.c.h.b16 %v486
    %v663 = vunpack.c.l.b16 %v487
    %v664 = vunpack.c.h.b16 %v487
    %v665 = vunpack.c.l.b16 %v488
    %v666 = vunpack.c.h.b16 %v488
    %v667 = vunpack.c.l.b16 %v489
    %v668 = vunpack.c.h.b16 %v489
    %v669 = vunpack.c.l.b16 %v490
    %v670 = vunpack.c.h.b16 %v490
    %v671 = vunpack.c.l.b16 %v491
    %v672 = vunpack.c.h.b16 %v491
    %v673 = vunpack.c.l.b16 %v492
    %v674 = vunpack.c.h.b16 %v492
    %v675 = vunpack.c.l.b16 %v493
    %v676 = vunpack.c.h.b16 %v493
    %v677 = vunpack.c.l.b16 %v494
    %v678 = vunpack.c.h.b16 %v494
    %v679 = vunpack.c.l.b16 %v495
    %v680 = vunpack.c.h.b16 %v495
    %v681 = vunpack.c.l.b16 %v496
    %v682 = vunpack.c.h.b16 %v496
    %v683 = vunpack.c.l.b16 %v497
    %v684 = vunpack.c.h.b16 %v497
    %v685 = vunpack.c.l.b16 %v498
    %v686 = vunpack.c.h.b16 %v498
    %v687 = vunpack.c.l.b16 %v499
    %v688 = vunpack.c.h.b16 %v499
    %v689 = vunpack.c.l.b16 %v500
    %v690 = vunpack.c.h.b16 %v500
    %v691 = vunpack.c.l.b16 %v501
    %v692 = vunpack.c.h.b16 %v501
    %v693 = vunpack.c.l.b16 %v502
    %v694 = vunpack.c.h.b16 %v502
    %v695 = vunpack.c.l.b16 %v503
    %v696 = vunpack.c.h.b16 %v503
    %v697 = vunpack.c.l.b16 %v504
    %v698 = vunpack.c.h.b16 %v504
    %v699 = vunpack.c.l.b16 %v505
    %v700 = vunpack.c.h.b16 %v505
    %v701 = vunpack.c.l.b16 %v506
    %v702 = vunpack.c.h.b16 %v506
    %v703 = vunpack.c.l.b16 %v507
    %v704 = vunpack.c.h.b16 %v507
    %v705 = vunpack.c.l.b16 %v508
    %v706 = vunpack.c.h.b16 %v508
    %v707 = vunpack.c.l.b16 %v509
    %v708 = vunpack.c.h.b16 %v509
    %v709 = vunpack.c.l.b16 %v510
    %v710 = vunpack.c.h.b16 %v510
    %v711 = vunpack.c.l.b16 %v511
    %v712 = vunpack.c.h.b16 %v511
    %v713 = vunpack.c.l.b16 %v512
    %v714 = vunpack.c.h.b16 %v512
    %v715 = vunpack.c.l.b16 %v513
    %v716 = vunpack.c.h.b16 %v513
    %v717 = vunpack.c.l.b16 %v514
    %v718 = vunpack.c.h.b16 %v514
    %v719 = vunpack.c.l.b16 %v515
    %v720 = vunpack.c.h.b16 %v515
    %v721 = vunpack.c.l.b16 %v516
    %v722 = vunpack.c.h.b16 %v516
    %v723 = vunpack.c.l.b16 %v517
    %v724 = vunpack.c.h.b16 %v517
    %v725 = vunpack.c.l.b16 %v518
    %v726 = vunpack.c.h.b16 %v518
    %v727 = vunpack.c.l.b16 %v519
    %v728 = vunpack.c.h.b16 %v519
    %v729 = vunpack.c.l.b16 %v520
    %v730 = vunpack.c.h.b16 %v520
    %v731 = vunpack.c.l.b16 %v521
    %v732 = vunpack.c.h.b16 %v521
    %v733 = vunpack.c.l.b16 %v522
    %v734 = vunpack.c.h.b16 %v522
    %v735 = vunpack.c.l.b16 %v523
    %v736 = vunpack.c.h.b16 %v523
    %v737 = vunpack.c.l.b16 %v524
    %v738 = vunpack.c.h.b16 %v524
    %v739 = vpack.c.b16 %v615, %v611
    %v740 = vpack.c.b16 %v616, %v612
    %v741 = vpack.c.b16 %v617, %v613
    %v742 = vpack.c.b16 %v618, %v614
    %v743 = vpack.c.b16 %v623, %v619
    %v744 = vpack.c.b16 %v624, %v620
    %v745 = vpack.c.b16 %v625, %v621
    %v746 = vpack.c.b16 %v626, %v622
    %v747 = vpack.c.b16 %v631, %v627
    %v748 = vpack.c.b16 %v632, %v628
    %v749 = vpack.c.b16 %v633, %v629
    %v750 = vpack.c.b16 %v634, %v630
    %v751 = vpack.c.b16 %v639, %v635
    %v752 = vpack.c.b16 %v640, %v636
    %v753 = vpack.c.b16 %v641, %v637
    %v754 = vpack.c.b16 %v642, %v638
    %v755 = vpack.c.b16 %v647, %v643
    %v756 = vpack.c.b16 %v648, %v644
    %v757 = vpack.c.b16 %v649, %v645
    %v758 = vpack.c.b16 %v650, %v646
    %v759 = vpack.c.b16 %v655, %v651
    %v760 = vpack.c.b16 %v656, %v652
    %v761 = vpack.c.b16 %v657, %v653
    %v762 = vpack.c.b16 %v658, %v654
    %v763 = vpack.c.b16 %v663, %v659
    %v764 = vpack.c.b16 %v664, %v660
    %v765 = vpack.c.b16 %v665, %v661
    %v766 = vpack.c.b16 %v666, %v662
    %v767 = vpack.c.b16 %v671, %v667
    %v768 = vpack.c.b16 %v672, %v668
    %v769 = vpack.c.b16 %v673, %v669
    %v770 = vpack.c.b16 %v674, %v670
    %v771 = vpack.c.b16 %v679, %v675
    %v772 = vpack.c.b16 %v680, %v676
    %v773 = vpack.c.b16 %v681, %v677
    %v774 = vpack.c.b16 %v682, %v678
    %v775 = vpack.c.b16 %v687, %v683
    %v776 = vpack.c.b16 %v688, %v684
    %v777 = vpack.c.b16 %v689, %v685
    %v778 = vpack.c.b16 %v690, %v686
    %v779 = vpack.c.b16 %v695, %v691
    %v780 = vpack.c.b16 %v696, %v692
    %v781 = vpack.c.b16 %v697, %v693
    %v782 = vpack.c.b16 %v698, %v694
    %v783 = vpack.c.b16 %v703, %v699
    %v784 = vpack.c.b16 %v704, %v700
    %v785 = vpack.c.b16 %v705, %v701
    %v786 = vpack.c.b16 %v706, %v702
    %v787 = vpack.c.b16 %v711, %v707
    %v788 = vpack.c.b16 %v712, %v708
    %v789 = vpack.c.b16 %v713, %v709
    %v790 = vpack.c.b16 %v714, %v710
    %v791 = vpack.c.b16 %v719, %v715
    %v792 = vpack.c.b16 %v720, %v716
    %v793 = vpack.c.b16 %v721, %v717
    %v794 = vpack.c.b16 %v722, %v718
    %v795 = vpack.c.b16 %v727, %v723
    %v796 = vpack.c.b16 %v728, %v724
    %v797 = vpack.c.b16 %v729, %v725
    %v798 = vpack.c.b16 %v730, %v726
    %v799 = vpack.c.b16 %v735, %v731
    %v800 = vpack.c.b16 %v736, %v732
    %v801 = vpack.c.b16 %v737, %v733
    %v802 = vpack.c.b16 %v738, %v734
    %867 = vmatprep.subr.bf16.mxu0 %v740
    %868 = vmatpush1.bf16.msra.mxu0 %v739
    %869 = vmatprep.subr.bf16.mxu0 %v744
    %870 = vmatpush1.bf16.msra.mxu0 %v743
    %871 = vmatprep.subr.bf16.mxu0 %v748
    %872 = vmatpush1.bf16.msra.mxu0 %v747
    %873 = vmatprep.subr.bf16.mxu0 %v752
    %874 = vmatpush1.bf16.msra.mxu0 %v751
    %875 = vmatprep.subr.bf16.mxu0 %v756
    %876 = vmatpush1.bf16.msra.mxu0 %v755
    %877 = vmatprep.subr.bf16.mxu0 %v760
    %878 = vmatpush1.bf16.msra.mxu0 %v759
    %879 = vmatprep.subr.bf16.mxu0 %v764
    %880 = vmatpush1.bf16.msra.mxu0 %v763
    %881 = vmatprep.subr.bf16.mxu0 %v768
    %882 = vmatpush1.bf16.msra.mxu0 %v767
    %883 = vmatprep.subr.bf16.mxu0 %v772
    %884 = vmatpush1.bf16.msra.mxu0 %v771
    %885 = vmatprep.subr.bf16.mxu0 %v776
    %886 = vmatpush1.bf16.msra.mxu0 %v775
    %887 = vmatprep.subr.bf16.mxu0 %v780
    %888 = vmatpush1.bf16.msra.mxu0 %v779
    %889 = vmatprep.subr.bf16.mxu0 %v784
    %890 = vmatpush1.bf16.msra.mxu0 %v783
    %891 = vmatprep.subr.bf16.mxu0 %v788
    %892 = vmatpush1.bf16.msra.mxu0 %v787
    %893 = vmatprep.subr.bf16.mxu0 %v792
    %894 = vmatpush1.bf16.msra.mxu0 %v791
    %895 = vmatprep.subr.bf16.mxu0 %v796
    %896 = vmatpush1.bf16.msra.mxu0 %v795
    %897 = vmatprep.subr.bf16.mxu0 %v800
    %898 = vmatpush1.bf16.msra.mxu0 %v799
    %899 = vmatprep.mubr.bf16.mxu0 %v458
    %900 = vmatmul.mubr.bf16.gmra.mrb[0].mxu0 %v457
    %v901 = vpop.f32.mrb[0].mxu0
    %v902 = vadd.f32 %v530, %v901
    %v903 = vpop.f32.mrb[0].mxu0
    %v904 = vadd.f32 %v534, %v903
    %v905 = vpop.f32.mrb[0].mxu0
    %v906 = vadd.f32 %v530, %v905
    %v907 = vpop.f32.mrb[0].mxu0
    %v908 = vadd.f32 %v534, %v907
    %909 = vmatprep.mubr.bf16.mxu0 %v460
    %910 = vmatmul.mubr.bf16.gmra.mrb[0].mxu0 %v459
    %v911 = vpop.f32.mrb[0].mxu0
    %v912 = vadd.f32 %v530, %v911
    %v913 = vpop.f32.mrb[0].mxu0
    %v914 = vadd.f32 %v534, %v913
    %v915 = vpop.f32.mrb[0].mxu0
    %v916 = vadd.f32 %v530, %v915
    %v917 = vpop.f32.mrb[0].mxu0
    %v918 = vadd.f32 %v534, %v917
    %919 = vdwg.mxu0
    %920 = vmatprep.subr.bf16.mxu0 %v742
    %921 = vmatpush1.bf16.msra.mxu0 %v741
    %922 = vmatprep.subr.bf16.mxu0 %v746
    %923 = vmatpush1.bf16.msra.mxu0 %v745
    %924 = vmatprep.subr.bf16.mxu0 %v750
    %925 = vmatpush1.bf16.msra.mxu0 %v749
    %926 = vmatprep.subr.bf16.mxu0 %v754
    %927 = vmatpush1.bf16.msra.mxu0 %v753
    %928 = vmatprep.subr.bf16.mxu0 %v758
    %929 = vmatpush1.bf16.msra.mxu0 %v757
    %930 = vmatprep.subr.bf16.mxu0 %v762
    %931 = vmatpush1.bf16.msra.mxu0 %v761
    %932 = vmatprep.subr.bf16.mxu0 %v766
    %933 = vmatpush1.bf16.msra.mxu0 %v765
    %934 = vmatprep.subr.bf16.mxu0 %v770
    %935 = vmatpush1.bf16.msra.mxu0 %v769
    %936 = vmatprep.subr.bf16.mxu0 %v774
    %937 = vmatpush1.bf16.msra.mxu0 %v773
    %938 = vmatprep.subr.bf16.mxu0 %v778
    %939 = vmatpush1.bf16.msra.mxu0 %v777
    %940 = vmatprep.subr.bf16.mxu0 %v782
    %941 = vmatpush1.bf16.msra.mxu0 %v781
    %942 = vmatprep.subr.bf16.mxu0 %v786
    %943 = vmatpush1.bf16.msra.mxu0 %v785
    %944 = vmatprep.subr.bf16.mxu0 %v790
    %945 = vmatpush1.bf16.msra.mxu0 %v789
    %946 = vmatprep.subr.bf16.mxu0 %v794
    %947 = vmatpush1.bf16.msra.mxu0 %v793
    %948 = vmatprep.subr.bf16.mxu0 %v798
    %949 = vmatpush1.bf16.msra.mxu0 %v797
    %950 = vmatprep.subr.bf16.mxu0 %v802
    %951 = vmatpush1.bf16.msra.mxu0 %v801
    %952 = vmatprep.mubr.bf16.mxu0 %v458
    %953 = vmatmul.mubr.bf16.gmra.mrb[0].mxu0 %v457
    %v954 = vpop.f32.mrb[0].mxu0
    %v955 = vadd.f32 %v538, %v954
    %v956 = vpop.f32.mrb[0].mxu0
    %v957 = vadd.f32 %v542, %v956
    %v958 = vpop.f32.mrb[0].mxu0
    %v959 = vadd.f32 %v538, %v958
    %v960 = vpop.f32.mrb[0].mxu0
    %v961 = vadd.f32 %v542, %v960
    %962 = vmatprep.mubr.bf16.mxu0 %v460
    %963 = vmatmul.mubr.bf16.gmra.mrb[0].mxu0 %v459
    %v964 = vpop.f32.mrb[0].mxu0
    %v965 = vadd.f32 %v538, %v964
    %v966 = vpop.f32.mrb[0].mxu0
    %v967 = vadd.f32 %v542, %v966
    %v968 = vpop.f32.mrb[0].mxu0
    %v969 = vadd.f32 %v538, %v968
    %v970 = vpop.f32.mrb[0].mxu0
    %v971 = vadd.f32 %v542, %v970
    %972 = vdwg.mxu0
    %v973 = vmax.f32 %v902, 0.0
    %v974 = vmax.f32 %v904, 0.0
    %v975 = vmax.f32 %v955, 0.0
    %v976 = vmax.f32 %v957, 0.0
    %v977 = vmax.f32 %v906, 0.0
    %v978 = vmax.f32 %v908, 0.0
    %v979 = vmax.f32 %v959, 0.0
    %v980 = vmax.f32 %v961, 0.0
    %v981 = vmax.f32 %v912, 0.0
    %v982 = vmax.f32 %v914, 0.0
    %v983 = vmax.f32 %v965, 0.0
    %v984 = vmax.f32 %v967, 0.0
    %v985 = vmax.f32 %v916, 0.0
    %v986 = vmax.f32 %v918, 0.0
    %v987 = vmax.f32 %v969, 0.0
    %v988 = vmax.f32 %v971, 0.0
    %v989 = vpack.c.bf16 %v977, %v973
    %v990 = vpack.c.bf16 %v978, %v974
    %v991 = vpack.c.bf16 %v979, %v975
    %v992 = vpack.c.bf16 %v980, %v976
    %v993 = vpack.c.bf16 %v985, %v981
    %v994 = vpack.c.bf16 %v986, %v982
    %v995 = vpack.c.bf16 %v987, %v983
    %v996 = vpack.c.bf16 %v988, %v984
    %v997 = vld [vmem:[%s6] sm:$0xff]
    %v998 = vld [vmem:[%s6 + $0x8] sm:$0xff]
    %v999 = vld [vmem:[%s6 + $0x10] sm:$0xff]
    %v1000 = vld [vmem:[%s6 + $0x18] sm:$0xff]
    %v1001 = vld [vmem:[%s6 + $0x20] sm:$0xff]
    %v1002 = vld [vmem:[%s6 + $0x28] sm:$0xff]
    %v1003 = vld [vmem:[%s6 + $0x30] sm:$0xff]
    %v1004 = vld [vmem:[%s6 + $0x38] sm:$0xff]
    %v1005 = vld [vmem:[%s6 + $0x40] sm:$0xff]
    %v1006 = vld [vmem:[%s6 + $0x48] sm:$0xff]
    %v1007 = vld [vmem:[%s6 + $0x50] sm:$0xff]
    %v1008 = vld [vmem:[%s6 + $0x58] sm:$0xff]
    %v1009 = vld [vmem:[%s6 + $0x60] sm:$0xff]
    %v1010 = vld [vmem:[%s6 + $0x68] sm:$0xff]
    %v1011 = vld [vmem:[%s6 + $0x70] sm:$0xff]
    %v1012 = vld [vmem:[%s6 + $0x78] sm:$0xff]
    %v1013 = vld [vmem:[%s6 + $0x80] sm:$0xff]
    %v1014 = vld [vmem:[%s6 + $0x88] sm:$0xff]
    %v1015 = vld [vmem:[%s6 + $0x90] sm:$0xff]
    %v1016 = vld [vmem:[%s6 + $0x98] sm:$0xff]
    %v1017 = vld [vmem:[%s6 + $0xa0] sm:$0xff]
    %v1018 = vld [vmem:[%s6 + $0xa8] sm:$0xff]
    %v1019 = vld [vmem:[%s6 + $0xb0] sm:$0xff]
    %v1020 = vld [vmem:[%s6 + $0xb8] sm:$0xff]
    %v1021 = vld [vmem:[%s6 + $0xc0] sm:$0xff]
    %v1022 = vld [vmem:[%s6 + $0xc8] sm:$0xff]
    %v1023 = vld [vmem:[%s6 + $0xd0] sm:$0xff]
    %v1024 = vld [vmem:[%s6 + $0xd8] sm:$0xff]
    %v1025 = vld [vmem:[%s6 + $0xe0] sm:$0xff]
    %v1026 = vld [vmem:[%s6 + $0xe8] sm:$0xff]
    %v1027 = vld [vmem:[%s6 + $0xf0] sm:$0xff]
    %v1028 = vld [vmem:[%s6 + $0xf8] sm:$0xff]
    %v1029 = vld [vmem:[%s6 + $0x100] sm:$0xff]
    %v1030 = vld [vmem:[%s6 + $0x108] sm:$0xff]
    %v1031 = vld [vmem:[%s6 + $0x110] sm:$0xff]
    %v1032 = vld [vmem:[%s6 + $0x118] sm:$0xff]
    %v1033 = vld [vmem:[%s6 + $0x120] sm:$0xff]
    %v1034 = vld [vmem:[%s6 + $0x128] sm:$0xff]
    %v1035 = vld [vmem:[%s6 + $0x130] sm:$0xff]
    %v1036 = vld [vmem:[%s6 + $0x138] sm:$0xff]
    %v1037 = vld [vmem:[%s6 + $0x140] sm:$0xff]
    %v1038 = vld [vmem:[%s6 + $0x148] sm:$0xff]
    %v1039 = vld [vmem:[%s6 + $0x150] sm:$0xff]
    %v1040 = vld [vmem:[%s6 + $0x158] sm:$0xff]
    %v1041 = vld [vmem:[%s6 + $0x160] sm:$0xff]
    %v1042 = vld [vmem:[%s6 + $0x168] sm:$0xff]
    %v1043 = vld [vmem:[%s6 + $0x170] sm:$0xff]
    %v1044 = vld [vmem:[%s6 + $0x178] sm:$0xff]
    %v1045 = vld [vmem:[%s6 + $0x180] sm:$0xff]
    %v1046 = vld [vmem:[%s6 + $0x188] sm:$0xff]
    %v1047 = vld [vmem:[%s6 + $0x190] sm:$0xff]
    %v1048 = vld [vmem:[%s6 + $0x198] sm:$0xff]
    %v1049 = vld [vmem:[%s6 + $0x1a0] sm:$0xff]
    %v1050 = vld [vmem:[%s6 + $0x1a8] sm:$0xff]
    %v1051 = vld [vmem:[%s6 + $0x1b0] sm:$0xff]
    %v1052 = vld [vmem:[%s6 + $0x1b8] sm:$0xff]
    %v1053 = vld [vmem:[%s6 + $0x1c0] sm:$0xff]
    %v1054 = vld [vmem:[%s6 + $0x1c8] sm:$0xff]
    %v1055 = vld [vmem:[%s6 + $0x1d0] sm:$0xff]
    %v1056 = vld [vmem:[%s6 + $0x1d8] sm:$0xff]
    %v1057 = vld [vmem:[%s6 + $0x1e0] sm:$0xff]
    %v1058 = vld [vmem:[%s6 + $0x1e8] sm:$0xff]
    %v1059 = vld [vmem:[%s6 + $0x1f0] sm:$0xff]
    %v1060 = vld [vmem:[%s6 + $0x1f8] sm:$0xff]
    %v1061 = vld [vmem:[%s7] sm:$0x3]
    %v1063 = vlaneseq
    %v1064 = vshrl.u32 %v1063, 7
    %v1065 = vsub.s32 0, %v1064
    %v1066 = vrot.slane %v1061, %v1065
    %v1067 = vlaneseq
    %v1068 = vshrl.u32 %v1067, 7
    %v1069 = vsub.s32 1, %v1068
    %v1070 = vrot.slane %v1061, %v1069
    %v1137 = vunpack.c.l.b16 %v997
    %v1138 = vunpack.c.h.b16 %v997
    %v1139 = vunpack.c.l.b16 %v998
    %v1140 = vunpack.c.h.b16 %v998
    %v1141 = vunpack.c.l.b16 %v999
    %v1142 = vunpack.c.h.b16 %v999
    %v1143 = vunpack.c.l.b16 %v1000
    %v1144 = vunpack.c.h.b16 %v1000
    %v1145 = vunpack.c.l.b16 %v1001
    %v1146 = vunpack.c.h.b16 %v1001
    %v1147 = vunpack.c.l.b16 %v1002
    %v1148 = vunpack.c.h.b16 %v1002
    %v1149 = vunpack.c.l.b16 %v1003
    %v1150 = vunpack.c.h.b16 %v1003
    %v1151 = vunpack.c.l.b16 %v1004
    %v1152 = vunpack.c.h.b16 %v1004
    %v1153 = vunpack.c.l.b16 %v1005
    %v1154 = vunpack.c.h.b16 %v1005
    %v1155 = vunpack.c.l.b16 %v1006
    %v1156 = vunpack.c.h.b16 %v1006
    %v1157 = vunpack.c.l.b16 %v1007
    %v1158 = vunpack.c.h.b16 %v1007
    %v1159 = vunpack.c.l.b16 %v1008
    %v1160 = vunpack.c.h.b16 %v1008
    %v1161 = vunpack.c.l.b16 %v1009
    %v1162 = vunpack.c.h.b16 %v1009
    %v1163 = vunpack.c.l.b16 %v1010
    %v1164 = vunpack.c.h.b16 %v1010
    %v1165 = vunpack.c.l.b16 %v1011
    %v1166 = vunpack.c.h.b16 %v1011
    %v1167 = vunpack.c.l.b16 %v1012
    %v1168 = vunpack.c.h.b16 %v1012
    %v1169 = vunpack.c.l.b16 %v1013
    %v1170 = vunpack.c.h.b16 %v1013
    %v1171 = vunpack.c.l.b16 %v1014
    %v1172 = vunpack.c.h.b16 %v1014
    %v1173 = vunpack.c.l.b16 %v1015
    %v1174 = vunpack.c.h.b16 %v1015
    %v1175 = vunpack.c.l.b16 %v1016
    %v1176 = vunpack.c.h.b16 %v1016
    %v1177 = vunpack.c.l.b16 %v1017
    %v1178 = vunpack.c.h.b16 %v1017
    %v1179 = vunpack.c.l.b16 %v1018
    %v1180 = vunpack.c.h.b16 %v1018
    %v1181 = vunpack.c.l.b16 %v1019
    %v1182 = vunpack.c.h.b16 %v1019
    %v1183 = vunpack.c.l.b16 %v1020
    %v1184 = vunpack.c.h.b16 %v1020
    %v1185 = vunpack.c.l.b16 %v1021
    %v1186 = vunpack.c.h.b16 %v1021
    %v1187 = vunpack.c.l.b16 %v1022
    %v1188 = vunpack.c.h.b16 %v1022
    %v1189 = vunpack.c.l.b16 %v1023
    %v1190 = vunpack.c.h.b16 %v1023
    %v1191 = vunpack.c.l.b16 %v1024
    %v1192 = vunpack.c.h.b16 %v1024
    %v1193 = vunpack.c.l.b16 %v1025
    %v1194 = vunpack.c.h.b16 %v1025
    %v1195 = vunpack.c.l.b16 %v1026
    %v1196 = vunpack.c.h.b16 %v1026
    %v1197 = vunpack.c.l.b16 %v1027
    %v1198 = vunpack.c.h.b16 %v1027
    %v1199 = vunpack.c.l.b16 %v1028
    %v1200 = vunpack.c.h.b16 %v1028
    %v1201 = vunpack.c.l.b16 %v1029
    %v1202 = vunpack.c.h.b16 %v1029
    %v1203 = vunpack.c.l.b16 %v1030
    %v1204 = vunpack.c.h.b16 %v1030
    %v1205 = vunpack.c.l.b16 %v1031
    %v1206 = vunpack.c.h.b16 %v1031
    %v1207 = vunpack.c.l.b16 %v1032
    %v1208 = vunpack.c.h.b16 %v1032
    %v1209 = vunpack.c.l.b16 %v1033
    %v1210 = vunpack.c.h.b16 %v1033
    %v1211 = vunpack.c.l.b16 %v1034
    %v1212 = vunpack.c.h.b16 %v1034
    %v1213 = vunpack.c.l.b16 %v1035
    %v1214 = vunpack.c.h.b16 %v1035
    %v1215 = vunpack.c.l.b16 %v1036
    %v1216 = vunpack.c.h.b16 %v1036
    %v1217 = vunpack.c.l.b16 %v1037
    %v1218 = vunpack.c.h.b16 %v1037
    %v1219 = vunpack.c.l.b16 %v1038
    %v1220 = vunpack.c.h.b16 %v1038
    %v1221 = vunpack.c.l.b16 %v1039
    %v1222 = vunpack.c.h.b16 %v1039
    %v1223 = vunpack.c.l.b16 %v1040
    %v1224 = vunpack.c.h.b16 %v1040
    %v1225 = vunpack.c.l.b16 %v1041
    %v1226 = vunpack.c.h.b16 %v1041
    %v1227 = vunpack.c.l.b16 %v1042
    %v1228 = vunpack.c.h.b16 %v1042
    %v1229 = vunpack.c.l.b16 %v1043
    %v1230 = vunpack.c.h.b16 %v1043
    %v1231 = vunpack.c.l.b16 %v1044
    %v1232 = vunpack.c.h.b16 %v1044
    %v1233 = vunpack.c.l.b16 %v1045
    %v1234 = vunpack.c.h.b16 %v1045
    %v1235 = vunpack.c.l.b16 %v1046
    %v1236 = vunpack.c.h.b16 %v1046
    %v1237 = vunpack.c.l.b16 %v1047
    %v1238 = vunpack.c.h.b16 %v1047
    %v1239 = vunpack.c.l.b16 %v1048
    %v1240 = vunpack.c.h.b16 %v1048
    %v1241 = vunpack.c.l.b16 %v1049
    %v1242 = vunpack.c.h.b16 %v1049
    %v1243 = vunpack.c.l.b16 %v1050
    %v1244 = vunpack.c.h.b16 %v1050
    %v1245 = vunpack.c.l.b16 %v1051
    %v1246 = vunpack.c.h.b16 %v1051
    %v1247 = vunpack.c.l.b16 %v1052
    %v1248 = vunpack.c.h.b16 %v1052
    %v1249 = vunpack.c.l.b16 %v1053
    %v1250 = vunpack.c.h.b16 %v1053
    %v1251 = vunpack.c.l.b16 %v1054
    %v1252 = vunpack.c.h.b16 %v1054
    %v1253 = vunpack.c.l.b16 %v1055
    %v1254 = vunpack.c.h.b16 %v1055
    %v1255 = vunpack.c.l.b16 %v1056
    %v1256 = vunpack.c.h.b16 %v1056
    %v1257 = vunpack.c.l.b16 %v1057
    %v1258 = vunpack.c.h.b16 %v1057
    %v1259 = vunpack.c.l.b16 %v1058
    %v1260 = vunpack.c.h.b16 %v1058
    %v1261 = vunpack.c.l.b16 %v1059
    %v1262 = vunpack.c.h.b16 %v1059
    %v1263 = vunpack.c.l.b16 %v1060
    %v1264 = vunpack.c.h.b16 %v1060
    %v1265 = vpack.c.b16 %v1139, %v1137
    %v1266 = vpack.c.b16 %v1140, %v1138
    %v1267 = vpack.c.b16 %v1143, %v1141
    %v1268 = vpack.c.b16 %v1144, %v1142
    %v1269 = vpack.c.b16 %v1147, %v1145
    %v1270 = vpack.c.b16 %v1148, %v1146
    %v1271 = vpack.c.b16 %v1151, %v1149
    %v1272 = vpack.c.b16 %v1152, %v1150
    %v1273 = vpack.c.b16 %v1155, %v1153
    %v1274 = vpack.c.b16 %v1156, %v1154
    %v1275 = vpack.c.b16 %v1159, %v1157
    %v1276 = vpack.c.b16 %v1160, %v1158
    %v1277 = vpack.c.b16 %v1163, %v1161
    %v1278 = vpack.c.b16 %v1164, %v1162
    %v1279 = vpack.c.b16 %v1167, %v1165
    %v1280 = vpack.c.b16 %v1168, %v1166
    %v1281 = vpack.c.b16 %v1171, %v1169
    %v1282 = vpack.c.b16 %v1172, %v1170
    %v1283 = vpack.c.b16 %v1175, %v1173
    %v1284 = vpack.c.b16 %v1176, %v1174
    %v1285 = vpack.c.b16 %v1179, %v1177
    %v1286 = vpack.c.b16 %v1180, %v1178
    %v1287 = vpack.c.b16 %v1183, %v1181
    %v1288 = vpack.c.b16 %v1184, %v1182
    %v1289 = vpack.c.b16 %v1187, %v1185
    %v1290 = vpack.c.b16 %v1188, %v1186
    %v1291 = vpack.c.b16 %v1191, %v1189
    %v1292 = vpack.c.b16 %v1192, %v1190
    %v1293 = vpack.c.b16 %v1195, %v1193
    %v1294 = vpack.c.b16 %v1196, %v1194
    %v1295 = vpack.c.b16 %v1199, %v1197
    %v1296 = vpack.c.b16 %v1200, %v1198
    %v1297 = vpack.c.b16 %v1203, %v1201
    %v1298 = vpack.c.b16 %v1204, %v1202
    %v1299 = vpack.c.b16 %v1207, %v1205
    %v1300 = vpack.c.b16 %v1208, %v1206
    %v1301 = vpack.c.b16 %v1211, %v1209
    %v1302 = vpack.c.b16 %v1212, %v1210
    %v1303 = vpack.c.b16 %v1215, %v1213
    %v1304 = vpack.c.b16 %v1216, %v1214
    %v1305 = vpack.c.b16 %v1219, %v1217
    %v1306 = vpack.c.b16 %v1220, %v1218
    %v1307 = vpack.c.b16 %v1223, %v1221
    %v1308 = vpack.c.b16 %v1224, %v1222
    %v1309 = vpack.c.b16 %v1227, %v1225
    %v1310 = vpack.c.b16 %v1228, %v1226
    %v1311 = vpack.c.b16 %v1231, %v1229
    %v1312 = vpack.c.b16 %v1232, %v1230
    %v1313 = vpack.c.b16 %v1235, %v1233
    %v1314 = vpack.c.b16 %v1236, %v1234
    %v1315 = vpack.c.b16 %v1239, %v1237
    %v1316 = vpack.c.b16 %v1240, %v1238
    %v1317 = vpack.c.b16 %v1243, %v1241
    %v1318 = vpack.c.b16 %v1244, %v1242
    %v1319 = vpack.c.b16 %v1247, %v1245
    %v1320 = vpack.c.b16 %v1248, %v1246
    %v1321 = vpack.c.b16 %v1251, %v1249
    %v1322 = vpack.c.b16 %v1252, %v1250
    %v1323 = vpack.c.b16 %v1255, %v1253
    %v1324 = vpack.c.b16 %v1256, %v1254
    %v1325 = vpack.c.b16 %v1259, %v1257
    %v1326 = vpack.c.b16 %v1260, %v1258
    %v1327 = vpack.c.b16 %v1263, %v1261
    %v1328 = vpack.c.b16 %v1264, %v1262
    %1393 = vmatprep.subr.bf16.mxu0 %v1266
    %1394 = vmatpush1.bf16.msra.mxu0 %v1265
    %1395 = vmatprep.subr.bf16.mxu0 %v1268
    %1396 = vmatpush1.bf16.msra.mxu0 %v1267
    %1397 = vmatprep.subr.bf16.mxu0 %v1270
    %1398 = vmatpush1.bf16.msra.mxu0 %v1269
    %1399 = vmatprep.subr.bf16.mxu0 %v1272
    %1400 = vmatpush1.bf16.msra.mxu0 %v1271
    %1401 = vmatprep.subr.bf16.mxu0 %v1274
    %1402 = vmatpush1.bf16.msra.mxu0 %v1273
    %1403 = vmatprep.subr.bf16.mxu0 %v1276
    %1404 = vmatpush1.bf16.msra.mxu0 %v1275
    %1405 = vmatprep.subr.bf16.mxu0 %v1278
    %1406 = vmatpush1.bf16.msra.mxu0 %v1277
    %1407 = vmatprep.subr.bf16.mxu0 %v1280
    %1408 = vmatpush1.bf16.msra.mxu0 %v1279
    %1409 = vmatprep.subr.bf16.mxu0 %v1282
    %1410 = vmatpush1.bf16.msra.mxu0 %v1281
    %1411 = vmatprep.subr.bf16.mxu0 %v1284
    %1412 = vmatpush1.bf16.msra.mxu0 %v1283
    %1413 = vmatprep.subr.bf16.mxu0 %v1286
    %1414 = vmatpush1.bf16.msra.mxu0 %v1285
    %1415 = vmatprep.subr.bf16.mxu0 %v1288
    %1416 = vmatpush1.bf16.msra.mxu0 %v1287
    %1417 = vmatprep.subr.bf16.mxu0 %v1290
    %1418 = vmatpush1.bf16.msra.mxu0 %v1289
    %1419 = vmatprep.subr.bf16.mxu0 %v1292
    %1420 = vmatpush1.bf16.msra.mxu0 %v1291
    %1421 = vmatprep.subr.bf16.mxu0 %v1294
    %1422 = vmatpush1.bf16.msra.mxu0 %v1293
    %1423 = vmatprep.subr.bf16.mxu0 %v1296
    %1424 = vmatpush1.bf16.msra.mxu0 %v1295
    %1425 = vmatprep.mubr.bf16.mxu0 %v990
    %1426 = vmatmul.mubr.bf16.gmra.mrb[0].mxu0 %v989
    %v1427 = vpop.f32.mrb[0].mxu0
    %v1428 = vadd.f32 %v1066, %v1427
    %v1429 = vpop.f32.mrb[0].mxu0
    %v1430 = vadd.f32 %v1070, %v1429
    %v1431 = vpop.f32.mrb[0].mxu0
    %v1432 = vadd.f32 %v1066, %v1431
    %v1433 = vpop.f32.mrb[0].mxu0
    %v1434 = vadd.f32 %v1070, %v1433
    %1435 = vmatprep.mubr.bf16.mxu0 %v994
    %1436 = vmatmul.mubr.bf16.gmra.mrb[0].mxu0 %v993
    %v1437 = vpop.f32.mrb[0].mxu0
    %v1438 = vadd.f32 %v1066, %v1437
    %v1439 = vpop.f32.mrb[0].mxu0
    %v1440 = vadd.f32 %v1070, %v1439
    %v1441 = vpop.f32.mrb[0].mxu0
    %v1442 = vadd.f32 %v1066, %v1441
    %v1443 = vpop.f32.mrb[0].mxu0
    %v1444 = vadd.f32 %v1070, %v1443
    %1445 = vdwg.mxu0
    %1446 = vmatprep.subr.bf16.mxu0 %v1298
    %1447 = vmatpush1.bf16.msra.mxu0 %v1297
    %1448 = vmatprep.subr.bf16.mxu0 %v1300
    %1449 = vmatpush1.bf16.msra.mxu0 %v1299
    %1450 = vmatprep.subr.bf16.mxu0 %v1302
    %1451 = vmatpush1.bf16.msra.mxu0 %v1301
    %1452 = vmatprep.subr.bf16.mxu0 %v1304
    %1453 = vmatpush1.bf16.msra.mxu0 %v1303
    %1454 = vmatprep.subr.bf16.mxu0 %v1306
    %1455 = vmatpush1.bf16.msra.mxu0 %v1305
    %1456 = vmatprep.subr.bf16.mxu0 %v1308
    %1457 = vmatpush1.bf16.msra.mxu0 %v1307
    %1458 = vmatprep.subr.bf16.mxu0 %v1310
    %1459 = vmatpush1.bf16.msra.mxu0 %v1309
    %1460 = vmatprep.subr.bf16.mxu0 %v1312
    %1461 = vmatpush1.bf16.msra.mxu0 %v1311
    %1462 = vmatprep.subr.bf16.mxu0 %v1314
    %1463 = vmatpush1.bf16.msra.mxu0 %v1313
    %1464 = vmatprep.subr.bf16.mxu0 %v1316
    %1465 = vmatpush1.bf16.msra.mxu0 %v1315
    %1466 = vmatprep.subr.bf16.mxu0 %v1318
    %1467 = vmatpush1.bf16.msra.mxu0 %v1317
    %1468 = vmatprep.subr.bf16.mxu0 %v1320
    %1469 = vmatpush1.bf16.msra.mxu0 %v1319
    %1470 = vmatprep.subr.bf16.mxu0 %v1322
    %1471 = vmatpush1.bf16.msra.mxu0 %v1321
    %1472 = vmatprep.subr.bf16.mxu0 %v1324
    %1473 = vmatpush1.bf16.msra.mxu0 %v1323
    %1474 = vmatprep.subr.bf16.mxu0 %v1326
    %1475 = vmatpush1.bf16.msra.mxu0 %v1325
    %1476 = vmatprep.subr.bf16.mxu0 %v1328
    %1477 = vmatpush1.bf16.msra.mxu0 %v1327
    %1478 = vmatprep.mubr.bf16.mxu0 %v992
    %1479 = vmatmul.mubr.bf16.gmra.mrb[0].mxu0 %v991
    %v1480 = vpop.f32.mrb[0].mxu0
    %v1481 = vadd.f32 %v1428, %v1480
    %v1482 = vpop.f32.mrb[0].mxu0
    %v1483 = vadd.f32 %v1430, %v1482
    %v1484 = vpop.f32.mrb[0].mxu0
    %v1485 = vadd.f32 %v1432, %v1484
    %v1486 = vpop.f32.mrb[0].mxu0
    %v1487 = vadd.f32 %v1434, %v1486
    %1488 = vmatprep.mubr.bf16.mxu0 %v996
    %1489 = vmatmul.mubr.bf16.gmra.mrb[0].mxu0 %v995
    %v1490 = vpop.f32.mrb[0].mxu0
    %v1491 = vadd.f32 %v1438, %v1490
    %v1492 = vpop.f32.mrb[0].mxu0
    %v1493 = vadd.f32 %v1440, %v1492
    %v1494 = vpop.f32.mrb[0].mxu0
    %v1495 = vadd.f32 %v1442, %v1494
    %v1496 = vpop.f32.mrb[0].mxu0
    %v1497 = vadd.f32 %v1444, %v1496
    %1498 = vdwg.mxu0
    %v1499 = vadd.f32 %v449, %v1481
    %v1500 = vadd.f32 %v450, %v1483
    %v1501 = vadd.f32 %v451, %v1485
    %v1502 = vadd.f32 %v452, %v1487
    %v1503 = vadd.f32 %v453, %v1491
    %v1504 = vadd.f32 %v454, %v1493
    %v1505 = vadd.f32 %v455, %v1495
    %v1506 = vadd.f32 %v456, %v1497
    %v1507 = vld [vmem:[%s10] sm:$0x3]
    %v1508 = vld [vmem:[%s11] sm:$0x3]
    %v1509 = vadd.f32 %v1499, %v1500
    %1510 = vadd.xlane.f32.xlu0 %v1509
    %v1511 = vpop.xlane.xlu0 %1510
    %v1512 = vadd.f32 %v1501, %v1502
    %1513 = vadd.xlane.f32.xlu0 %v1512
    %v1514 = vpop.xlane.xlu0 %1513
    %v1515 = vadd.f32 %v1503, %v1504
    %1516 = vadd.xlane.f32.xlu0 %v1515
    %v1517 = vpop.xlane.xlu0 %1516
    %v1518 = vadd.f32 %v1505, %v1506
    %1519 = vadd.xlane.f32.xlu0 %v1518
    %v1520 = vpop.xlane.xlu0 %1519
    %v1521 = vmul.f32 %v1511, %v366
    %v1522 = vmul.f32 %v1514, %v366
    %v1523 = vmul.f32 %v1517, %v366
    %v1524 = vmul.f32 %v1520, %v366
    %v1525 = vsub.f32 %v1499, %v1521
    %v1526 = vsub.f32 %v1500, %v1521
    %v1527 = vsub.f32 %v1501, %v1522
    %v1528 = vsub.f32 %v1502, %v1522
    %v1529 = vsub.f32 %v1503, %v1523
    %v1530 = vsub.f32 %v1504, %v1523
    %v1531 = vsub.f32 %v1505, %v1524
    %v1532 = vsub.f32 %v1506, %v1524
    %v1533 = vmul.f32 %v1525, %v1525
    %v1534 = vmul.f32 %v1526, %v1526
    %v1535 = vmul.f32 %v1527, %v1527
    %v1536 = vmul.f32 %v1528, %v1528
    %v1537 = vmul.f32 %v1529, %v1529
    %v1538 = vmul.f32 %v1530, %v1530
    %v1539 = vmul.f32 %v1531, %v1531
    %v1540 = vmul.f32 %v1532, %v1532
    %v1541 = vadd.f32 %v1533, %v1534
    %1542 = vadd.xlane.f32.xlu0 %v1541
    %v1543 = vpop.xlane.xlu0 %1542
    %v1544 = vadd.f32 %v1535, %v1536
    %1545 = vadd.xlane.f32.xlu0 %v1544
    %v1546 = vpop.xlane.xlu0 %1545
    %v1547 = vadd.f32 %v1537, %v1538
    %1548 = vadd.xlane.f32.xlu0 %v1547
    %v1549 = vpop.xlane.xlu0 %1548
    %v1550 = vadd.f32 %v1539, %v1540
    %1551 = vadd.xlane.f32.xlu0 %v1550
    %v1552 = vpop.xlane.xlu0 %1551
    %v1553 = vmul.f32 %v1543, %v366
    %v1554 = vmul.f32 %v1546, %v366
    %v1555 = vmul.f32 %v1549, %v366
    %v1556 = vmul.f32 %v1552, %v366
    %v1557 = vadd.f32 %v1553, 1e-05
    %v1558 = vadd.f32 %v1554, 1e-05
    %v1559 = vadd.f32 %v1555, 1e-05
    %v1560 = vadd.f32 %v1556, 1e-05
    %v1561 = vrsqrt.pop %v1557
    %v1562 = vrsqrt.pop %v1558
    %v1563 = vrsqrt.pop %v1559
    %v1564 = vrsqrt.pop %v1560
    %v1565 = vmul.f32 %v1525, %v1561
    %v1566 = vmul.f32 %v1526, %v1561
    %v1567 = vmul.f32 %v1527, %v1562
    %v1568 = vmul.f32 %v1528, %v1562
    %v1569 = vmul.f32 %v1529, %v1563
    %v1570 = vmul.f32 %v1530, %v1563
    %v1571 = vmul.f32 %v1531, %v1564
    %v1572 = vmul.f32 %v1532, %v1564
    %v1574 = vlaneseq
    %v1575 = vshrl.u32 %v1574, 7
    %v1576 = vsub.s32 0, %v1575
    %v1577 = vrot.slane %v1507, %v1576
    %v1578 = vlaneseq
    %v1579 = vshrl.u32 %v1578, 7
    %v1580 = vsub.s32 1, %v1579
    %v1581 = vrot.slane %v1507, %v1580
    %v1584 = vmul.f32 %v1565, %v1577
    %v1585 = vmul.f32 %v1566, %v1581
    %v1586 = vmul.f32 %v1567, %v1577
    %v1587 = vmul.f32 %v1568, %v1581
    %v1588 = vmul.f32 %v1569, %v1577
    %v1589 = vmul.f32 %v1570, %v1581
    %v1590 = vmul.f32 %v1571, %v1577
    %v1591 = vmul.f32 %v1572, %v1581
    %v1593 = vlaneseq
    %v1594 = vshrl.u32 %v1593, 7
    %v1595 = vsub.s32 0, %v1594
    %v1596 = vrot.slane %v1508, %v1595
    %v1597 = vlaneseq
    %v1598 = vshrl.u32 %v1597, 7
    %v1599 = vsub.s32 1, %v1598
    %v1600 = vrot.slane %v1508, %v1599
    %v1603 = vadd.f32 %v1584, %v1596
    %v1604 = vadd.f32 %v1585, %v1600
    %v1605 = vadd.f32 %v1586, %v1596
    %v1606 = vadd.f32 %v1587, %v1600
    %v1607 = vadd.f32 %v1588, %v1596
    %v1608 = vadd.f32 %v1589, %v1600
    %v1609 = vadd.f32 %v1590, %v1596
    %v1610 = vadd.f32 %v1591, %v1600
    %1611 = vst [vmem:[%s12] sm:$0xff] %v1603
    %1612 = vst [vmem:[%s12 + $0x8] sm:$0xff] %v1604
    %1613 = vst [vmem:[%s12 + $0x10] sm:$0xff] %v1605
    %1614 = vst [vmem:[%s12 + $0x18] sm:$0xff] %v1606
    %1615 = vst [vmem:[%s12 + $0x20] sm:$0xff] %v1607
    %1616 = vst [vmem:[%s12 + $0x28] sm:$0xff] %v1608
    %1617 = vst [vmem:[%s12 + $0x30] sm:$0xff] %v1609
    %1618 = vst [vmem:[%s12 + $0x38] sm:$0xff] %v1610
    // Predicated region
    $region54: #{transformer_forward.8} parent=1 // pred_check
      _
    $region55: #{transformer_forward.8} parent=1 // pred_check_branch
      %1620 = sbr.rel (0) target = $region57
    $region56: #{transformer_forward.8} parent=1 // pred_region
      _
    $region57: #{transformer_forward.8} parent=1 // pred_fallthru
      _
    // Predicated region
    $region58: #{transformer_forward.8} parent=1 // pred_check
      _
    $region59: #{transformer_forward.8} parent=1 // pred_check_branch
      %1622 = sbr.rel (0) target = $region61
    $region60: #{transformer_forward.8} parent=1 // pred_region
      _
    $region61: #{transformer_forward.8} parent=1 // pred_fallthru
      _
    %1623 = vsyncpa [#allocation3], 1

// kernel: transformer_forward.9
$region0: #{transformer_forward.9}
  #allocation0 [shape = 'u32[]', space=smem, size = 0x4, offset = 0x4, fixed_abs, tag = 'smem constant byte address 0x4 - core index']
  #allocation1 [shape = 'u32[144,128]{1,0:T(1,128)}', space=vmem, size = 0x12000, scoped, tag = 'internal scratch']
  %s0 = inlined_call_operand.vmem [shape: f32[32,256], index: 0, kind: input, shape index: {}]
  %s1 = inlined_call_operand.vmem [shape: f32[32,256], index: 1, kind: input, shape index: {}]
  %s2 = inlined_call_operand.vmem [shape: bf16[256,256], index: 2, kind: input, shape index: {}]
  %s3 = inlined_call_operand.vmem [shape: f32[1,256], index: 3, kind: input, shape index: {}]
  %s4 = inlined_call_operand.vmem [shape: bf16[256,256], index: 4, kind: input, shape index: {}]
  %s5 = inlined_call_operand.vmem [shape: f32[1,256], index: 5, kind: input, shape index: {}]
  %s6 = inlined_call_operand.vmem [shape: bf16[256,256], index: 6, kind: input, shape index: {}]
  %s7 = inlined_call_operand.vmem [shape: f32[1,256], index: 7, kind: input, shape index: {}]
  %s8 = inlined_call_operand.vmem [shape: bf16[32,256], index: 8, kind: output, shape index: {0}]
  %s9 = inlined_call_operand.vmem [shape: bf16[32,256], index: 9, kind: output, shape index: {1}]
  %s10 = inlined_call_operand.vmem [shape: bf16[32,256], index: 10, kind: output, shape index: {2}]
  %11 = xla_tuple %s8, %s9, %s10
  %s12 = sld [smem:[#allocation0]]
  $region58: #{transformer_forward.9} parent=0
    _
  %s14 = ssub.s32 1, %s12
  %s15 = scalar_select 0, %s14, %s12
  // Predicated region
  $region2: #{transformer_forward.9} parent=0 // pred_check
    _
  $region3: #{transformer_forward.9} parent=0 // pred_check_branch
    %17 = sbr.rel (0) target = $region5
  $region4: #{transformer_forward.9} parent=0 // pred_region
    _
  $region5: #{transformer_forward.9} parent=0 // pred_fallthru
    _
  // Predicated region
  $region6: #{transformer_forward.9} parent=0 // pred_check
    _
  $region7: #{transformer_forward.9} parent=0 // pred_check_branch
    %19 = sbr.rel (0) target = $region9
  $region8: #{transformer_forward.9} parent=0 // pred_region
    _
  $region9: #{transformer_forward.9} parent=0 // pred_fallthru
    _
  // Predicated region
  $region10: #{transformer_forward.9} parent=0 // pred_check
    _
  $region11: #{transformer_forward.9} parent=0 // pred_check_branch
    %21 = sbr.rel (0) target = $region13
  $region12: #{transformer_forward.9} parent=0 // pred_region
    _
  $region13: #{transformer_forward.9} parent=0 // pred_fallthru
    _
  // Predicated region
  $region14: #{transformer_forward.9} parent=0 // pred_check
    _
  $region15: #{transformer_forward.9} parent=0 // pred_check_branch
    %23 = sbr.rel (0) target = $region17
  $region16: #{transformer_forward.9} parent=0 // pred_region
    _
  $region17: #{transformer_forward.9} parent=0 // pred_fallthru
    _
  // Predicated region
  $region18: #{transformer_forward.9} parent=0 // pred_check
    _
  $region19: #{transformer_forward.9} parent=0 // pred_check_branch
    %25 = sbr.rel (0) target = $region21
  $region20: #{transformer_forward.9} parent=0 // pred_region
    _
  $region21: #{transformer_forward.9} parent=0 // pred_fallthru
    _
  // Predicated region
  $region22: #{transformer_forward.9} parent=0 // pred_check
    _
  $region23: #{transformer_forward.9} parent=0 // pred_check_branch
    %27 = sbr.rel (0) target = $region25
  $region24: #{transformer_forward.9} parent=0 // pred_region
    _
  $region25: #{transformer_forward.9} parent=0 // pred_fallthru
    _
  // Predicated region
  $region26: #{transformer_forward.9} parent=0 // pred_check
    _
  $region27: #{transformer_forward.9} parent=0 // pred_check_branch
    %29 = sbr.rel (0) target = $region29
  $region28: #{transformer_forward.9} parent=0 // pred_region
    _
  $region29: #{transformer_forward.9} parent=0 // pred_fallthru
    _
  // Predicated region
  $region30: #{transformer_forward.9} parent=0 // pred_check
    _
  $region31: #{transformer_forward.9} parent=0 // pred_check_branch
    %31 = sbr.rel (0) target = $region33
  $region32: #{transformer_forward.9} parent=0 // pred_region
    _
  $region33: #{transformer_forward.9} parent=0 // pred_fallthru
    _
  %v32 = vld [vmem:[%s0] sm:$0xff]
  %v33 = vld [vmem:[%s0 + $0x8] sm:$0xff]
  %v34 = vld [vmem:[%s0 + $0x10] sm:$0xff]
  %v35 = vld [vmem:[%s0 + $0x18] sm:$0xff]
  %v36 = vld [vmem:[%s0 + $0x20] sm:$0xff]
  %v37 = vld [vmem:[%s0 + $0x28] sm:$0xff]
  %v38 = vld [vmem:[%s0 + $0x30] sm:$0xff]
  %v39 = vld [vmem:[%s0 + $0x38] sm:$0xff]
  %v40 = vld [vmem:[%s1] sm:$0xff]
  %v41 = vld [vmem:[%s1 + $0x8] sm:$0xff]
  %v42 = vld [vmem:[%s1 + $0x10] sm:$0xff]
  %v43 = vld [vmem:[%s1 + $0x18] sm:$0xff]
  %v44 = vld [vmem:[%s1 + $0x20] sm:$0xff]
  %v45 = vld [vmem:[%s1 + $0x28] sm:$0xff]
  %v46 = vld [vmem:[%s1 + $0x30] sm:$0xff]
  %v47 = vld [vmem:[%s1 + $0x38] sm:$0xff]
  %v48 = vadd.f32 %v32, %v40
  %v49 = vadd.f32 %v33, %v41
  %v50 = vadd.f32 %v34, %v42
  %v51 = vadd.f32 %v35, %v43
  %v52 = vadd.f32 %v36, %v44
  %v53 = vadd.f32 %v37, %v45
  %v54 = vadd.f32 %v38, %v46
  %v55 = vadd.f32 %v39, %v47
  %v56 = vpack.c.bf16 %v50, %v48
  %v57 = vpack.c.bf16 %v51, %v49
  %v58 = vpack.c.bf16 %v54, %v52
  %v59 = vpack.c.bf16 %v55, %v53
  %v60 = vpack.c.bf16 %v34, %v32
  %v61 = vpack.c.bf16 %v35, %v33
  %v62 = vpack.c.bf16 %v38, %v36
  %v63 = vpack.c.bf16 %v39, %v37
  %v64 = vld [vmem:[%s2] sm:$0xff]
  %v65 = vld [vmem:[%s2 + $0x8] sm:$0xff]
  %v66 = vld [vmem:[%s2 + $0x10] sm:$0xff]
  %v67 = vld [vmem:[%s2 + $0x18] sm:$0xff]
  %v68 = vld [vmem:[%s2 + $0x20] sm:$0xff]
  %v69 = vld [vmem:[%s2 + $0x28] sm:$0xff]
  %v70 = vld [vmem:[%s2 + $0x30] sm:$0xff]
  %v71 = vld [vmem:[%s2 + $0x38] sm:$0xff]
  %v72 = vld [vmem:[%s2 + $0x40] sm:$0xff]
  %v73 = vld [vmem:[%s2 + $0x48] sm:$0xff]
  %v74 = vld [vmem:[%s2 + $0x50] sm:$0xff]
  %v75 = vld [vmem:[%s2 + $0x58] sm:$0xff]
  %v76 = vld [vmem:[%s2 + $0x60] sm:$0xff]
  %v77 = vld [vmem:[%s2 + $0x68] sm:$0xff]
  %v78 = vld [vmem:[%s2 + $0x70] sm:$0xff]
  %v79 = vld [vmem:[%s2 + $0x78] sm:$0xff]
  %v80 = vld [vmem:[%s2 + $0x80] sm:$0xff]
  %v81 = vld [vmem:[%s2 + $0x88] sm:$0xff]
  %v82 = vld [vmem:[%s2 + $0x90] sm:$0xff]
  %v83 = vld [vmem:[%s2 + $0x98] sm:$0xff]
  %v84 = vld [vmem:[%s2 + $0xa0] sm:$0xff]
  %v85 = vld [vmem:[%s2 + $0xa8] sm:$0xff]
  %v86 = vld [vmem:[%s2 + $0xb0] sm:$0xff]
  %v87 = vld [vmem:[%s2 + $0xb8] sm:$0xff]
  %v88 = vld [vmem:[%s2 + $0xc0] sm:$0xff]
  %v89 = vld [vmem:[%s2 + $0xc8] sm:$0xff]
  %v90 = vld [vmem:[%s2 + $0xd0] sm:$0xff]
  %v91 = vld [vmem:[%s2 + $0xd8] sm:$0xff]
  %v92 = vld [vmem:[%s2 + $0xe0] sm:$0xff]
  %v93 = vld [vmem:[%s2 + $0xe8] sm:$0xff]
  %v94 = vld [vmem:[%s2 + $0xf0] sm:$0xff]
  %v95 = vld [vmem:[%s2 + $0xf8] sm:$0xff]
  %v96 = vld [vmem:[%s3] sm:$0x3]
  %v98 = vlaneseq
  %v99 = vshrl.u32 %v98, 7
  %v100 = vsub.s32 0, %v99
  %v101 = vrot.slane %v96, %v100
  %v102 = vlaneseq
  %v103 = vshrl.u32 %v102, 7
  %v104 = vsub.s32 1, %v103
  %v105 = vrot.slane %v96, %v104
  %v140 = vunpack.c.l.b16 %v64
  %v141 = vunpack.c.h.b16 %v64
  %v142 = vunpack.c.l.b16 %v65
  %v143 = vunpack.c.h.b16 %v65
  %v144 = vunpack.c.l.b16 %v66
  %v145 = vunpack.c.h.b16 %v66
  %v146 = vunpack.c.l.b16 %v67
  %v147 = vunpack.c.h.b16 %v67
  %v148 = vunpack.c.l.b16 %v68
  %v149 = vunpack.c.h.b16 %v68
  %v150 = vunpack.c.l.b16 %v69
  %v151 = vunpack.c.h.b16 %v69
  %v152 = vunpack.c.l.b16 %v70
  %v153 = vunpack.c.h.b16 %v70
  %v154 = vunpack.c.l.b16 %v71
  %v155 = vunpack.c.h.b16 %v71
  %v156 = vunpack.c.l.b16 %v72
  %v157 = vunpack.c.h.b16 %v72
  %v158 = vunpack.c.l.b16 %v73
  %v159 = vunpack.c.h.b16 %v73
  %v160 = vunpack.c.l.b16 %v74
  %v161 = vunpack.c.h.b16 %v74
  %v162 = vunpack.c.l.b16 %v75
  %v163 = vunpack.c.h.b16 %v75
  %v164 = vunpack.c.l.b16 %v76
  %v165 = vunpack.c.h.b16 %v76
  %v166 = vunpack.c.l.b16 %v77
  %v167 = vunpack.c.h.b16 %v77
  %v168 = vunpack.c.l.b16 %v78
  %v169 = vunpack.c.h.b16 %v78
  %v170 = vunpack.c.l.b16 %v79
  %v171 = vunpack.c.h.b16 %v79
  %v172 = vunpack.c.l.b16 %v80
  %v173 = vunpack.c.h.b16 %v80
  %v174 = vunpack.c.l.b16 %v81
  %v175 = vunpack.c.h.b16 %v81
  %v176 = vunpack.c.l.b16 %v82
  %v177 = vunpack.c.h.b16 %v82
  %v178 = vunpack.c.l.b16 %v83
  %v179 = vunpack.c.h.b16 %v83
  %v180 = vunpack.c.l.b16 %v84
  %v181 = vunpack.c.h.b16 %v84
  %v182 = vunpack.c.l.b16 %v85
  %v183 = vunpack.c.h.b16 %v85
  %v184 = vunpack.c.l.b16 %v86
  %v185 = vunpack.c.h.b16 %v86
  %v186 = vunpack.c.l.b16 %v87
  %v187 = vunpack.c.h.b16 %v87
  %v188 = vunpack.c.l.b16 %v88
  %v189 = vunpack.c.h.b16 %v88
  %v190 = vunpack.c.l.b16 %v89
  %v191 = vunpack.c.h.b16 %v89
  %v192 = vunpack.c.l.b16 %v90
  %v193 = vunpack.c.h.b16 %v90
  %v194 = vunpack.c.l.b16 %v91
  %v195 = vunpack.c.h.b16 %v91
  %v196 = vunpack.c.l.b16 %v92
  %v197 = vunpack.c.h.b16 %v92
  %v198 = vunpack.c.l.b16 %v93
  %v199 = vunpack.c.h.b16 %v93
  %v200 = vunpack.c.l.b16 %v94
  %v201 = vunpack.c.h.b16 %v94
  %v202 = vunpack.c.l.b16 %v95
  %v203 = vunpack.c.h.b16 %v95
  %v204 = vpack.c.b16 %v142, %v140
  %v205 = vpack.c.b16 %v143, %v141
  %v206 = vpack.c.b16 %v146, %v144
  %v207 = vpack.c.b16 %v147, %v145
  %v208 = vpack.c.b16 %v150, %v148
  %v209 = vpack.c.b16 %v151, %v149
  %v210 = vpack.c.b16 %v154, %v152
  %v211 = vpack.c.b16 %v155, %v153
  %v212 = vpack.c.b16 %v158, %v156
  %v213 = vpack.c.b16 %v159, %v157
  %v214 = vpack.c.b16 %v162, %v160
  %v215 = vpack.c.b16 %v163, %v161
  %v216 = vpack.c.b16 %v166, %v164
  %v217 = vpack.c.b16 %v167, %v165
  %v218 = vpack.c.b16 %v170, %v168
  %v219 = vpack.c.b16 %v171, %v169
  %v220 = vpack.c.b16 %v174, %v172
  %v221 = vpack.c.b16 %v175, %v173
  %v222 = vpack.c.b16 %v178, %v176
  %v223 = vpack.c.b16 %v179, %v177
  %v224 = vpack.c.b16 %v182, %v180
  %v225 = vpack.c.b16 %v183, %v181
  %v226 = vpack.c.b16 %v186, %v184
  %v227 = vpack.c.b16 %v187, %v185
  %v228 = vpack.c.b16 %v190, %v188
  %v229 = vpack.c.b16 %v191, %v189
  %v230 = vpack.c.b16 %v194, %v192
  %v231 = vpack.c.b16 %v195, %v193
  %v232 = vpack.c.b16 %v198, %v196
  %v233 = vpack.c.b16 %v199, %v197
  %v234 = vpack.c.b16 %v202, %v200
  %v235 = vpack.c.b16 %v203, %v201
  %268 = vmatprep.subr.bf16.mxu0 %v205
  %269 = vmatpush1.bf16.msra.mxu0 %v204
  %270 = vmatprep.subr.bf16.mxu0 %v207
  %271 = vmatpush1.bf16.msra.mxu0 %v206
  %272 = vmatprep.subr.bf16.mxu0 %v209
  %273 = vmatpush1.bf16.msra.mxu0 %v208
  %274 = vmatprep.subr.bf16.mxu0 %v211
  %275 = vmatpush1.bf16.msra.mxu0 %v210
  %276 = vmatprep.subr.bf16.mxu0 %v213
  %277 = vmatpush1.bf16.msra.mxu0 %v212
  %278 = vmatprep.subr.bf16.mxu0 %v215
  %279 = vmatpush1.bf16.msra.mxu0 %v214
  %280 = vmatprep.subr.bf16.mxu0 %v217
  %281 = vmatpush1.bf16.msra.mxu0 %v216
  %282 = vmatprep.subr.bf16.mxu0 %v219
  %283 = vmatpush1.bf16.msra.mxu0 %v218
  %284 = vmatprep.subr.bf16.mxu0 %v221
  %285 = vmatpush1.bf16.msra.mxu0 %v220
  %286 = vmatprep.subr.bf16.mxu0 %v223
  %287 = vmatpush1.bf16.msra.mxu0 %v222
  %288 = vmatprep.subr.bf16.mxu0 %v225
  %289 = vmatpush1.bf16.msra.mxu0 %v224
  %290 = vmatprep.subr.bf16.mxu0 %v227
  %291 = vmatpush1.bf16.msra.mxu0 %v226
  %292 = vmatprep.subr.bf16.mxu0 %v229
  %293 = vmatpush1.bf16.msra.mxu0 %v228
  %294 = vmatprep.subr.bf16.mxu0 %v231
  %295 = vmatpush1.bf16.msra.mxu0 %v230
  %296 = vmatprep.subr.bf16.mxu0 %v233
  %297 = vmatpush1.bf16.msra.mxu0 %v232
  %298 = vmatprep.subr.bf16.mxu0 %v235
  %299 = vmatpush1.bf16.msra.mxu0 %v234
  %300 = vmatprep.mubr.bf16.mxu0 %v57
  %301 = vmatmul.mubr.bf16.gmra.mrb[0].mxu0 %v56
  %v302 = vpop.f32.mrb[0].mxu0
  %v303 = vadd.f32 %v101, %v302
  %v304 = vpop.f32.mrb[0].mxu0
  %v305 = vadd.f32 %v105, %v304
  %v306 = vpop.f32.mrb[0].mxu0
  %v307 = vadd.f32 %v101, %v306
  %v308 = vpop.f32.mrb[0].mxu0
  %v309 = vadd.f32 %v105, %v308
  %310 = vmatprep.mubr.bf16.mxu0 %v59
  %311 = vmatmul.mubr.bf16.gmra.mrb[0].mxu0 %v58
  %v312 = vpop.f32.mrb[0].mxu0
  %v313 = vadd.f32 %v101, %v312
  %v314 = vpop.f32.mrb[0].mxu0
  %v315 = vadd.f32 %v105, %v314
  %v316 = vpop.f32.mrb[0].mxu0
  %v317 = vadd.f32 %v101, %v316
  %v318 = vpop.f32.mrb[0].mxu0
  %v319 = vadd.f32 %v105, %v318
  %320 = vdwg.mxu0
  %v321 = vld [vmem:[%s4] sm:$0xff]
  %v322 = vld [vmem:[%s4 + $0x8] sm:$0xff]
  %v323 = vld [vmem:[%s4 + $0x10] sm:$0xff]
  %v324 = vld [vmem:[%s4 + $0x18] sm:$0xff]
  %v325 = vld [vmem:[%s4 + $0x20] sm:$0xff]
  %v326 = vld [vmem:[%s4 + $0x28] sm:$0xff]
  %v327 = vld [vmem:[%s4 + $0x30] sm:$0xff]
  %v328 = vld [vmem:[%s4 + $0x38] sm:$0xff]
  %v329 = vld [vmem:[%s4 + $0x40] sm:$0xff]
  %v330 = vld [vmem:[%s4 + $0x48] sm:$0xff]
  %v331 = vld [vmem:[%s4 + $0x50] sm:$0xff]
  %v332 = vld [vmem:[%s4 + $0x58] sm:$0xff]
  %v333 = vld [vmem:[%s4 + $0x60] sm:$0xff]
  %v334 = vld [vmem:[%s4 + $0x68] sm:$0xff]
  %v335 = vld [vmem:[%s4 + $0x70] sm:$0xff]
  %v336 = vld [vmem:[%s4 + $0x78] sm:$0xff]
  %v337 = vld [vmem:[%s4 + $0x80] sm:$0xff]
  %v338 = vld [vmem:[%s4 + $0x88] sm:$0xff]
  %v339 = vld [vmem:[%s4 + $0x90] sm:$0xff]
  %v340 = vld [vmem:[%s4 + $0x98] sm:$0xff]
  %v341 = vld [vmem:[%s4 + $0xa0] sm:$0xff]
  %v342 = vld [vmem:[%s4 + $0xa8] sm:$0xff]
  %v343 = vld [vmem:[%s4 + $0xb0] sm:$0xff]
  %v344 = vld [vmem:[%s4 + $0xb8] sm:$0xff]
  %v345 = vld [vmem:[%s4 + $0xc0] sm:$0xff]
  %v346 = vld [vmem:[%s4 + $0xc8] sm:$0xff]
  %v347 = vld [vmem:[%s4 + $0xd0] sm:$0xff]
  %v348 = vld [vmem:[%s4 + $0xd8] sm:$0xff]
  %v349 = vld [vmem:[%s4 + $0xe0] sm:$0xff]
  %v350 = vld [vmem:[%s4 + $0xe8] sm:$0xff]
  %v351 = vld [vmem:[%s4 + $0xf0] sm:$0xff]
  %v352 = vld [vmem:[%s4 + $0xf8] sm:$0xff]
  %v353 = vld [vmem:[%s5] sm:$0x3]
  %v355 = vlaneseq
  %v356 = vshrl.u32 %v355, 7
  %v357 = vsub.s32 0, %v356
  %v358 = vrot.slane %v353, %v357
  %v359 = vlaneseq
  %v360 = vshrl.u32 %v359, 7
  %v361 = vsub.s32 1, %v360
  %v362 = vrot.slane %v353, %v361
  %v397 = vunpack.c.l.b16 %v321
  %v398 = vunpack.c.h.b16 %v321
  %v399 = vunpack.c.l.b16 %v322
  %v400 = vunpack.c.h.b16 %v322
  %v401 = vunpack.c.l.b16 %v323
  %v402 = vunpack.c.h.b16 %v323
  %v403 = vunpack.c.l.b16 %v324
  %v404 = vunpack.c.h.b16 %v324
  %v405 = vunpack.c.l.b16 %v325
  %v406 = vunpack.c.h.b16 %v325
  %v407 = vunpack.c.l.b16 %v326
  %v408 = vunpack.c.h.b16 %v326
  %v409 = vunpack.c.l.b16 %v327
  %v410 = vunpack.c.h.b16 %v327
  %v411 = vunpack.c.l.b16 %v328
  %v412 = vunpack.c.h.b16 %v328
  %v413 = vunpack.c.l.b16 %v329
  %v414 = vunpack.c.h.b16 %v329
  %v415 = vunpack.c.l.b16 %v330
  %v416 = vunpack.c.h.b16 %v330
  %v417 = vunpack.c.l.b16 %v331
  %v418 = vunpack.c.h.b16 %v331
  %v419 = vunpack.c.l.b16 %v332
  %v420 = vunpack.c.h.b16 %v332
  %v421 = vunpack.c.l.b16 %v333
  %v422 = vunpack.c.h.b16 %v333
  %v423 = vunpack.c.l.b16 %v334
  %v424 = vunpack.c.h.b16 %v334
  %v425 = vunpack.c.l.b16 %v335
  %v426 = vunpack.c.h.b16 %v335
  %v427 = vunpack.c.l.b16 %v336
  %v428 = vunpack.c.h.b16 %v336
  %v429 = vunpack.c.l.b16 %v337
  %v430 = vunpack.c.h.b16 %v337
  %v431 = vunpack.c.l.b16 %v338
  %v432 = vunpack.c.h.b16 %v338
  %v433 = vunpack.c.l.b16 %v339
  %v434 = vunpack.c.h.b16 %v339
  %v435 = vunpack.c.l.b16 %v340
  %v436 = vunpack.c.h.b16 %v340
  %v437 = vunpack.c.l.b16 %v341
  %v438 = vunpack.c.h.b16 %v341
  %v439 = vunpack.c.l.b16 %v342
  %v440 = vunpack.c.h.b16 %v342
  %v441 = vunpack.c.l.b16 %v343
  %v442 = vunpack.c.h.b16 %v343
  %v443 = vunpack.c.l.b16 %v344
  %v444 = vunpack.c.h.b16 %v344
  %v445 = vunpack.c.l.b16 %v345
  %v446 = vunpack.c.h.b16 %v345
  %v447 = vunpack.c.l.b16 %v346
  %v448 = vunpack.c.h.b16 %v346
  %v449 = vunpack.c.l.b16 %v347
  %v450 = vunpack.c.h.b16 %v347
  %v451 = vunpack.c.l.b16 %v348
  %v452 = vunpack.c.h.b16 %v348
  %v453 = vunpack.c.l.b16 %v349
  %v454 = vunpack.c.h.b16 %v349
  %v455 = vunpack.c.l.b16 %v350
  %v456 = vunpack.c.h.b16 %v350
  %v457 = vunpack.c.l.b16 %v351
  %v458 = vunpack.c.h.b16 %v351
  %v459 = vunpack.c.l.b16 %v352
  %v460 = vunpack.c.h.b16 %v352
  %v461 = vpack.c.b16 %v399, %v397
  %v462 = vpack.c.b16 %v400, %v398
  %v463 = vpack.c.b16 %v403, %v401
  %v464 = vpack.c.b16 %v404, %v402
  %v465 = vpack.c.b16 %v407, %v405
  %v466 = vpack.c.b16 %v408, %v406
  %v467 = vpack.c.b16 %v411, %v409
  %v468 = vpack.c.b16 %v412, %v410
  %v469 = vpack.c.b16 %v415, %v413
  %v470 = vpack.c.b16 %v416, %v414
  %v471 = vpack.c.b16 %v419, %v417
  %v472 = vpack.c.b16 %v420, %v418
  %v473 = vpack.c.b16 %v423, %v421
  %v474 = vpack.c.b16 %v424, %v422
  %v475 = vpack.c.b16 %v427, %v425
  %v476 = vpack.c.b16 %v428, %v426
  %v477 = vpack.c.b16 %v431, %v429
  %v478 = vpack.c.b16 %v432, %v430
  %v479 = vpack.c.b16 %v435, %v433
  %v480 = vpack.c.b16 %v436, %v434
  %v481 = vpack.c.b16 %v439, %v437
  %v482 = vpack.c.b16 %v440, %v438
  %v483 = vpack.c.b16 %v443, %v441
  %v484 = vpack.c.b16 %v444, %v442
  %v485 = vpack.c.b16 %v447, %v445
  %v486 = vpack.c.b16 %v448, %v446
  %v487 = vpack.c.b16 %v451, %v449
  %v488 = vpack.c.b16 %v452, %v450
  %v489 = vpack.c.b16 %v455, %v453
  %v490 = vpack.c.b16 %v456, %v454
  %v491 = vpack.c.b16 %v459, %v457
  %v492 = vpack.c.b16 %v460, %v458
  %525 = vmatprep.subr.bf16.mxu0 %v462
  %526 = vmatpush1.bf16.msra.mxu0 %v461
  %527 = vmatprep.subr.bf16.mxu0 %v464
  %528 = vmatpush1.bf16.msra.mxu0 %v463
  %529 = vmatprep.subr.bf16.mxu0 %v466
  %530 = vmatpush1.bf16.msra.mxu0 %v465
  %531 = vmatprep.subr.bf16.mxu0 %v468
  %532 = vmatpush1.bf16.msra.mxu0 %v467
  %533 = vmatprep.subr.bf16.mxu0 %v470
  %534 = vmatpush1.bf16.msra.mxu0 %v469
  %535 = vmatprep.subr.bf16.mxu0 %v472
  %536 = vmatpush1.bf16.msra.mxu0 %v471
  %537 = vmatprep.subr.bf16.mxu0 %v474
  %538 = vmatpush1.bf16.msra.mxu0 %v473
  %539 = vmatprep.subr.bf16.mxu0 %v476
  %540 = vmatpush1.bf16.msra.mxu0 %v475
  %541 = vmatprep.subr.bf16.mxu0 %v478
  %542 = vmatpush1.bf16.msra.mxu0 %v477
  %543 = vmatprep.subr.bf16.mxu0 %v480
  %544 = vmatpush1.bf16.msra.mxu0 %v479
  %545 = vmatprep.subr.bf16.mxu0 %v482
  %546 = vmatpush1.bf16.msra.mxu0 %v481
  %547 = vmatprep.subr.bf16.mxu0 %v484
  %548 = vmatpush1.bf16.msra.mxu0 %v483
  %549 = vmatprep.subr.bf16.mxu0 %v486
  %550 = vmatpush1.bf16.msra.mxu0 %v485
  %551 = vmatprep.subr.bf16.mxu0 %v488
  %552 = vmatpush1.bf16.msra.mxu0 %v487
  %553 = vmatprep.subr.bf16.mxu0 %v490
  %554 = vmatpush1.bf16.msra.mxu0 %v489
  %555 = vmatprep.subr.bf16.mxu0 %v492
  %556 = vmatpush1.bf16.msra.mxu0 %v491
  %557 = vmatprep.mubr.bf16.mxu0 %v57
  %558 = vmatmul.mubr.bf16.gmra.mrb[0].mxu0 %v56
  %v559 = vpop.f32.mrb[0].mxu0
  %v560 = vadd.f32 %v358, %v559
  %v561 = vpop.f32.mrb[0].mxu0
  %v562 = vadd.f32 %v362, %v561
  %v563 = vpop.f32.mrb[0].mxu0
  %v564 = vadd.f32 %v358, %v563
  %v565 = vpop.f32.mrb[0].mxu0
  %v566 = vadd.f32 %v362, %v565
  %567 = vmatprep.mubr.bf16.mxu0 %v59
  %568 = vmatmul.mubr.bf16.gmra.mrb[0].mxu0 %v58
  %v569 = vpop.f32.mrb[0].mxu0
  %v570 = vadd.f32 %v358, %v569
  %v571 = vpop.f32.mrb[0].mxu0
  %v572 = vadd.f32 %v362, %v571
  %v573 = vpop.f32.mrb[0].mxu0
  %v574 = vadd.f32 %v358, %v573
  %v575 = vpop.f32.mrb[0].mxu0
  %v576 = vadd.f32 %v362, %v575
  %577 = vdwg.mxu0
  %v578 = vld [vmem:[%s6] sm:$0xff]
  %v579 = vld [vmem:[%s6 + $0x8] sm:$0xff]
  %v580 = vld [vmem:[%s6 + $0x10] sm:$0xff]
  %v581 = vld [vmem:[%s6 + $0x18] sm:$0xff]
  %v582 = vld [vmem:[%s6 + $0x20] sm:$0xff]
  %v583 = vld [vmem:[%s6 + $0x28] sm:$0xff]
  %v584 = vld [vmem:[%s6 + $0x30] sm:$0xff]
  %v585 = vld [vmem:[%s6 + $0x38] sm:$0xff]
  %v586 = vld [vmem:[%s6 + $0x40] sm:$0xff]
  %v587 = vld [vmem:[%s6 + $0x48] sm:$0xff]
  %v588 = vld [vmem:[%s6 + $0x50] sm:$0xff]
  %v589 = vld [vmem:[%s6 + $0x58] sm:$0xff]
  %v590 = vld [vmem:[%s6 + $0x60] sm:$0xff]
  %v591 = vld [vmem:[%s6 + $0x68] sm:$0xff]
  %v592 = vld [vmem:[%s6 + $0x70] sm:$0xff]
  %v593 = vld [vmem:[%s6 + $0x78] sm:$0xff]
  %v594 = vld [vmem:[%s6 + $0x80] sm:$0xff]
  %v595 = vld [vmem:[%s6 + $0x88] sm:$0xff]
  %v596 = vld [vmem:[%s6 + $0x90] sm:$0xff]
  %v597 = vld [vmem:[%s6 + $0x98] sm:$0xff]
  %v598 = vld [vmem:[%s6 + $0xa0] sm:$0xff]
  %v599 = vld [vmem:[%s6 + $0xa8] sm:$0xff]
  %v600 = vld [vmem:[%s6 + $0xb0] sm:$0xff]
  %v601 = vld [vmem:[%s6 + $0xb8] sm:$0xff]
  %v602 = vld [vmem:[%s6 + $0xc0] sm:$0xff]
  %v603 = vld [vmem:[%s6 + $0xc8] sm:$0xff]
  %v604 = vld [vmem:[%s6 + $0xd0] sm:$0xff]
  %v605 = vld [vmem:[%s6 + $0xd8] sm:$0xff]
  %v606 = vld [vmem:[%s6 + $0xe0] sm:$0xff]
  %v607 = vld [vmem:[%s6 + $0xe8] sm:$0xff]
  %v608 = vld [vmem:[%s6 + $0xf0] sm:$0xff]
  %v609 = vld [vmem:[%s6 + $0xf8] sm:$0xff]
  %v610 = vld [vmem:[%s7] sm:$0x3]
  %v612 = vlaneseq
  %v613 = vshrl.u32 %v612, 7
  %v614 = vsub.s32 0, %v613
  %v615 = vrot.slane %v610, %v614
  %v616 = vlaneseq
  %v617 = vshrl.u32 %v616, 7
  %v618 = vsub.s32 1, %v617
  %v619 = vrot.slane %v610, %v618
  %v654 = vunpack.c.l.b16 %v578
  %v655 = vunpack.c.h.b16 %v578
  %v656 = vunpack.c.l.b16 %v579
  %v657 = vunpack.c.h.b16 %v579
  %v658 = vunpack.c.l.b16 %v580
  %v659 = vunpack.c.h.b16 %v580
  %v660 = vunpack.c.l.b16 %v581
  %v661 = vunpack.c.h.b16 %v581
  %v662 = vunpack.c.l.b16 %v582
  %v663 = vunpack.c.h.b16 %v582
  %v664 = vunpack.c.l.b16 %v583
  %v665 = vunpack.c.h.b16 %v583
  %v666 = vunpack.c.l.b16 %v584
  %v667 = vunpack.c.h.b16 %v584
  %v668 = vunpack.c.l.b16 %v585
  %v669 = vunpack.c.h.b16 %v585
  %v670 = vunpack.c.l.b16 %v586
  %v671 = vunpack.c.h.b16 %v586
  %v672 = vunpack.c.l.b16 %v587
  %v673 = vunpack.c.h.b16 %v587
  %v674 = vunpack.c.l.b16 %v588
  %v675 = vunpack.c.h.b16 %v588
  %v676 = vunpack.c.l.b16 %v589
  %v677 = vunpack.c.h.b16 %v589
  %v678 = vunpack.c.l.b16 %v590
  %v679 = vunpack.c.h.b16 %v590
  %v680 = vunpack.c.l.b16 %v591
  %v681 = vunpack.c.h.b16 %v591
  %v682 = vunpack.c.l.b16 %v592
  %v683 = vunpack.c.h.b16 %v592
  %v684 = vunpack.c.l.b16 %v593
  %v685 = vunpack.c.h.b16 %v593
  %v686 = vunpack.c.l.b16 %v594
  %v687 = vunpack.c.h.b16 %v594
  %v688 = vunpack.c.l.b16 %v595
  %v689 = vunpack.c.h.b16 %v595
  %v690 = vunpack.c.l.b16 %v596
  %v691 = vunpack.c.h.b16 %v596
  %v692 = vunpack.c.l.b16 %v597
  %v693 = vunpack.c.h.b16 %v597
  %v694 = vunpack.c.l.b16 %v598
  %v695 = vunpack.c.h.b16 %v598
  %v696 = vunpack.c.l.b16 %v599
  %v697 = vunpack.c.h.b16 %v599
  %v698 = vunpack.c.l.b16 %v600
  %v699 = vunpack.c.h.b16 %v600
  %v700 = vunpack.c.l.b16 %v601
  %v701 = vunpack.c.h.b16 %v601
  %v702 = vunpack.c.l.b16 %v602
  %v703 = vunpack.c.h.b16 %v602
  %v704 = vunpack.c.l.b16 %v603
  %v705 = vunpack.c.h.b16 %v603
  %v706 = vunpack.c.l.b16 %v604
  %v707 = vunpack.c.h.b16 %v604
  %v708 = vunpack.c.l.b16 %v605
  %v709 = vunpack.c.h.b16 %v605
  %v710 = vunpack.c.l.b16 %v606
  %v711 = vunpack.c.h.b16 %v606
  %v712 = vunpack.c.l.b16 %v607
  %v713 = vunpack.c.h.b16 %v607
  %v714 = vunpack.c.l.b16 %v608
  %v715 = vunpack.c.h.b16 %v608
  %v716 = vunpack.c.l.b16 %v609
  %v717 = vunpack.c.h.b16 %v609
  %v718 = vpack.c.b16 %v656, %v654
  %v719 = vpack.c.b16 %v657, %v655
  %v720 = vpack.c.b16 %v660, %v658
  %v721 = vpack.c.b16 %v661, %v659
  %v722 = vpack.c.b16 %v664, %v662
  %v723 = vpack.c.b16 %v665, %v663
  %v724 = vpack.c.b16 %v668, %v666
  %v725 = vpack.c.b16 %v669, %v667
  %v726 = vpack.c.b16 %v672, %v670
  %v727 = vpack.c.b16 %v673, %v671
  %v728 = vpack.c.b16 %v676, %v674
  %v729 = vpack.c.b16 %v677, %v675
  %v730 = vpack.c.b16 %v680, %v678
  %v731 = vpack.c.b16 %v681, %v679
  %v732 = vpack.c.b16 %v684, %v682
  %v733 = vpack.c.b16 %v685, %v683
  %v734 = vpack.c.b16 %v688, %v686
  %v735 = vpack.c.b16 %v689, %v687
  %v736 = vpack.c.b16 %v692, %v690
  %v737 = vpack.c.b16 %v693, %v691
  %v738 = vpack.c.b16 %v696, %v694
  %v739 = vpack.c.b16 %v697, %v695
  %v740 = vpack.c.b16 %v700, %v698
  %v741 = vpack.c.b16 %v701, %v699
  %v742 = vpack.c.b16 %v704, %v702
  %v743 = vpack.c.b16 %v705, %v703
  %v744 = vpack.c.b16 %v708, %v706
  %v745 = vpack.c.b16 %v709, %v707
  %v746 = vpack.c.b16 %v712, %v710
  %v747 = vpack.c.b16 %v713, %v711
  %v748 = vpack.c.b16 %v716, %v714
  %v749 = vpack.c.b16 %v717, %v715
  %782 = vmatprep.subr.bf16.mxu0 %v719
  %783 = vmatpush1.bf16.msra.mxu0 %v718
  %784 = vmatprep.subr.bf16.mxu0 %v721
  %785 = vmatpush1.bf16.msra.mxu0 %v720
  %786 = vmatprep.subr.bf16.mxu0 %v723
  %787 = vmatpush1.bf16.msra.mxu0 %v722
  %788 = vmatprep.subr.bf16.mxu0 %v725
  %789 = vmatpush1.bf16.msra.mxu0 %v724
  %790 = vmatprep.subr.bf16.mxu0 %v727
  %791 = vmatpush1.bf16.msra.mxu0 %v726
  %792 = vmatprep.subr.bf16.mxu0 %v729
  %793 = vmatpush1.bf16.msra.mxu0 %v728
  %794 = vmatprep.subr.bf16.mxu0 %v731
  %795 = vmatpush1.bf16.msra.mxu0 %v730
  %796 = vmatprep.subr.bf16.mxu0 %v733
  %797 = vmatpush1.bf16.msra.mxu0 %v732
  %798 = vmatprep.subr.bf16.mxu0 %v735
  %799 = vmatpush1.bf16.msra.mxu0 %v734
  %800 = vmatprep.subr.bf16.mxu0 %v737
  %801 = vmatpush1.bf16.msra.mxu0 %v736
  %802 = vmatprep.subr.bf16.mxu0 %v739
  %803 = vmatpush1.bf16.msra.mxu0 %v738
  %804 = vmatprep.subr.bf16.mxu0 %v741
  %805 = vmatpush1.bf16.msra.mxu0 %v740
  %806 = vmatprep.subr.bf16.mxu0 %v743
  %807 = vmatpush1.bf16.msra.mxu0 %v742
  %808 = vmatprep.subr.bf16.mxu0 %v745
  %809 = vmatpush1.bf16.msra.mxu0 %v744
  %810 = vmatprep.subr.bf16.mxu0 %v747
  %811 = vmatpush1.bf16.msra.mxu0 %v746
  %812 = vmatprep.subr.bf16.mxu0 %v749
  %813 = vmatpush1.bf16.msra.mxu0 %v748
  %814 = vmatprep.mubr.bf16.mxu0 %v61
  %815 = vmatmul.mubr.bf16.gmra.mrb[0].mxu0 %v60
  %v816 = vpop.f32.mrb[0].mxu0
  %v817 = vadd.f32 %v615, %v816
  %v818 = vpop.f32.mrb[0].mxu0
  %v819 = vadd.f32 %v619, %v818
  %v820 = vpop.f32.mrb[0].mxu0
  %v821 = vadd.f32 %v615, %v820
  %v822 = vpop.f32.mrb[0].mxu0
  %v823 = vadd.f32 %v619, %v822
  %824 = vmatprep.mubr.bf16.mxu0 %v63
  %825 = vmatmul.mubr.bf16.gmra.mrb[0].mxu0 %v62
  %v826 = vpop.f32.mrb[0].mxu0
  %v827 = vadd.f32 %v615, %v826
  %v828 = vpop.f32.mrb[0].mxu0
  %v829 = vadd.f32 %v619, %v828
  %v830 = vpop.f32.mrb[0].mxu0
  %v831 = vadd.f32 %v615, %v830
  %v832 = vpop.f32.mrb[0].mxu0
  %v833 = vadd.f32 %v619, %v832
  %834 = vdwg.mxu0
  %v835 = vpack.c.bf16 %v307, %v303
  %v836 = vpack.c.bf16 %v309, %v305
  %v837 = vpack.c.bf16 %v317, %v313
  %v838 = vpack.c.bf16 %v319, %v315
  %v843 = vunpack.c.l.b16 %v835
  %v844 = vunpack.c.l.b16 %v836
  %v845 = vunpack.c.h.b16 %v835
  %v846 = vunpack.c.h.b16 %v836
  %v847 = vunpack.c.l.b16 %v837
  %v848 = vunpack.c.l.b16 %v838
  %v849 = vunpack.c.h.b16 %v837
  %v850 = vunpack.c.h.b16 %v838
  %v851 = vpack.c.b16 %v844, %v843
  %v852 = vpack.c.b16 %v846, %v845
  %v853 = vpack.c.b16 %v848, %v847
  %v854 = vpack.c.b16 %v850, %v849
  %859 = vst [vmem:[%s8] sm:$0xff] %v851
  %860 = vst [vmem:[%s8 + $0x8] sm:$0xff] %v852
  %861 = vst [vmem:[%s8 + $0x10] sm:$0xff] %v853
  %862 = vst [vmem:[%s8 + $0x18] sm:$0xff] %v854
  %v863 = vpack.c.bf16 %v564, %v560
  %v864 = vpack.c.bf16 %v566, %v562
  %v865 = vpack.c.bf16 %v574, %v570
  %v866 = vpack.c.bf16 %v576, %v572
  %v871 = vunpack.c.l.b16 %v863
  %v872 = vunpack.c.l.b16 %v864
  %v873 = vunpack.c.h.b16 %v863
  %v874 = vunpack.c.h.b16 %v864
  %v875 = vunpack.c.l.b16 %v865
  %v876 = vunpack.c.l.b16 %v866
  %v877 = vunpack.c.h.b16 %v865
  %v878 = vunpack.c.h.b16 %v866
  %v879 = vpack.c.b16 %v872, %v871
  %v880 = vpack.c.b16 %v874, %v873
  %v881 = vpack.c.b16 %v876, %v875
  %v882 = vpack.c.b16 %v878, %v877
  %887 = vst [vmem:[%s9] sm:$0xff] %v879
  %888 = vst [vmem:[%s9 + $0x8] sm:$0xff] %v880
  %889 = vst [vmem:[%s9 + $0x10] sm:$0xff] %v881
  %890 = vst [vmem:[%s9 + $0x18] sm:$0xff] %v882
  %v891 = vpack.c.bf16 %v821, %v817
  %v892 = vpack.c.bf16 %v823, %v819
  %v893 = vpack.c.bf16 %v831, %v827
  %v894 = vpack.c.bf16 %v833, %v829
  %v899 = vunpack.c.l.b16 %v891
  %v900 = vunpack.c.l.b16 %v892
  %v901 = vunpack.c.h.b16 %v891
  %v902 = vunpack.c.h.b16 %v892
  %v903 = vunpack.c.l.b16 %v893
  %v904 = vunpack.c.l.b16 %v894
  %v905 = vunpack.c.h.b16 %v893
  %v906 = vunpack.c.h.b16 %v894
  %v907 = vpack.c.b16 %v900, %v899
  %v908 = vpack.c.b16 %v902, %v901
  %v909 = vpack.c.b16 %v904, %v903
  %v910 = vpack.c.b16 %v906, %v905
  %915 = vst [vmem:[%s10] sm:$0xff] %v907
  %916 = vst [vmem:[%s10 + $0x8] sm:$0xff] %v908
  %917 = vst [vmem:[%s10 + $0x10] sm:$0xff] %v909
  %918 = vst [vmem:[%s10 + $0x18] sm:$0xff] %v910
  // Predicated region
  $region34: #{transformer_forward.9} parent=0 // pred_check
    _
  $region35: #{transformer_forward.9} parent=0 // pred_check_branch
    %920 = sbr.rel (0) target = $region37
  $region36: #{transformer_forward.9} parent=0 // pred_region
    _
  $region37: #{transformer_forward.9} parent=0 // pred_fallthru
    _
  // Predicated region
  $region38: #{transformer_forward.9} parent=0 // pred_check
    _
  $region39: #{transformer_forward.9} parent=0 // pred_check_branch
    %922 = sbr.rel (0) target = $region41
  $region40: #{transformer_forward.9} parent=0 // pred_region
    _
  $region41: #{transformer_forward.9} parent=0 // pred_fallthru
    _
  // Predicated region
  $region42: #{transformer_forward.9} parent=0 // pred_check
    _
  $region43: #{transformer_forward.9} parent=0 // pred_check_branch
    %924 = sbr.rel (0) target = $region45
  $region44: #{transformer_forward.9} parent=0 // pred_region
    _
  $region45: #{transformer_forward.9} parent=0 // pred_fallthru
    _
  // Predicated region
  $region46: #{transformer_forward.9} parent=0 // pred_check
    _
  $region47: #{transformer_forward.9} parent=0 // pred_check_branch
    %926 = sbr.rel (0) target = $region49
  $region48: #{transformer_forward.9} parent=0 // pred_region
    _
  $region49: #{transformer_forward.9} parent=0 // pred_fallthru
    _
  // Predicated region
  $region50: #{transformer_forward.9} parent=0 // pred_check
    _
  $region51: #{transformer_forward.9} parent=0 // pred_check_branch
    %928 = sbr.rel (0) target = $region53
  $region52: #{transformer_forward.9} parent=0 // pred_region
    _
  $region53: #{transformer_forward.9} parent=0 // pred_fallthru
    _
  // Predicated region
  $region54: #{transformer_forward.9} parent=0 // pred_check
    _
  $region55: #{transformer_forward.9} parent=0 // pred_check_branch
    %930 = sbr.rel (0) target = $region57
  $region56: #{transformer_forward.9} parent=0 // pred_region
    _
  $region57: #{transformer_forward.9} parent=0 // pred_fallthru
    _

// kernel: transformer_forward.11
$region0: #{transformer_forward.11}
  #allocation0 [shape = 'u32[]', space=smem, size = 0x4, offset = 0x4, fixed_abs, tag = 'smem constant byte address 0x4 - core index']
  #allocation1 [shape = 'u32[144,128]{1,0:T(1,128)}', space=vmem, size = 0x12000, scoped, tag = 'internal scratch']
  %s0 = inlined_call_operand.vmem [shape: f32[32,256], index: 0, kind: input, shape index: {}]
  %s1 = inlined_call_operand.vmem [shape: bf16[32,256], index: 1, kind: input, shape index: {}]
  %s2 = inlined_call_operand.vmem [shape: bf16[256,256], index: 2, kind: input, shape index: {}]
  %s3 = inlined_call_operand.vmem [shape: f32[1,256], index: 3, kind: input, shape index: {}]
  %s4 = inlined_call_operand.vmem [shape: bf16[256,512], index: 4, kind: input, shape index: {}]
  %s5 = inlined_call_operand.vmem [shape: f32[1,512], index: 5, kind: input, shape index: {}]
  %s6 = inlined_call_operand.vmem [shape: bf16[512,256], index: 6, kind: input, shape index: {}]
  %s7 = inlined_call_operand.vmem [shape: f32[1,256], index: 7, kind: input, shape index: {}]
  %s8 = inlined_call_operand.vmem [shape: f32[1,256], index: 8, kind: input, shape index: {}]
  %s9 = inlined_call_operand.vmem [shape: f32[1,256], index: 9, kind: input, shape index: {}]
  %s10 = inlined_call_operand.vmem [shape: f32[1,256], index: 10, kind: input, shape index: {}]
  %s11 = inlined_call_operand.vmem [shape: f32[1,256], index: 11, kind: input, shape index: {}]
  %s12 = inlined_call_operand.vmem [shape: f32[32,256], index: 12, kind: output, shape index: {}]
  %s13 = sld [smem:[#allocation0]]
  $region58: #{transformer_forward.11} parent=0
    _
  %s15 = ssub.s32 1, %s13
  %s16 = scalar_select 0, %s15, %s13
  // Predicated region
  $region2: #{transformer_forward.11} parent=0 // pred_check
    _
  $region3: #{transformer_forward.11} parent=0 // pred_check_branch
    %18 = sbr.rel (0) target = $region5
  $region4: #{transformer_forward.11} parent=0 // pred_region
    _
  $region5: #{transformer_forward.11} parent=0 // pred_fallthru
    _
  // Predicated region
  $region6: #{transformer_forward.11} parent=0 // pred_check
    _
  $region7: #{transformer_forward.11} parent=0 // pred_check_branch
    %20 = sbr.rel (0) target = $region9
  $region8: #{transformer_forward.11} parent=0 // pred_region
    _
  $region9: #{transformer_forward.11} parent=0 // pred_fallthru
    _
  // Predicated region
  $region10: #{transformer_forward.11} parent=0 // pred_check
    _
  $region11: #{transformer_forward.11} parent=0 // pred_check_branch
    %22 = sbr.rel (0) target = $region13
  $region12: #{transformer_forward.11} parent=0 // pred_region
    _
  $region13: #{transformer_forward.11} parent=0 // pred_fallthru
    _
  // Predicated region
  $region14: #{transformer_forward.11} parent=0 // pred_check
    _
  $region15: #{transformer_forward.11} parent=0 // pred_check_branch
    %24 = sbr.rel (0) target = $region17
  $region16: #{transformer_forward.11} parent=0 // pred_region
    _
  $region17: #{transformer_forward.11} parent=0 // pred_fallthru
    _
  // Predicated region
  $region18: #{transformer_forward.11} parent=0 // pred_check
    _
  $region19: #{transformer_forward.11} parent=0 // pred_check_branch
    %26 = sbr.rel (0) target = $region21
  $region20: #{transformer_forward.11} parent=0 // pred_region
    _
  $region21: #{transformer_forward.11} parent=0 // pred_fallthru
    _
  // Predicated region
  $region22: #{transformer_forward.11} parent=0 // pred_check
    _
  $region23: #{transformer_forward.11} parent=0 // pred_check_branch
    %28 = sbr.rel (0) target = $region25
  $region24: #{transformer_forward.11} parent=0 // pred_region
    _
  $region25: #{transformer_forward.11} parent=0 // pred_fallthru
    _
  // Predicated region
  $region26: #{transformer_forward.11} parent=0 // pred_check
    _
  $region27: #{transformer_forward.11} parent=0 // pred_check_branch
    %30 = sbr.rel (0) target = $region29
  $region28: #{transformer_forward.11} parent=0 // pred_region
    _
  $region29: #{transformer_forward.11} parent=0 // pred_fallthru
    _
  // Predicated region
  $region30: #{transformer_forward.11} parent=0 // pred_check
    _
  $region31: #{transformer_forward.11} parent=0 // pred_check_branch
    %32 = sbr.rel (0) target = $region33
  $region32: #{transformer_forward.11} parent=0 // pred_region
    _
  $region33: #{transformer_forward.11} parent=0 // pred_fallthru
    _
  // Predicated region
  $region34: #{transformer_forward.11} parent=0 // pred_check
    _
  $region35: #{transformer_forward.11} parent=0 // pred_check_branch
    %34 = sbr.rel (0) target = $region37
  $region36: #{transformer_forward.11} parent=0 // pred_region
    _
  $region37: #{transformer_forward.11} parent=0 // pred_fallthru
    _
  // Predicated region
  $region38: #{transformer_forward.11} parent=0 // pred_check
    _
  $region39: #{transformer_forward.11} parent=0 // pred_check_branch
    %36 = sbr.rel (0) target = $region41
  $region40: #{transformer_forward.11} parent=0 // pred_region
    _
  $region41: #{transformer_forward.11} parent=0 // pred_fallthru
    _
  // Predicated region
  $region42: #{transformer_forward.11} parent=0 // pred_check
    _
  $region43: #{transformer_forward.11} parent=0 // pred_check_branch
    %38 = sbr.rel (0) target = $region45
  $region44: #{transformer_forward.11} parent=0 // pred_region
    _
  $region45: #{transformer_forward.11} parent=0 // pred_fallthru
    _
  // Predicated region
  $region46: #{transformer_forward.11} parent=0 // pred_check
    _
  $region47: #{transformer_forward.11} parent=0 // pred_check_branch
    %40 = sbr.rel (0) target = $region49
  $region48: #{transformer_forward.11} parent=0 // pred_region
    _
  $region49: #{transformer_forward.11} parent=0 // pred_fallthru
    _
  %v41 = vld [vmem:[%s0] sm:$0xff]
  %v42 = vld [vmem:[%s0 + $0x8] sm:$0xff]
  %v43 = vld [vmem:[%s0 + $0x10] sm:$0xff]
  %v44 = vld [vmem:[%s0 + $0x18] sm:$0xff]
  %v45 = vld [vmem:[%s0 + $0x20] sm:$0xff]
  %v46 = vld [vmem:[%s0 + $0x28] sm:$0xff]
  %v47 = vld [vmem:[%s0 + $0x30] sm:$0xff]
  %v48 = vld [vmem:[%s0 + $0x38] sm:$0xff]
  %v49 = vld [vmem:[%s1] sm:$0xff]
  %v50 = vld [vmem:[%s1 + $0x8] sm:$0xff]
  %v51 = vld [vmem:[%s1 + $0x10] sm:$0xff]
  %v52 = vld [vmem:[%s1 + $0x18] sm:$0xff]
  %v53 = vld [vmem:[%s2] sm:$0xff]
  %v54 = vld [vmem:[%s2 + $0x8] sm:$0xff]
  %v55 = vld [vmem:[%s2 + $0x10] sm:$0xff]
  %v56 = vld [vmem:[%s2 + $0x18] sm:$0xff]
  %v57 = vld [vmem:[%s2 + $0x20] sm:$0xff]
  %v58 = vld [vmem:[%s2 + $0x28] sm:$0xff]
  %v59 = vld [vmem:[%s2 + $0x30] sm:$0xff]
  %v60 = vld [vmem:[%s2 + $0x38] sm:$0xff]
  %v61 = vld [vmem:[%s2 + $0x40] sm:$0xff]
  %v62 = vld [vmem:[%s2 + $0x48] sm:$0xff]
  %v63 = vld [vmem:[%s2 + $0x50] sm:$0xff]
  %v64 = vld [vmem:[%s2 + $0x58] sm:$0xff]
  %v65 = vld [vmem:[%s2 + $0x60] sm:$0xff]
  %v66 = vld [vmem:[%s2 + $0x68] sm:$0xff]
  %v67 = vld [vmem:[%s2 + $0x70] sm:$0xff]
  %v68 = vld [vmem:[%s2 + $0x78] sm:$0xff]
  %v69 = vld [vmem:[%s2 + $0x80] sm:$0xff]
  %v70 = vld [vmem:[%s2 + $0x88] sm:$0xff]
  %v71 = vld [vmem:[%s2 + $0x90] sm:$0xff]
  %v72 = vld [vmem:[%s2 + $0x98] sm:$0xff]
  %v73 = vld [vmem:[%s2 + $0xa0] sm:$0xff]
  %v74 = vld [vmem:[%s2 + $0xa8] sm:$0xff]
  %v75 = vld [vmem:[%s2 + $0xb0] sm:$0xff]
  %v76 = vld [vmem:[%s2 + $0xb8] sm:$0xff]
  %v77 = vld [vmem:[%s2 + $0xc0] sm:$0xff]
  %v78 = vld [vmem:[%s2 + $0xc8] sm:$0xff]
  %v79 = vld [vmem:[%s2 + $0xd0] sm:$0xff]
  %v80 = vld [vmem:[%s2 + $0xd8] sm:$0xff]
  %v81 = vld [vmem:[%s2 + $0xe0] sm:$0xff]
  %v82 = vld [vmem:[%s2 + $0xe8] sm:$0xff]
  %v83 = vld [vmem:[%s2 + $0xf0] sm:$0xff]
  %v84 = vld [vmem:[%s2 + $0xf8] sm:$0xff]
  %v85 = vld [vmem:[%s3] sm:$0x3]
  %v87 = vlaneseq
  %v88 = vshrl.u32 %v87, 7
  %v89 = vsub.s32 0, %v88
  %v90 = vrot.slane %v85, %v89
  %v91 = vlaneseq
  %v92 = vshrl.u32 %v91, 7
  %v93 = vsub.s32 1, %v92
  %v94 = vrot.slane %v85, %v93
  %v101 = vunpack.c.l.b16 %v49
  %v102 = vunpack.c.h.b16 %v49
  %v103 = vunpack.c.l.b16 %v50
  %v104 = vunpack.c.h.b16 %v50
  %v105 = vunpack.c.l.b16 %v51
  %v106 = vunpack.c.h.b16 %v51
  %v107 = vunpack.c.l.b16 %v52
  %v108 = vunpack.c.h.b16 %v52
  %v109 = vpack.c.b16 %v103, %v101
  %v110 = vpack.c.b16 %v104, %v102
  %v111 = vpack.c.b16 %v107, %v105
  %v112 = vpack.c.b16 %v108, %v106
  %v149 = vunpack.c.l.b16 %v53
  %v150 = vunpack.c.h.b16 %v53
  %v151 = vunpack.c.l.b16 %v54
  %v152 = vunpack.c.h.b16 %v54
  %v153 = vunpack.c.l.b16 %v55
  %v154 = vunpack.c.h.b16 %v55
  %v155 = vunpack.c.l.b16 %v56
  %v156 = vunpack.c.h.b16 %v56
  %v157 = vunpack.c.l.b16 %v57
  %v158 = vunpack.c.h.b16 %v57
  %v159 = vunpack.c.l.b16 %v58
  %v160 = vunpack.c.h.b16 %v58
  %v161 = vunpack.c.l.b16 %v59
  %v162 = vunpack.c.h.b16 %v59
  %v163 = vunpack.c.l.b16 %v60
  %v164 = vunpack.c.h.b16 %v60
  %v165 = vunpack.c.l.b16 %v61
  %v166 = vunpack.c.h.b16 %v61
  %v167 = vunpack.c.l.b16 %v62
  %v168 = vunpack.c.h.b16 %v62
  %v169 = vunpack.c.l.b16 %v63
  %v170 = vunpack.c.h.b16 %v63
  %v171 = vunpack.c.l.b16 %v64
  %v172 = vunpack.c.h.b16 %v64
  %v173 = vunpack.c.l.b16 %v65
  %v174 = vunpack.c.h.b16 %v65
  %v175 = vunpack.c.l.b16 %v66
  %v176 = vunpack.c.h.b16 %v66
  %v177 = vunpack.c.l.b16 %v67
  %v178 = vunpack.c.h.b16 %v67
  %v179 = vunpack.c.l.b16 %v68
  %v180 = vunpack.c.h.b16 %v68
  %v181 = vunpack.c.l.b16 %v69
  %v182 = vunpack.c.h.b16 %v69
  %v183 = vunpack.c.l.b16 %v70
  %v184 = vunpack.c.h.b16 %v70
  %v185 = vunpack.c.l.b16 %v71
  %v186 = vunpack.c.h.b16 %v71
  %v187 = vunpack.c.l.b16 %v72
  %v188 = vunpack.c.h.b16 %v72
  %v189 = vunpack.c.l.b16 %v73
  %v190 = vunpack.c.h.b16 %v73
  %v191 = vunpack.c.l.b16 %v74
  %v192 = vunpack.c.h.b16 %v74
  %v193 = vunpack.c.l.b16 %v75
  %v194 = vunpack.c.h.b16 %v75
  %v195 = vunpack.c.l.b16 %v76
  %v196 = vunpack.c.h.b16 %v76
  %v197 = vunpack.c.l.b16 %v77
  %v198 = vunpack.c.h.b16 %v77
  %v199 = vunpack.c.l.b16 %v78
  %v200 = vunpack.c.h.b16 %v78
  %v201 = vunpack.c.l.b16 %v79
  %v202 = vunpack.c.h.b16 %v79
  %v203 = vunpack.c.l.b16 %v80
  %v204 = vunpack.c.h.b16 %v80
  %v205 = vunpack.c.l.b16 %v81
  %v206 = vunpack.c.h.b16 %v81
  %v207 = vunpack.c.l.b16 %v82
  %v208 = vunpack.c.h.b16 %v82
  %v209 = vunpack.c.l.b16 %v83
  %v210 = vunpack.c.h.b16 %v83
  %v211 = vunpack.c.l.b16 %v84
  %v212 = vunpack.c.h.b16 %v84
  %v213 = vpack.c.b16 %v151, %v149
  %v214 = vpack.c.b16 %v152, %v150
  %v215 = vpack.c.b16 %v155, %v153
  %v216 = vpack.c.b16 %v156, %v154
  %v217 = vpack.c.b16 %v159, %v157
  %v218 = vpack.c.b16 %v160, %v158
  %v219 = vpack.c.b16 %v163, %v161
  %v220 = vpack.c.b16 %v164, %v162
  %v221 = vpack.c.b16 %v167, %v165
  %v222 = vpack.c.b16 %v168, %v166
  %v223 = vpack.c.b16 %v171, %v169
  %v224 = vpack.c.b16 %v172, %v170
  %v225 = vpack.c.b16 %v175, %v173
  %v226 = vpack.c.b16 %v176, %v174
  %v227 = vpack.c.b16 %v179, %v177
  %v228 = vpack.c.b16 %v180, %v178
  %v229 = vpack.c.b16 %v183, %v181
  %v230 = vpack.c.b16 %v184, %v182
  %v231 = vpack.c.b16 %v187, %v185
  %v232 = vpack.c.b16 %v188, %v186
  %v233 = vpack.c.b16 %v191, %v189
  %v234 = vpack.c.b16 %v192, %v190
  %v235 = vpack.c.b16 %v195, %v193
  %v236 = vpack.c.b16 %v196, %v194
  %v237 = vpack.c.b16 %v199, %v197
  %v238 = vpack.c.b16 %v200, %v198
  %v239 = vpack.c.b16 %v203, %v201
  %v240 = vpack.c.b16 %v204, %v202
  %v241 = vpack.c.b16 %v207, %v205
  %v242 = vpack.c.b16 %v208, %v206
  %v243 = vpack.c.b16 %v211, %v209
  %v244 = vpack.c.b16 %v212, %v210
  %277 = vmatprep.subr.bf16.mxu0 %v214
  %278 = vmatpush1.bf16.msra.mxu0 %v213
  %279 = vmatprep.subr.bf16.mxu0 %v216
  %280 = vmatpush1.bf16.msra.mxu0 %v215
  %281 = vmatprep.subr.bf16.mxu0 %v218
  %282 = vmatpush1.bf16.msra.mxu0 %v217
  %283 = vmatprep.subr.bf16.mxu0 %v220
  %284 = vmatpush1.bf16.msra.mxu0 %v219
  %285 = vmatprep.subr.bf16.mxu0 %v222
  %286 = vmatpush1.bf16.msra.mxu0 %v221
  %287 = vmatprep.subr.bf16.mxu0 %v224
  %288 = vmatpush1.bf16.msra.mxu0 %v223
  %289 = vmatprep.subr.bf16.mxu0 %v226
  %290 = vmatpush1.bf16.msra.mxu0 %v225
  %291 = vmatprep.subr.bf16.mxu0 %v228
  %292 = vmatpush1.bf16.msra.mxu0 %v227
  %293 = vmatprep.subr.bf16.mxu0 %v230
  %294 = vmatpush1.bf16.msra.mxu0 %v229
  %295 = vmatprep.subr.bf16.mxu0 %v232
  %296 = vmatpush1.bf16.msra.mxu0 %v231
  %297 = vmatprep.subr.bf16.mxu0 %v234
  %298 = vmatpush1.bf16.msra.mxu0 %v233
  %299 = vmatprep.subr.bf16.mxu0 %v236
  %300 = vmatpush1.bf16.msra.mxu0 %v235
  %301 = vmatprep.subr.bf16.mxu0 %v238
  %302 = vmatpush1.bf16.msra.mxu0 %v237
  %303 = vmatprep.subr.bf16.mxu0 %v240
  %304 = vmatpush1.bf16.msra.mxu0 %v239
  %305 = vmatprep.subr.bf16.mxu0 %v242
  %306 = vmatpush1.bf16.msra.mxu0 %v241
  %307 = vmatprep.subr.bf16.mxu0 %v244
  %308 = vmatpush1.bf16.msra.mxu0 %v243
  %309 = vmatprep.mubr.bf16.mxu0 %v110
  %310 = vmatmul.mubr.bf16.gmra.mrb[0].mxu0 %v109
  %v311 = vpop.f32.mrb[0].mxu0
  %v312 = vadd.f32 %v90, %v311
  %v313 = vpop.f32.mrb[0].mxu0
  %v314 = vadd.f32 %v94, %v313
  %v315 = vpop.f32.mrb[0].mxu0
  %v316 = vadd.f32 %v90, %v315
  %v317 = vpop.f32.mrb[0].mxu0
  %v318 = vadd.f32 %v94, %v317
  %319 = vmatprep.mubr.bf16.mxu0 %v112
  %320 = vmatmul.mubr.bf16.gmra.mrb[0].mxu0 %v111
  %v321 = vpop.f32.mrb[0].mxu0
  %v322 = vadd.f32 %v90, %v321
  %v323 = vpop.f32.mrb[0].mxu0
  %v324 = vadd.f32 %v94, %v323
  %v325 = vpop.f32.mrb[0].mxu0
  %v326 = vadd.f32 %v90, %v325
  %v327 = vpop.f32.mrb[0].mxu0
  %v328 = vadd.f32 %v94, %v327
  %329 = vdwg.mxu0
  %v330 = vadd.f32 %v41, %v312
  %v331 = vadd.f32 %v42, %v314
  %v332 = vadd.f32 %v43, %v316
  %v333 = vadd.f32 %v44, %v318
  %v334 = vadd.f32 %v45, %v322
  %v335 = vadd.f32 %v46, %v324
  %v336 = vadd.f32 %v47, %v326
  %v337 = vadd.f32 %v48, %v328
  %v338 = vld [vmem:[%s8] sm:$0x3]
  %v339 = vld [vmem:[%s9] sm:$0x3]
  %v340 = vadd.f32 %v330, %v331
  %341 = vadd.xlane.f32.xlu0 %v340
  %v342 = vpop.xlane.xlu0 %341
  %v343 = vadd.f32 %v332, %v333
  %344 = vadd.xlane.f32.xlu0 %v343
  %v345 = vpop.xlane.xlu0 %344
  %v346 = vadd.f32 %v334, %v335
  %347 = vadd.xlane.f32.xlu0 %v346
  %v348 = vpop.xlane.xlu0 %347
  %v349 = vadd.f32 %v336, %v337
  %350 = vadd.xlane.f32.xlu0 %v349
  %v351 = vpop.xlane.xlu0 %350
  %v352 = vrcp.pop 256.0
  %v353 = vmul.f32 %v342, %v352
  %v354 = vmul.f32 %v345, %v352
  %v355 = vmul.f32 %v348, %v352
  %v356 = vmul.f32 %v351, %v352
  %v357 = vsub.f32 %v330, %v353
  %v358 = vsub.f32 %v331, %v353
  %v359 = vsub.f32 %v332, %v354
  %v360 = vsub.f32 %v333, %v354
  %v361 = vsub.f32 %v334, %v355
  %v362 = vsub.f32 %v335, %v355
  %v363 = vsub.f32 %v336, %v356
  %v364 = vsub.f32 %v337, %v356
  %v365 = vmul.f32 %v357, %v357
  %v366 = vmul.f32 %v358, %v358
  %v367 = vmul.f32 %v359, %v359
  %v368 = vmul.f32 %v360, %v360
  %v369 = vmul.f32 %v361, %v361
  %v370 = vmul.f32 %v362, %v362
  %v371 = vmul.f32 %v363, %v363
  %v372 = vmul.f32 %v364, %v364
  %v373 = vadd.f32 %v365, %v366
  %374 = vadd.xlane.f32.xlu0 %v373
  %v375 = vpop.xlane.xlu0 %374
  %v376 = vadd.f32 %v367, %v368
  %377 = vadd.xlane.f32.xlu0 %v376
  %v378 = vpop.xlane.xlu0 %377
  %v379 = vadd.f32 %v369, %v370
  %380 = vadd.xlane.f32.xlu0 %v379
  %v381 = vpop.xlane.xlu0 %380
  %v382 = vadd.f32 %v371, %v372
  %383 = vadd.xlane.f32.xlu0 %v382
  %v384 = vpop.xlane.xlu0 %383
  %v385 = vmul.f32 %v375, %v352
  %v386 = vmul.f32 %v378, %v352
  %v387 = vmul.f32 %v381, %v352
  %v388 = vmul.f32 %v384, %v352
  %v389 = vadd.f32 %v385, 1e-05
  %v390 = vadd.f32 %v386, 1e-05
  %v391 = vadd.f32 %v387, 1e-05
  %v392 = vadd.f32 %v388, 1e-05
  %v393 = vrsqrt.pop %v389
  %v394 = vrsqrt.pop %v390
  %v395 = vrsqrt.pop %v391
  %v396 = vrsqrt.pop %v392
  %v397 = vmul.f32 %v357, %v393
  %v398 = vmul.f32 %v358, %v393
  %v399 = vmul.f32 %v359, %v394
  %v400 = vmul.f32 %v360, %v394
  %v401 = vmul.f32 %v361, %v395
  %v402 = vmul.f32 %v362, %v395
  %v403 = vmul.f32 %v363, %v396
  %v404 = vmul.f32 %v364, %v396
  %v406 = vlaneseq
  %v407 = vshrl.u32 %v406, 7
  %v408 = vsub.s32 0, %v407
  %v409 = vrot.slane %v338, %v408
  %v410 = vlaneseq
  %v411 = vshrl.u32 %v410, 7
  %v412 = vsub.s32 1, %v411
  %v413 = vrot.slane %v338, %v412
  %v416 = vmul.f32 %v397, %v409
  %v417 = vmul.f32 %v398, %v413
  %v418 = vmul.f32 %v399, %v409
  %v419 = vmul.f32 %v400, %v413
  %v420 = vmul.f32 %v401, %v409
  %v421 = vmul.f32 %v402, %v413
  %v422 = vmul.f32 %v403, %v409
  %v423 = vmul.f32 %v404, %v413
  %v425 = vlaneseq
  %v426 = vshrl.u32 %v425, 7
  %v427 = vsub.s32 0, %v426
  %v428 = vrot.slane %v339, %v427
  %v429 = vlaneseq
  %v430 = vshrl.u32 %v429, 7
  %v431 = vsub.s32 1, %v430
  %v432 = vrot.slane %v339, %v431
  %v435 = vadd.f32 %v416, %v428
  %v436 = vadd.f32 %v417, %v432
  %v437 = vadd.f32 %v418, %v428
  %v438 = vadd.f32 %v419, %v432
  %v439 = vadd.f32 %v420, %v428
  %v440 = vadd.f32 %v421, %v432
  %v441 = vadd.f32 %v422, %v428
  %v442 = vadd.f32 %v423, %v432
  %v443 = vpack.c.bf16 %v437, %v435
  %v444 = vpack.c.bf16 %v438, %v436
  %v445 = vpack.c.bf16 %v441, %v439
  %v446 = vpack.c.bf16 %v442, %v440
  %v447 = vld [vmem:[%s4] sm:$0xff]
  %v448 = vld [vmem:[%s4 + $0x8] sm:$0xff]
  %v449 = vld [vmem:[%s4 + $0x10] sm:$0xff]
  %v450 = vld [vmem:[%s4 + $0x18] sm:$0xff]
  %v451 = vld [vmem:[%s4 + $0x20] sm:$0xff]
  %v452 = vld [vmem:[%s4 + $0x28] sm:$0xff]
  %v453 = vld [vmem:[%s4 + $0x30] sm:$0xff]
  %v454 = vld [vmem:[%s4 + $0x38] sm:$0xff]
  %v455 = vld [vmem:[%s4 + $0x40] sm:$0xff]
  %v456 = vld [vmem:[%s4 + $0x48] sm:$0xff]
  %v457 = vld [vmem:[%s4 + $0x50] sm:$0xff]
  %v458 = vld [vmem:[%s4 + $0x58] sm:$0xff]
  %v459 = vld [vmem:[%s4 + $0x60] sm:$0xff]
  %v460 = vld [vmem:[%s4 + $0x68] sm:$0xff]
  %v461 = vld [vmem:[%s4 + $0x70] sm:$0xff]
  %v462 = vld [vmem:[%s4 + $0x78] sm:$0xff]
  %v463 = vld [vmem:[%s4 + $0x80] sm:$0xff]
  %v464 = vld [vmem:[%s4 + $0x88] sm:$0xff]
  %v465 = vld [vmem:[%s4 + $0x90] sm:$0xff]
  %v466 = vld [vmem:[%s4 + $0x98] sm:$0xff]
  %v467 = vld [vmem:[%s4 + $0xa0] sm:$0xff]
  %v468 = vld [vmem:[%s4 + $0xa8] sm:$0xff]
  %v469 = vld [vmem:[%s4 + $0xb0] sm:$0xff]
  %v470 = vld [vmem:[%s4 + $0xb8] sm:$0xff]
  %v471 = vld [vmem:[%s4 + $0xc0] sm:$0xff]
  %v472 = vld [vmem:[%s4 + $0xc8] sm:$0xff]
  %v473 = vld [vmem:[%s4 + $0xd0] sm:$0xff]
  %v474 = vld [vmem:[%s4 + $0xd8] sm:$0xff]
  %v475 = vld [vmem:[%s4 + $0xe0] sm:$0xff]
  %v476 = vld [vmem:[%s4 + $0xe8] sm:$0xff]
  %v477 = vld [vmem:[%s4 + $0xf0] sm:$0xff]
  %v478 = vld [vmem:[%s4 + $0xf8] sm:$0xff]
  %v479 = vld [vmem:[%s4 + $0x100] sm:$0xff]
  %v480 = vld [vmem:[%s4 + $0x108] sm:$0xff]
  %v481 = vld [vmem:[%s4 + $0x110] sm:$0xff]
  %v482 = vld [vmem:[%s4 + $0x118] sm:$0xff]
  %v483 = vld [vmem:[%s4 + $0x120] sm:$0xff]
  %v484 = vld [vmem:[%s4 + $0x128] sm:$0xff]
  %v485 = vld [vmem:[%s4 + $0x130] sm:$0xff]
  %v486 = vld [vmem:[%s4 + $0x138] sm:$0xff]
  %v487 = vld [vmem:[%s4 + $0x140] sm:$0xff]
  %v488 = vld [vmem:[%s4 + $0x148] sm:$0xff]
  %v489 = vld [vmem:[%s4 + $0x150] sm:$0xff]
  %v490 = vld [vmem:[%s4 + $0x158] sm:$0xff]
  %v491 = vld [vmem:[%s4 + $0x160] sm:$0xff]
  %v492 = vld [vmem:[%s4 + $0x168] sm:$0xff]
  %v493 = vld [vmem:[%s4 + $0x170] sm:$0xff]
  %v494 = vld [vmem:[%s4 + $0x178] sm:$0xff]
  %v495 = vld [vmem:[%s4 + $0x180] sm:$0xff]
  %v496 = vld [vmem:[%s4 + $0x188] sm:$0xff]
  %v497 = vld [vmem:[%s4 + $0x190] sm:$0xff]
  %v498 = vld [vmem:[%s4 + $0x198] sm:$0xff]
  %v499 = vld [vmem:[%s4 + $0x1a0] sm:$0xff]
  %v500 = vld [vmem:[%s4 + $0x1a8] sm:$0xff]
  %v501 = vld [vmem:[%s4 + $0x1b0] sm:$0xff]
  %v502 = vld [vmem:[%s4 + $0x1b8] sm:$0xff]
  %v503 = vld [vmem:[%s4 + $0x1c0] sm:$0xff]
  %v504 = vld [vmem:[%s4 + $0x1c8] sm:$0xff]
  %v505 = vld [vmem:[%s4 + $0x1d0] sm:$0xff]
  %v506 = vld [vmem:[%s4 + $0x1d8] sm:$0xff]
  %v507 = vld [vmem:[%s4 + $0x1e0] sm:$0xff]
  %v508 = vld [vmem:[%s4 + $0x1e8] sm:$0xff]
  %v509 = vld [vmem:[%s4 + $0x1f0] sm:$0xff]
  %v510 = vld [vmem:[%s4 + $0x1f8] sm:$0xff]
  %v511 = vld [vmem:[%s5] sm:$0xf]
  %v513 = vlaneseq
  %v514 = vshrl.u32 %v513, 7
  %v515 = vsub.s32 0, %v514
  %v516 = vrot.slane %v511, %v515
  %v517 = vlaneseq
  %v518 = vshrl.u32 %v517, 7
  %v519 = vsub.s32 1, %v518
  %v520 = vrot.slane %v511, %v519
  %v521 = vlaneseq
  %v522 = vshrl.u32 %v521, 7
  %v523 = vsub.s32 2, %v522
  %v524 = vrot.slane %v511, %v523
  %v525 = vlaneseq
  %v526 = vshrl.u32 %v525, 7
  %v527 = vsub.s32 3, %v526
  %v528 = vrot.slane %v511, %v527
  %v597 = vunpack.c.l.b16 %v447
  %v598 = vunpack.c.h.b16 %v447
  %v599 = vunpack.c.l.b16 %v448
  %v600 = vunpack.c.h.b16 %v448
  %v601 = vunpack.c.l.b16 %v449
  %v602 = vunpack.c.h.b16 %v449
  %v603 = vunpack.c.l.b16 %v450
  %v604 = vunpack.c.h.b16 %v450
  %v605 = vunpack.c.l.b16 %v451
  %v606 = vunpack.c.h.b16 %v451
  %v607 = vunpack.c.l.b16 %v452
  %v608 = vunpack.c.h.b16 %v452
  %v609 = vunpack.c.l.b16 %v453
  %v610 = vunpack.c.h.b16 %v453
  %v611 = vunpack.c.l.b16 %v454
  %v612 = vunpack.c.h.b16 %v454
  %v613 = vunpack.c.l.b16 %v455
  %v614 = vunpack.c.h.b16 %v455
  %v615 = vunpack.c.l.b16 %v456
  %v616 = vunpack.c.h.b16 %v456
  %v617 = vunpack.c.l.b16 %v457
  %v618 = vunpack.c.h.b16 %v457
  %v619 = vunpack.c.l.b16 %v458
  %v620 = vunpack.c.h.b16 %v458
  %v621 = vunpack.c.l.b16 %v459
  %v622 = vunpack.c.h.b16 %v459
  %v623 = vunpack.c.l.b16 %v460
  %v624 = vunpack.c.h.b16 %v460
  %v625 = vunpack.c.l.b16 %v461
  %v626 = vunpack.c.h.b16 %v461
  %v627 = vunpack.c.l.b16 %v462
  %v628 = vunpack.c.h.b16 %v462
  %v629 = vunpack.c.l.b16 %v463
  %v630 = vunpack.c.h.b16 %v463
  %v631 = vunpack.c.l.b16 %v464
  %v632 = vunpack.c.h.b16 %v464
  %v633 = vunpack.c.l.b16 %v465
  %v634 = vunpack.c.h.b16 %v465
  %v635 = vunpack.c.l.b16 %v466
  %v636 = vunpack.c.h.b16 %v466
  %v637 = vunpack.c.l.b16 %v467
  %v638 = vunpack.c.h.b16 %v467
  %v639 = vunpack.c.l.b16 %v468
  %v640 = vunpack.c.h.b16 %v468
  %v641 = vunpack.c.l.b16 %v469
  %v642 = vunpack.c.h.b16 %v469
  %v643 = vunpack.c.l.b16 %v470
  %v644 = vunpack.c.h.b16 %v470
  %v645 = vunpack.c.l.b16 %v471
  %v646 = vunpack.c.h.b16 %v471
  %v647 = vunpack.c.l.b16 %v472
  %v648 = vunpack.c.h.b16 %v472
  %v649 = vunpack.c.l.b16 %v473
  %v650 = vunpack.c.h.b16 %v473
  %v651 = vunpack.c.l.b16 %v474
  %v652 = vunpack.c.h.b16 %v474
  %v653 = vunpack.c.l.b16 %v475
  %v654 = vunpack.c.h.b16 %v475
  %v655 = vunpack.c.l.b16 %v476
  %v656 = vunpack.c.h.b16 %v476
  %v657 = vunpack.c.l.b16 %v477
  %v658 = vunpack.c.h.b16 %v477
  %v659 = vunpack.c.l.b16 %v478
  %v660 = vunpack.c.h.b16 %v478
  %v661 = vunpack.c.l.b16 %v479
  %v662 = vunpack.c.h.b16 %v479
  %v663 = vunpack.c.l.b16 %v480
  %v664 = vunpack.c.h.b16 %v480
  %v665 = vunpack.c.l.b16 %v481
  %v666 = vunpack.c.h.b16 %v481
  %v667 = vunpack.c.l.b16 %v482
  %v668 = vunpack.c.h.b16 %v482
  %v669 = vunpack.c.l.b16 %v483
  %v670 = vunpack.c.h.b16 %v483
  %v671 = vunpack.c.l.b16 %v484
  %v672 = vunpack.c.h.b16 %v484
  %v673 = vunpack.c.l.b16 %v485
  %v674 = vunpack.c.h.b16 %v485
  %v675 = vunpack.c.l.b16 %v486
  %v676 = vunpack.c.h.b16 %v486
  %v677 = vunpack.c.l.b16 %v487
  %v678 = vunpack.c.h.b16 %v487
  %v679 = vunpack.c.l.b16 %v488
  %v680 = vunpack.c.h.b16 %v488
  %v681 = vunpack.c.l.b16 %v489
  %v682 = vunpack.c.h.b16 %v489
  %v683 = vunpack.c.l.b16 %v490
  %v684 = vunpack.c.h.b16 %v490
  %v685 = vunpack.c.l.b16 %v491
  %v686 = vunpack.c.h.b16 %v491
  %v687 = vunpack.c.l.b16 %v492
  %v688 = vunpack.c.h.b16 %v492
  %v689 = vunpack.c.l.b16 %v493
  %v690 = vunpack.c.h.b16 %v493
  %v691 = vunpack.c.l.b16 %v494
  %v692 = vunpack.c.h.b16 %v494
  %v693 = vunpack.c.l.b16 %v495
  %v694 = vunpack.c.h.b16 %v495
  %v695 = vunpack.c.l.b16 %v496
  %v696 = vunpack.c.h.b16 %v496
  %v697 = vunpack.c.l.b16 %v497
  %v698 = vunpack.c.h.b16 %v497
  %v699 = vunpack.c.l.b16 %v498
  %v700 = vunpack.c.h.b16 %v498
  %v701 = vunpack.c.l.b16 %v499
  %v702 = vunpack.c.h.b16 %v499
  %v703 = vunpack.c.l.b16 %v500
  %v704 = vunpack.c.h.b16 %v500
  %v705 = vunpack.c.l.b16 %v501
  %v706 = vunpack.c.h.b16 %v501
  %v707 = vunpack.c.l.b16 %v502
  %v708 = vunpack.c.h.b16 %v502
  %v709 = vunpack.c.l.b16 %v503
  %v710 = vunpack.c.h.b16 %v503
  %v711 = vunpack.c.l.b16 %v504
  %v712 = vunpack.c.h.b16 %v504
  %v713 = vunpack.c.l.b16 %v505
  %v714 = vunpack.c.h.b16 %v505
  %v715 = vunpack.c.l.b16 %v506
  %v716 = vunpack.c.h.b16 %v506
  %v717 = vunpack.c.l.b16 %v507
  %v718 = vunpack.c.h.b16 %v507
  %v719 = vunpack.c.l.b16 %v508
  %v720 = vunpack.c.h.b16 %v508
  %v721 = vunpack.c.l.b16 %v509
  %v722 = vunpack.c.h.b16 %v509
  %v723 = vunpack.c.l.b16 %v510
  %v724 = vunpack.c.h.b16 %v510
  %v725 = vpack.c.b16 %v601, %v597
  %v726 = vpack.c.b16 %v602, %v598
  %v727 = vpack.c.b16 %v603, %v599
  %v728 = vpack.c.b16 %v604, %v600
  %v729 = vpack.c.b16 %v609, %v605
  %v730 = vpack.c.b16 %v610, %v606
  %v731 = vpack.c.b16 %v611, %v607
  %v732 = vpack.c.b16 %v612, %v608
  %v733 = vpack.c.b16 %v617, %v613
  %v734 = vpack.c.b16 %v618, %v614
  %v735 = vpack.c.b16 %v619, %v615
  %v736 = vpack.c.b16 %v620, %v616
  %v737 = vpack.c.b16 %v625, %v621
  %v738 = vpack.c.b16 %v626, %v622
  %v739 = vpack.c.b16 %v627, %v623
  %v740 = vpack.c.b16 %v628, %v624
  %v741 = vpack.c.b16 %v633, %v629
  %v742 = vpack.c.b16 %v634, %v630
  %v743 = vpack.c.b16 %v635, %v631
  %v744 = vpack.c.b16 %v636, %v632
  %v745 = vpack.c.b16 %v641, %v637
  %v746 = vpack.c.b16 %v642, %v638
  %v747 = vpack.c.b16 %v643, %v639
  %v748 = vpack.c.b16 %v644, %v640
  %v749 = vpack.c.b16 %v649, %v645
  %v750 = vpack.c.b16 %v650, %v646
  %v751 = vpack.c.b16 %v651, %v647
  %v752 = vpack.c.b16 %v652, %v648
  %v753 = vpack.c.b16 %v657, %v653
  %v754 = vpack.c.b16 %v658, %v654
  %v755 = vpack.c.b16 %v659, %v655
  %v756 = vpack.c.b16 %v660, %v656
  %v757 = vpack.c.b16 %v665, %v661
  %v758 = vpack.c.b16 %v666, %v662
  %v759 = vpack.c.b16 %v667, %v663
  %v760 = vpack.c.b16 %v668, %v664
  %v761 = vpack.c.b16 %v673, %v669
  %v762 = vpack.c.b16 %v674, %v670
  %v763 = vpack.c.b16 %v675, %v671
  %v764 = vpack.c.b16 %v676, %v672
  %v765 = vpack.c.b16 %v681, %v677
  %v766 = vpack.c.b16 %v682, %v678
  %v767 = vpack.c.b16 %v683, %v679
  %v768 = vpack.c.b16 %v684, %v680
  %v769 = vpack.c.b16 %v689, %v685
  %v770 = vpack.c.b16 %v690, %v686
  %v771 = vpack.c.b16 %v691, %v687
  %v772 = vpack.c.b16 %v692, %v688
  %v773 = vpack.c.b16 %v697, %v693
  %v774 = vpack.c.b16 %v698, %v694
  %v775 = vpack.c.b16 %v699, %v695
  %v776 = vpack.c.b16 %v700, %v696
  %v777 = vpack.c.b16 %v705, %v701
  %v778 = vpack.c.b16 %v706, %v702
  %v779 = vpack.c.b16 %v707, %v703
  %v780 = vpack.c.b16 %v708, %v704
  %v781 = vpack.c.b16 %v713, %v709
  %v782 = vpack.c.b16 %v714, %v710
  %v783 = vpack.c.b16 %v715, %v711
  %v784 = vpack.c.b16 %v716, %v712
  %v785 = vpack.c.b16 %v721, %v717
  %v786 = vpack.c.b16 %v722, %v718
  %v787 = vpack.c.b16 %v723, %v719
  %v788 = vpack.c.b16 %v724, %v720
  %853 = vmatprep.subr.bf16.mxu0 %v726
  %854 = vmatpush1.bf16.msra.mxu0 %v725
  %855 = vmatprep.subr.bf16.mxu0 %v730
  %856 = vmatpush1.bf16.msra.mxu0 %v729
  %857 = vmatprep.subr.bf16.mxu0 %v734
  %858 = vmatpush1.bf16.msra.mxu0 %v733
  %859 = vmatprep.subr.bf16.mxu0 %v738
  %860 = vmatpush1.bf16.msra.mxu0 %v737
  %861 = vmatprep.subr.bf16.mxu0 %v742
  %862 = vmatpush1.bf16.msra.mxu0 %v741
  %863 = vmatprep.subr.bf16.mxu0 %v746
  %864 = vmatpush1.bf16.msra.mxu0 %v745
  %865 = vmatprep.subr.bf16.mxu0 %v750
  %866 = vmatpush1.bf16.msra.mxu0 %v749
  %867 = vmatprep.subr.bf16.mxu0 %v754
  %868 = vmatpush1.bf16.msra.mxu0 %v753
  %869 = vmatprep.subr.bf16.mxu0 %v758
  %870 = vmatpush1.bf16.msra.mxu0 %v757
  %871 = vmatprep.subr.bf16.mxu0 %v762
  %872 = vmatpush1.bf16.msra.mxu0 %v761
  %873 = vmatprep.subr.bf16.mxu0 %v766
  %874 = vmatpush1.bf16.msra.mxu0 %v765
  %875 = vmatprep.subr.bf16.mxu0 %v770
  %876 = vmatpush1.bf16.msra.mxu0 %v769
  %877 = vmatprep.subr.bf16.mxu0 %v774
  %878 = vmatpush1.bf16.msra.mxu0 %v773
  %879 = vmatprep.subr.bf16.mxu0 %v778
  %880 = vmatpush1.bf16.msra.mxu0 %v777
  %881 = vmatprep.subr.bf16.mxu0 %v782
  %882 = vmatpush1.bf16.msra.mxu0 %v781
  %883 = vmatprep.subr.bf16.mxu0 %v786
  %884 = vmatpush1.bf16.msra.mxu0 %v785
  %885 = vmatprep.mubr.bf16.mxu0 %v444
  %886 = vmatmul.mubr.bf16.gmra.mrb[0].mxu0 %v443
  %v887 = vpop.f32.mrb[0].mxu0
  %v888 = vadd.f32 %v516, %v887
  %v889 = vpop.f32.mrb[0].mxu0
  %v890 = vadd.f32 %v520, %v889
  %v891 = vpop.f32.mrb[0].mxu0
  %v892 = vadd.f32 %v516, %v891
  %v893 = vpop.f32.mrb[0].mxu0
  %v894 = vadd.f32 %v520, %v893
  %895 = vmatprep.mubr.bf16.mxu0 %v446
  %896 = vmatmul.mubr.bf16.gmra.mrb[0].mxu0 %v445
  %v897 = vpop.f32.mrb[0].mxu0
  %v898 = vadd.f32 %v516, %v897
  %v899 = vpop.f32.mrb[0].mxu0
  %v900 = vadd.f32 %v520, %v899
  %v901 = vpop.f32.mrb[0].mxu0
  %v902 = vadd.f32 %v516, %v901
  %v903 = vpop.f32.mrb[0].mxu0
  %v904 = vadd.f32 %v520, %v903
  %905 = vdwg.mxu0
  %906 = vmatprep.subr.bf16.mxu0 %v728
  %907 = vmatpush1.bf16.msra.mxu0 %v727
  %908 = vmatprep.subr.bf16.mxu0 %v732
  %909 = vmatpush1.bf16.msra.mxu0 %v731
  %910 = vmatprep.subr.bf16.mxu0 %v736
  %911 = vmatpush1.bf16.msra.mxu0 %v735
  %912 = vmatprep.subr.bf16.mxu0 %v740
  %913 = vmatpush1.bf16.msra.mxu0 %v739
  %914 = vmatprep.subr.bf16.mxu0 %v744
  %915 = vmatpush1.bf16.msra.mxu0 %v743
  %916 = vmatprep.subr.bf16.mxu0 %v748
  %917 = vmatpush1.bf16.msra.mxu0 %v747
  %918 = vmatprep.subr.bf16.mxu0 %v752
  %919 = vmatpush1.bf16.msra.mxu0 %v751
  %920 = vmatprep.subr.bf16.mxu0 %v756
  %921 = vmatpush1.bf16.msra.mxu0 %v755
  %922 = vmatprep.subr.bf16.mxu0 %v760
  %923 = vmatpush1.bf16.msra.mxu0 %v759
  %924 = vmatprep.subr.bf16.mxu0 %v764
  %925 = vmatpush1.bf16.msra.mxu0 %v763
  %926 = vmatprep.subr.bf16.mxu0 %v768
  %927 = vmatpush1.bf16.msra.mxu0 %v767
  %928 = vmatprep.subr.bf16.mxu0 %v772
  %929 = vmatpush1.bf16.msra.mxu0 %v771
  %930 = vmatprep.subr.bf16.mxu0 %v776
  %931 = vmatpush1.bf16.msra.mxu0 %v775
  %932 = vmatprep.subr.bf16.mxu0 %v780
  %933 = vmatpush1.bf16.msra.mxu0 %v779
  %934 = vmatprep.subr.bf16.mxu0 %v784
  %935 = vmatpush1.bf16.msra.mxu0 %v783
  %936 = vmatprep.subr.bf16.mxu0 %v788
  %937 = vmatpush1.bf16.msra.mxu0 %v787
  %938 = vmatprep.mubr.bf16.mxu0 %v444
  %939 = vmatmul.mubr.bf16.gmra.mrb[0].mxu0 %v443
  %v940 = vpop.f32.mrb[0].mxu0
  %v941 = vadd.f32 %v524, %v940
  %v942 = vpop.f32.mrb[0].mxu0
  %v943 = vadd.f32 %v528, %v942
  %v944 = vpop.f32.mrb[0].mxu0
  %v945 = vadd.f32 %v524, %v944
  %v946 = vpop.f32.mrb[0].mxu0
  %v947 = vadd.f32 %v528, %v946
  %948 = vmatprep.mubr.bf16.mxu0 %v446
  %949 = vmatmul.mubr.bf16.gmra.mrb[0].mxu0 %v445
  %v950 = vpop.f32.mrb[0].mxu0
  %v951 = vadd.f32 %v524, %v950
  %v952 = vpop.f32.mrb[0].mxu0
  %v953 = vadd.f32 %v528, %v952
  %v954 = vpop.f32.mrb[0].mxu0
  %v955 = vadd.f32 %v524, %v954
  %v956 = vpop.f32.mrb[0].mxu0
  %v957 = vadd.f32 %v528, %v956
  %958 = vdwg.mxu0
  %v959 = vmax.f32 %v888, 0.0
  %v960 = vmax.f32 %v890, 0.0
  %v961 = vmax.f32 %v941, 0.0
  %v962 = vmax.f32 %v943, 0.0
  %v963 = vmax.f32 %v892, 0.0
  %v964 = vmax.f32 %v894, 0.0
  %v965 = vmax.f32 %v945, 0.0
  %v966 = vmax.f32 %v947, 0.0
  %v967 = vmax.f32 %v898, 0.0
  %v968 = vmax.f32 %v900, 0.0
  %v969 = vmax.f32 %v951, 0.0
  %v970 = vmax.f32 %v953, 0.0
  %v971 = vmax.f32 %v902, 0.0
  %v972 = vmax.f32 %v904, 0.0
  %v973 = vmax.f32 %v955, 0.0
  %v974 = vmax.f32 %v957, 0.0
  %v975 = vpack.c.bf16 %v963, %v959
  %v976 = vpack.c.bf16 %v964, %v960
  %v977 = vpack.c.bf16 %v965, %v961
  %v978 = vpack.c.bf16 %v966, %v962
  %v979 = vpack.c.bf16 %v971, %v967
  %v980 = vpack.c.bf16 %v972, %v968
  %v981 = vpack.c.bf16 %v973, %v969
  %v982 = vpack.c.bf16 %v974, %v970
  %v983 = vld [vmem:[%s6] sm:$0xff]
  %v984 = vld [vmem:[%s6 + $0x8] sm:$0xff]
  %v985 = vld [vmem:[%s6 + $0x10] sm:$0xff]
  %v986 = vld [vmem:[%s6 + $0x18] sm:$0xff]
  %v987 = vld [vmem:[%s6 + $0x20] sm:$0xff]
  %v988 = vld [vmem:[%s6 + $0x28] sm:$0xff]
  %v989 = vld [vmem:[%s6 + $0x30] sm:$0xff]
  %v990 = vld [vmem:[%s6 + $0x38] sm:$0xff]
  %v991 = vld [vmem:[%s6 + $0x40] sm:$0xff]
  %v992 = vld [vmem:[%s6 + $0x48] sm:$0xff]
  %v993 = vld [vmem:[%s6 + $0x50] sm:$0xff]
  %v994 = vld [vmem:[%s6 + $0x58] sm:$0xff]
  %v995 = vld [vmem:[%s6 + $0x60] sm:$0xff]
  %v996 = vld [vmem:[%s6 + $0x68] sm:$0xff]
  %v997 = vld [vmem:[%s6 + $0x70] sm:$0xff]
  %v998 = vld [vmem:[%s6 + $0x78] sm:$0xff]
  %v999 = vld [vmem:[%s6 + $0x80] sm:$0xff]
  %v1000 = vld [vmem:[%s6 + $0x88] sm:$0xff]
  %v1001 = vld [vmem:[%s6 + $0x90] sm:$0xff]
  %v1002 = vld [vmem:[%s6 + $0x98] sm:$0xff]
  %v1003 = vld [vmem:[%s6 + $0xa0] sm:$0xff]
  %v1004 = vld [vmem:[%s6 + $0xa8] sm:$0xff]
  %v1005 = vld [vmem:[%s6 + $0xb0] sm:$0xff]
  %v1006 = vld [vmem:[%s6 + $0xb8] sm:$0xff]
  %v1007 = vld [vmem:[%s6 + $0xc0] sm:$0xff]
  %v1008 = vld [vmem:[%s6 + $0xc8] sm:$0xff]
  %v1009 = vld [vmem:[%s6 + $0xd0] sm:$0xff]
  %v1010 = vld [vmem:[%s6 + $0xd8] sm:$0xff]
  %v1011 = vld [vmem:[%s6 + $0xe0] sm:$0xff]
  %v1012 = vld [vmem:[%s6 + $0xe8] sm:$0xff]
  %v1013 = vld [vmem:[%s6 + $0xf0] sm:$0xff]
  %v1014 = vld [vmem:[%s6 + $0xf8] sm:$0xff]
  %v1015 = vld [vmem:[%s6 + $0x100] sm:$0xff]
  %v1016 = vld [vmem:[%s6 + $0x108] sm:$0xff]
  %v1017 = vld [vmem:[%s6 + $0x110] sm:$0xff]
  %v1018 = vld [vmem:[%s6 + $0x118] sm:$0xff]
  %v1019 = vld [vmem:[%s6 + $0x120] sm:$0xff]
  %v1020 = vld [vmem:[%s6 + $0x128] sm:$0xff]
  %v1021 = vld [vmem:[%s6 + $0x130] sm:$0xff]
  %v1022 = vld [vmem:[%s6 + $0x138] sm:$0xff]
  %v1023 = vld [vmem:[%s6 + $0x140] sm:$0xff]
  %v1024 = vld [vmem:[%s6 + $0x148] sm:$0xff]
  %v1025 = vld [vmem:[%s6 + $0x150] sm:$0xff]
  %v1026 = vld [vmem:[%s6 + $0x158] sm:$0xff]
  %v1027 = vld [vmem:[%s6 + $0x160] sm:$0xff]
  %v1028 = vld [vmem:[%s6 + $0x168] sm:$0xff]
  %v1029 = vld [vmem:[%s6 + $0x170] sm:$0xff]
  %v1030 = vld [vmem:[%s6 + $0x178] sm:$0xff]
  %v1031 = vld [vmem:[%s6 + $0x180] sm:$0xff]
  %v1032 = vld [vmem:[%s6 + $0x188] sm:$0xff]
  %v1033 = vld [vmem:[%s6 + $0x190] sm:$0xff]
  %v1034 = vld [vmem:[%s6 + $0x198] sm:$0xff]
  %v1035 = vld [vmem:[%s6 + $0x1a0] sm:$0xff]
  %v1036 = vld [vmem:[%s6 + $0x1a8] sm:$0xff]
  %v1037 = vld [vmem:[%s6 + $0x1b0] sm:$0xff]
  %v1038 = vld [vmem:[%s6 + $0x1b8] sm:$0xff]
  %v1039 = vld [vmem:[%s6 + $0x1c0] sm:$0xff]
  %v1040 = vld [vmem:[%s6 + $0x1c8] sm:$0xff]
  %v1041 = vld [vmem:[%s6 + $0x1d0] sm:$0xff]
  %v1042 = vld [vmem:[%s6 + $0x1d8] sm:$0xff]
  %v1043 = vld [vmem:[%s6 + $0x1e0] sm:$0xff]
  %v1044 = vld [vmem:[%s6 + $0x1e8] sm:$0xff]
  %v1045 = vld [vmem:[%s6 + $0x1f0] sm:$0xff]
  %v1046 = vld [vmem:[%s6 + $0x1f8] sm:$0xff]
  %v1047 = vld [vmem:[%s7] sm:$0x3]
  %v1049 = vlaneseq
  %v1050 = vshrl.u32 %v1049, 7
  %v1051 = vsub.s32 0, %v1050
  %v1052 = vrot.slane %v1047, %v1051
  %v1053 = vlaneseq
  %v1054 = vshrl.u32 %v1053, 7
  %v1055 = vsub.s32 1, %v1054
  %v1056 = vrot.slane %v1047, %v1055
  %v1123 = vunpack.c.l.b16 %v983
  %v1124 = vunpack.c.h.b16 %v983
  %v1125 = vunpack.c.l.b16 %v984
  %v1126 = vunpack.c.h.b16 %v984
  %v1127 = vunpack.c.l.b16 %v985
  %v1128 = vunpack.c.h.b16 %v985
  %v1129 = vunpack.c.l.b16 %v986
  %v1130 = vunpack.c.h.b16 %v986
  %v1131 = vunpack.c.l.b16 %v987
  %v1132 = vunpack.c.h.b16 %v987
  %v1133 = vunpack.c.l.b16 %v988
  %v1134 = vunpack.c.h.b16 %v988
  %v1135 = vunpack.c.l.b16 %v989
  %v1136 = vunpack.c.h.b16 %v989
  %v1137 = vunpack.c.l.b16 %v990
  %v1138 = vunpack.c.h.b16 %v990
  %v1139 = vunpack.c.l.b16 %v991
  %v1140 = vunpack.c.h.b16 %v991
  %v1141 = vunpack.c.l.b16 %v992
  %v1142 = vunpack.c.h.b16 %v992
  %v1143 = vunpack.c.l.b16 %v993
  %v1144 = vunpack.c.h.b16 %v993
  %v1145 = vunpack.c.l.b16 %v994
  %v1146 = vunpack.c.h.b16 %v994
  %v1147 = vunpack.c.l.b16 %v995
  %v1148 = vunpack.c.h.b16 %v995
  %v1149 = vunpack.c.l.b16 %v996
  %v1150 = vunpack.c.h.b16 %v996
  %v1151 = vunpack.c.l.b16 %v997
  %v1152 = vunpack.c.h.b16 %v997
  %v1153 = vunpack.c.l.b16 %v998
  %v1154 = vunpack.c.h.b16 %v998
  %v1155 = vunpack.c.l.b16 %v999
  %v1156 = vunpack.c.h.b16 %v999
  %v1157 = vunpack.c.l.b16 %v1000
  %v1158 = vunpack.c.h.b16 %v1000
  %v1159 = vunpack.c.l.b16 %v1001
  %v1160 = vunpack.c.h.b16 %v1001
  %v1161 = vunpack.c.l.b16 %v1002
  %v1162 = vunpack.c.h.b16 %v1002
  %v1163 = vunpack.c.l.b16 %v1003
  %v1164 = vunpack.c.h.b16 %v1003
  %v1165 = vunpack.c.l.b16 %v1004
  %v1166 = vunpack.c.h.b16 %v1004
  %v1167 = vunpack.c.l.b16 %v1005
  %v1168 = vunpack.c.h.b16 %v1005
  %v1169 = vunpack.c.l.b16 %v1006
  %v1170 = vunpack.c.h.b16 %v1006
  %v1171 = vunpack.c.l.b16 %v1007
  %v1172 = vunpack.c.h.b16 %v1007
  %v1173 = vunpack.c.l.b16 %v1008
  %v1174 = vunpack.c.h.b16 %v1008
  %v1175 = vunpack.c.l.b16 %v1009
  %v1176 = vunpack.c.h.b16 %v1009
  %v1177 = vunpack.c.l.b16 %v1010
  %v1178 = vunpack.c.h.b16 %v1010
  %v1179 = vunpack.c.l.b16 %v1011
  %v1180 = vunpack.c.h.b16 %v1011
  %v1181 = vunpack.c.l.b16 %v1012
  %v1182 = vunpack.c.h.b16 %v1012
  %v1183 = vunpack.c.l.b16 %v1013
  %v1184 = vunpack.c.h.b16 %v1013
  %v1185 = vunpack.c.l.b16 %v1014
  %v1186 = vunpack.c.h.b16 %v1014
  %v1187 = vunpack.c.l.b16 %v1015
  %v1188 = vunpack.c.h.b16 %v1015
  %v1189 = vunpack.c.l.b16 %v1016
  %v1190 = vunpack.c.h.b16 %v1016
  %v1191 = vunpack.c.l.b16 %v1017
  %v1192 = vunpack.c.h.b16 %v1017
  %v1193 = vunpack.c.l.b16 %v1018
  %v1194 = vunpack.c.h.b16 %v1018
  %v1195 = vunpack.c.l.b16 %v1019
  %v1196 = vunpack.c.h.b16 %v1019
  %v1197 = vunpack.c.l.b16 %v1020
  %v1198 = vunpack.c.h.b16 %v1020
  %v1199 = vunpack.c.l.b16 %v1021
  %v1200 = vunpack.c.h.b16 %v1021
  %v1201 = vunpack.c.l.b16 %v1022
  %v1202 = vunpack.c.h.b16 %v1022
  %v1203 = vunpack.c.l.b16 %v1023
  %v1204 = vunpack.c.h.b16 %v1023
  %v1205 = vunpack.c.l.b16 %v1024
  %v1206 = vunpack.c.h.b16 %v1024
  %v1207 = vunpack.c.l.b16 %v1025
  %v1208 = vunpack.c.h.b16 %v1025
  %v1209 = vunpack.c.l.b16 %v1026
  %v1210 = vunpack.c.h.b16 %v1026
  %v1211 = vunpack.c.l.b16 %v1027
  %v1212 = vunpack.c.h.b16 %v1027
  %v1213 = vunpack.c.l.b16 %v1028
  %v1214 = vunpack.c.h.b16 %v1028
  %v1215 = vunpack.c.l.b16 %v1029
  %v1216 = vunpack.c.h.b16 %v1029
  %v1217 = vunpack.c.l.b16 %v1030
  %v1218 = vunpack.c.h.b16 %v1030
  %v1219 = vunpack.c.l.b16 %v1031
  %v1220 = vunpack.c.h.b16 %v1031
  %v1221 = vunpack.c.l.b16 %v1032
  %v1222 = vunpack.c.h.b16 %v1032
  %v1223 = vunpack.c.l.b16 %v1033
  %v1224 = vunpack.c.h.b16 %v1033
  %v1225 = vunpack.c.l.b16 %v1034
  %v1226 = vunpack.c.h.b16 %v1034
  %v1227 = vunpack.c.l.b16 %v1035
  %v1228 = vunpack.c.h.b16 %v1035
  %v1229 = vunpack.c.l.b16 %v1036
  %v1230 = vunpack.c.h.b16 %v1036
  %v1231 = vunpack.c.l.b16 %v1037
  %v1232 = vunpack.c.h.b16 %v1037
  %v1233 = vunpack.c.l.b16 %v1038
  %v1234 = vunpack.c.h.b16 %v1038
  %v1235 = vunpack.c.l.b16 %v1039
  %v1236 = vunpack.c.h.b16 %v1039
  %v1237 = vunpack.c.l.b16 %v1040
  %v1238 = vunpack.c.h.b16 %v1040
  %v1239 = vunpack.c.l.b16 %v1041
  %v1240 = vunpack.c.h.b16 %v1041
  %v1241 = vunpack.c.l.b16 %v1042
  %v1242 = vunpack.c.h.b16 %v1042
  %v1243 = vunpack.c.l.b16 %v1043
  %v1244 = vunpack.c.h.b16 %v1043
  %v1245 = vunpack.c.l.b16 %v1044
  %v1246 = vunpack.c.h.b16 %v1044
  %v1247 = vunpack.c.l.b16 %v1045
  %v1248 = vunpack.c.h.b16 %v1045
  %v1249 = vunpack.c.l.b16 %v1046
  %v1250 = vunpack.c.h.b16 %v1046
  %v1251 = vpack.c.b16 %v1125, %v1123
  %v1252 = vpack.c.b16 %v1126, %v1124
  %v1253 = vpack.c.b16 %v1129, %v1127
  %v1254 = vpack.c.b16 %v1130, %v1128
  %v1255 = vpack.c.b16 %v1133, %v1131
  %v1256 = vpack.c.b16 %v1134, %v1132
  %v1257 = vpack.c.b16 %v1137, %v1135
  %v1258 = vpack.c.b16 %v1138, %v1136
  %v1259 = vpack.c.b16 %v1141, %v1139
  %v1260 = vpack.c.b16 %v1142, %v1140
  %v1261 = vpack.c.b16 %v1145, %v1143
  %v1262 = vpack.c.b16 %v1146, %v1144
  %v1263 = vpack.c.b16 %v1149, %v1147
  %v1264 = vpack.c.b16 %v1150, %v1148
  %v1265 = vpack.c.b16 %v1153, %v1151
  %v1266 = vpack.c.b16 %v1154, %v1152
  %v1267 = vpack.c.b16 %v1157, %v1155
  %v1268 = vpack.c.b16 %v1158, %v1156
  %v1269 = vpack.c.b16 %v1161, %v1159
  %v1270 = vpack.c.b16 %v1162, %v1160
  %v1271 = vpack.c.b16 %v1165, %v1163
  %v1272 = vpack.c.b16 %v1166, %v1164
  %v1273 = vpack.c.b16 %v1169, %v1167
  %v1274 = vpack.c.b16 %v1170, %v1168
  %v1275 = vpack.c.b16 %v1173, %v1171
  %v1276 = vpack.c.b16 %v1174, %v1172
  %v1277 = vpack.c.b16 %v1177, %v1175
  %v1278 = vpack.c.b16 %v1178, %v1176
  %v1279 = vpack.c.b16 %v1181, %v1179
  %v1280 = vpack.c.b16 %v1182, %v1180
  %v1281 = vpack.c.b16 %v1185, %v1183
  %v1282 = vpack.c.b16 %v1186, %v1184
  %v1283 = vpack.c.b16 %v1189, %v1187
  %v1284 = vpack.c.b16 %v1190, %v1188
  %v1285 = vpack.c.b16 %v1193, %v1191
  %v1286 = vpack.c.b16 %v1194, %v1192
  %v1287 = vpack.c.b16 %v1197, %v1195
  %v1288 = vpack.c.b16 %v1198, %v1196
  %v1289 = vpack.c.b16 %v1201, %v1199
  %v1290 = vpack.c.b16 %v1202, %v1200
  %v1291 = vpack.c.b16 %v1205, %v1203
  %v1292 = vpack.c.b16 %v1206, %v1204
  %v1293 = vpack.c.b16 %v1209, %v1207
  %v1294 = vpack.c.b16 %v1210, %v1208
  %v1295 = vpack.c.b16 %v1213, %v1211
  %v1296 = vpack.c.b16 %v1214, %v1212
  %v1297 = vpack.c.b16 %v1217, %v1215
  %v1298 = vpack.c.b16 %v1218, %v1216
  %v1299 = vpack.c.b16 %v1221, %v1219
  %v1300 = vpack.c.b16 %v1222, %v1220
  %v1301 = vpack.c.b16 %v1225, %v1223
  %v1302 = vpack.c.b16 %v1226, %v1224
  %v1303 = vpack.c.b16 %v1229, %v1227
  %v1304 = vpack.c.b16 %v1230, %v1228
  %v1305 = vpack.c.b16 %v1233, %v1231
  %v1306 = vpack.c.b16 %v1234, %v1232
  %v1307 = vpack.c.b16 %v1237, %v1235
  %v1308 = vpack.c.b16 %v1238, %v1236
  %v1309 = vpack.c.b16 %v1241, %v1239
  %v1310 = vpack.c.b16 %v1242, %v1240
  %v1311 = vpack.c.b16 %v1245, %v1243
  %v1312 = vpack.c.b16 %v1246, %v1244
  %v1313 = vpack.c.b16 %v1249, %v1247
  %v1314 = vpack.c.b16 %v1250, %v1248
  %1379 = vmatprep.subr.bf16.mxu0 %v1252
  %1380 = vmatpush1.bf16.msra.mxu0 %v1251
  %1381 = vmatprep.subr.bf16.mxu0 %v1254
  %1382 = vmatpush1.bf16.msra.mxu0 %v1253
  %1383 = vmatprep.subr.bf16.mxu0 %v1256
  %1384 = vmatpush1.bf16.msra.mxu0 %v1255
  %1385 = vmatprep.subr.bf16.mxu0 %v1258
  %1386 = vmatpush1.bf16.msra.mxu0 %v1257
  %1387 = vmatprep.subr.bf16.mxu0 %v1260
  %1388 = vmatpush1.bf16.msra.mxu0 %v1259
  %1389 = vmatprep.subr.bf16.mxu0 %v1262
  %1390 = vmatpush1.bf16.msra.mxu0 %v1261
  %1391 = vmatprep.subr.bf16.mxu0 %v1264
  %1392 = vmatpush1.bf16.msra.mxu0 %v1263
  %1393 = vmatprep.subr.bf16.mxu0 %v1266
  %1394 = vmatpush1.bf16.msra.mxu0 %v1265
  %1395 = vmatprep.subr.bf16.mxu0 %v1268
  %1396 = vmatpush1.bf16.msra.mxu0 %v1267
  %1397 = vmatprep.subr.bf16.mxu0 %v1270
  %1398 = vmatpush1.bf16.msra.mxu0 %v1269
  %1399 = vmatprep.subr.bf16.mxu0 %v1272
  %1400 = vmatpush1.bf16.msra.mxu0 %v1271
  %1401 = vmatprep.subr.bf16.mxu0 %v1274
  %1402 = vmatpush1.bf16.msra.mxu0 %v1273
  %1403 = vmatprep.subr.bf16.mxu0 %v1276
  %1404 = vmatpush1.bf16.msra.mxu0 %v1275
  %1405 = vmatprep.subr.bf16.mxu0 %v1278
  %1406 = vmatpush1.bf16.msra.mxu0 %v1277
  %1407 = vmatprep.subr.bf16.mxu0 %v1280
  %1408 = vmatpush1.bf16.msra.mxu0 %v1279
  %1409 = vmatprep.subr.bf16.mxu0 %v1282
  %1410 = vmatpush1.bf16.msra.mxu0 %v1281
  %1411 = vmatprep.mubr.bf16.mxu0 %v976
  %1412 = vmatmul.mubr.bf16.gmra.mrb[0].mxu0 %v975
  %v1413 = vpop.f32.mrb[0].mxu0
  %v1414 = vadd.f32 %v1052, %v1413
  %v1415 = vpop.f32.mrb[0].mxu0
  %v1416 = vadd.f32 %v1056, %v1415
  %v1417 = vpop.f32.mrb[0].mxu0
  %v1418 = vadd.f32 %v1052, %v1417
  %v1419 = vpop.f32.mrb[0].mxu0
  %v1420 = vadd.f32 %v1056, %v1419
  %1421 = vmatprep.mubr.bf16.mxu0 %v980
  %1422 = vmatmul.mubr.bf16.gmra.mrb[0].mxu0 %v979
  %v1423 = vpop.f32.mrb[0].mxu0
  %v1424 = vadd.f32 %v1052, %v1423
  %v1425 = vpop.f32.mrb[0].mxu0
  %v1426 = vadd.f32 %v1056, %v1425
  %v1427 = vpop.f32.mrb[0].mxu0
  %v1428 = vadd.f32 %v1052, %v1427
  %v1429 = vpop.f32.mrb[0].mxu0
  %v1430 = vadd.f32 %v1056, %v1429
  %1431 = vdwg.mxu0
  %1432 = vmatprep.subr.bf16.mxu0 %v1284
  %1433 = vmatpush1.bf16.msra.mxu0 %v1283
  %1434 = vmatprep.subr.bf16.mxu0 %v1286
  %1435 = vmatpush1.bf16.msra.mxu0 %v1285
  %1436 = vmatprep.subr.bf16.mxu0 %v1288
  %1437 = vmatpush1.bf16.msra.mxu0 %v1287
  %1438 = vmatprep.subr.bf16.mxu0 %v1290
  %1439 = vmatpush1.bf16.msra.mxu0 %v1289
  %1440 = vmatprep.subr.bf16.mxu0 %v1292
  %1441 = vmatpush1.bf16.msra.mxu0 %v1291
  %1442 = vmatprep.subr.bf16.mxu0 %v1294
  %1443 = vmatpush1.bf16.msra.mxu0 %v1293
  %1444 = vmatprep.subr.bf16.mxu0 %v1296
  %1445 = vmatpush1.bf16.msra.mxu0 %v1295
  %1446 = vmatprep.subr.bf16.mxu0 %v1298
  %1447 = vmatpush1.bf16.msra.mxu0 %v1297
  %1448 = vmatprep.subr.bf16.mxu0 %v1300
  %1449 = vmatpush1.bf16.msra.mxu0 %v1299
  %1450 = vmatprep.subr.bf16.mxu0 %v1302
  %1451 = vmatpush1.bf16.msra.mxu0 %v1301
  %1452 = vmatprep.subr.bf16.mxu0 %v1304
  %1453 = vmatpush1.bf16.msra.mxu0 %v1303
  %1454 = vmatprep.subr.bf16.mxu0 %v1306
  %1455 = vmatpush1.bf16.msra.mxu0 %v1305
  %1456 = vmatprep.subr.bf16.mxu0 %v1308
  %1457 = vmatpush1.bf16.msra.mxu0 %v1307
  %1458 = vmatprep.subr.bf16.mxu0 %v1310
  %1459 = vmatpush1.bf16.msra.mxu0 %v1309
  %1460 = vmatprep.subr.bf16.mxu0 %v1312
  %1461 = vmatpush1.bf16.msra.mxu0 %v1311
  %1462 = vmatprep.subr.bf16.mxu0 %v1314
  %1463 = vmatpush1.bf16.msra.mxu0 %v1313
  %1464 = vmatprep.mubr.bf16.mxu0 %v978
  %1465 = vmatmul.mubr.bf16.gmra.mrb[0].mxu0 %v977
  %v1466 = vpop.f32.mrb[0].mxu0
  %v1467 = vadd.f32 %v1414, %v1466
  %v1468 = vpop.f32.mrb[0].mxu0
  %v1469 = vadd.f32 %v1416, %v1468
  %v1470 = vpop.f32.mrb[0].mxu0
  %v1471 = vadd.f32 %v1418, %v1470
  %v1472 = vpop.f32.mrb[0].mxu0
  %v1473 = vadd.f32 %v1420, %v1472
  %1474 = vmatprep.mubr.bf16.mxu0 %v982
  %1475 = vmatmul.mubr.bf16.gmra.mrb[0].mxu0 %v981
  %v1476 = vpop.f32.mrb[0].mxu0
  %v1477 = vadd.f32 %v1424, %v1476
  %v1478 = vpop.f32.mrb[0].mxu0
  %v1479 = vadd.f32 %v1426, %v1478
  %v1480 = vpop.f32.mrb[0].mxu0
  %v1481 = vadd.f32 %v1428, %v1480
  %v1482 = vpop.f32.mrb[0].mxu0
  %v1483 = vadd.f32 %v1430, %v1482
  %1484 = vdwg.mxu0
  %v1485 = vadd.f32 %v435, %v1467
  %v1486 = vadd.f32 %v436, %v1469
  %v1487 = vadd.f32 %v437, %v1471
  %v1488 = vadd.f32 %v438, %v1473
  %v1489 = vadd.f32 %v439, %v1477
  %v1490 = vadd.f32 %v440, %v1479
  %v1491 = vadd.f32 %v441, %v1481
  %v1492 = vadd.f32 %v442, %v1483
  %v1493 = vld [vmem:[%s10] sm:$0x3]
  %v1494 = vld [vmem:[%s11] sm:$0x3]
  %v1495 = vadd.f32 %v1485, %v1486
  %1496 = vadd.xlane.f32.xlu0 %v1495
  %v1497 = vpop.xlane.xlu0 %1496
  %v1498 = vadd.f32 %v1487, %v1488
  %1499 = vadd.xlane.f32.xlu0 %v1498
  %v1500 = vpop.xlane.xlu0 %1499
  %v1501 = vadd.f32 %v1489, %v1490
  %1502 = vadd.xlane.f32.xlu0 %v1501
  %v1503 = vpop.xlane.xlu0 %1502
  %v1504 = vadd.f32 %v1491, %v1492
  %1505 = vadd.xlane.f32.xlu0 %v1504
  %v1506 = vpop.xlane.xlu0 %1505
  %v1507 = vmul.f32 %v1497, %v352
  %v1508 = vmul.f32 %v1500, %v352
  %v1509 = vmul.f32 %v1503, %v352
  %v1510 = vmul.f32 %v1506, %v352
  %v1511 = vsub.f32 %v1485, %v1507
  %v1512 = vsub.f32 %v1486, %v1507
  %v1513 = vsub.f32 %v1487, %v1508
  %v1514 = vsub.f32 %v1488, %v1508
  %v1515 = vsub.f32 %v1489, %v1509
  %v1516 = vsub.f32 %v1490, %v1509
  %v1517 = vsub.f32 %v1491, %v1510
  %v1518 = vsub.f32 %v1492, %v1510
  %v1519 = vmul.f32 %v1511, %v1511
  %v1520 = vmul.f32 %v1512, %v1512
  %v1521 = vmul.f32 %v1513, %v1513
  %v1522 = vmul.f32 %v1514, %v1514
  %v1523 = vmul.f32 %v1515, %v1515
  %v1524 = vmul.f32 %v1516, %v1516
  %v1525 = vmul.f32 %v1517, %v1517
  %v1526 = vmul.f32 %v1518, %v1518
  %v1527 = vadd.f32 %v1519, %v1520
  %1528 = vadd.xlane.f32.xlu0 %v1527
  %v1529 = vpop.xlane.xlu0 %1528
  %v1530 = vadd.f32 %v1521, %v1522
  %1531 = vadd.xlane.f32.xlu0 %v1530
  %v1532 = vpop.xlane.xlu0 %1531
  %v1533 = vadd.f32 %v1523, %v1524
  %1534 = vadd.xlane.f32.xlu0 %v1533
  %v1535 = vpop.xlane.xlu0 %1534
  %v1536 = vadd.f32 %v1525, %v1526
  %1537 = vadd.xlane.f32.xlu0 %v1536
  %v1538 = vpop.xlane.xlu0 %1537
  %v1539 = vmul.f32 %v1529, %v352
  %v1540 = vmul.f32 %v1532, %v352
  %v1541 = vmul.f32 %v1535, %v352
  %v1542 = vmul.f32 %v1538, %v352
  %v1543 = vadd.f32 %v1539, 1e-05
  %v1544 = vadd.f32 %v1540, 1e-05
  %v1545 = vadd.f32 %v1541, 1e-05
  %v1546 = vadd.f32 %v1542, 1e-05
  %v1547 = vrsqrt.pop %v1543
  %v1548 = vrsqrt.pop %v1544
  %v1549 = vrsqrt.pop %v1545
  %v1550 = vrsqrt.pop %v1546
  %v1551 = vmul.f32 %v1511, %v1547
  %v1552 = vmul.f32 %v1512, %v1547
  %v1553 = vmul.f32 %v1513, %v1548
  %v1554 = vmul.f32 %v1514, %v1548
  %v1555 = vmul.f32 %v1515, %v1549
  %v1556 = vmul.f32 %v1516, %v1549
  %v1557 = vmul.f32 %v1517, %v1550
  %v1558 = vmul.f32 %v1518, %v1550
  %v1560 = vlaneseq
  %v1561 = vshrl.u32 %v1560, 7
  %v1562 = vsub.s32 0, %v1561
  %v1563 = vrot.slane %v1493, %v1562
  %v1564 = vlaneseq
  %v1565 = vshrl.u32 %v1564, 7
  %v1566 = vsub.s32 1, %v1565
  %v1567 = vrot.slane %v1493, %v1566
  %v1570 = vmul.f32 %v1551, %v1563
  %v1571 = vmul.f32 %v1552, %v1567
  %v1572 = vmul.f32 %v1553, %v1563
  %v1573 = vmul.f32 %v1554, %v1567
  %v1574 = vmul.f32 %v1555, %v1563
  %v1575 = vmul.f32 %v1556, %v1567
  %v1576 = vmul.f32 %v1557, %v1563
  %v1577 = vmul.f32 %v1558, %v1567
  %v1579 = vlaneseq
  %v1580 = vshrl.u32 %v1579, 7
  %v1581 = vsub.s32 0, %v1580
  %v1582 = vrot.slane %v1494, %v1581
  %v1583 = vlaneseq
  %v1584 = vshrl.u32 %v1583, 7
  %v1585 = vsub.s32 1, %v1584
  %v1586 = vrot.slane %v1494, %v1585
  %v1589 = vadd.f32 %v1570, %v1582
  %v1590 = vadd.f32 %v1571, %v1586
  %v1591 = vadd.f32 %v1572, %v1582
  %v1592 = vadd.f32 %v1573, %v1586
  %v1593 = vadd.f32 %v1574, %v1582
  %v1594 = vadd.f32 %v1575, %v1586
  %v1595 = vadd.f32 %v1576, %v1582
  %v1596 = vadd.f32 %v1577, %v1586
  %1597 = vst [vmem:[%s12] sm:$0xff] %v1589
  %1598 = vst [vmem:[%s12 + $0x8] sm:$0xff] %v1590
  %1599 = vst [vmem:[%s12 + $0x10] sm:$0xff] %v1591
  %1600 = vst [vmem:[%s12 + $0x18] sm:$0xff] %v1592
  %1601 = vst [vmem:[%s12 + $0x20] sm:$0xff] %v1593
  %1602 = vst [vmem:[%s12 + $0x28] sm:$0xff] %v1594
  %1603 = vst [vmem:[%s12 + $0x30] sm:$0xff] %v1595
  %1604 = vst [vmem:[%s12 + $0x38] sm:$0xff] %v1596
  // Predicated region
  $region50: #{transformer_forward.11} parent=0 // pred_check
    _
  $region51: #{transformer_forward.11} parent=0 // pred_check_branch
    %1606 = sbr.rel (0) target = $region53
  $region52: #{transformer_forward.11} parent=0 // pred_region
    _
  $region53: #{transformer_forward.11} parent=0 // pred_fallthru
    _
  // Predicated region
  $region54: #{transformer_forward.11} parent=0 // pred_check
    _
  $region55: #{transformer_forward.11} parent=0 // pred_check_branch
    %1608 = sbr.rel (0) target = $region57
  $region56: #{transformer_forward.11} parent=0 // pred_region
    _
  $region57: #{transformer_forward.11} parent=0 // pred_fallthru
    _

</llo_original>
